<compile_context>
chip_gen: v7x
topology: tpu7x:2x2x1
jax: 0.10.0
libtpu: 0.0.40
codegen_flags: <defaults>
</compile_context>

<pallas_src>
import numpy as np
import jax
import jax.numpy as jnp
from jax import lax
from jax.experimental import pallas as pl
from jax.experimental.pallas import tpu as pltpu

# ----------------------------- configuration ------------------------------
IN_FEATURES = ("p2", "p3", "p4", "p5")
FEATURE_STRIDES = {"p2": 4, "p3": 8, "p4": 16, "p5": 32}
COMMON_STRIDE = 4
CONV_DIMS = 64
NUM_CLASSES = 5
BATCH = 2
IMG_SIZE = 64           # p2 is IMG_SIZE // 4 = 16

_VMEM_LIMIT = 32 * 1024 * 1024


# --------------------------- bilinear helpers ------------------------------
def _interp_matrix(out_size, in_size):
    """PyTorch-compatible bilinear (align_corners=False) interpolation matrix."""
    scale = in_size / out_size
    dst = np.arange(out_size, dtype=np.float64)
    src = (dst + 0.5) * scale - 0.5
    src = np.clip(src, 0.0, None)          # PyTorch clamps negative coords to 0
    x0 = np.floor(src).astype(np.int64)
    x0 = np.minimum(x0, in_size - 1)
    x1 = np.minimum(x0 + 1, in_size - 1)
    w1 = (src - x0).astype(np.float32)
    w0 = (1.0 - w1).astype(np.float32)
    M = np.zeros((out_size, in_size), dtype=np.float32)
    M[np.arange(out_size), x0] += w0
    M[np.arange(out_size), x1] += w1
    return M


def _upsample2x_inner(x, rw):
    """2x bilinear upsample (align_corners=False) of x (S, S, C), in-kernel.

    H axis: 2-tap phase blend + row interleave (no dense matrix, VPU only).
    W axis: per-row batched matmul against the (2S, S) interpolation matrix.
    """
    s, _, c = x.shape
    # --- H axis: phases for even/odd output rows (exact PyTorch weights) ---
    xprev = jnp.concatenate([x[:1], x[:-1]], axis=0)   # edge-clamped shift up
    xnext = jnp.concatenate([x[1:], x[-1:]], axis=0)   # edge-clamped shift down
    p_even = 0.25 * xprev + 0.75 * x
    p_odd = 0.75 * x + 0.25 * xnext
    # row interleave: concat on axis 1, then re-factor the leading dims
    # (minor dim untouched) -> out[2i] = p_even[i], out[2i+1] = p_odd[i]
    y = jnp.concatenate([p_even, p_odd], axis=1).reshape(2 * s, s, c)
    # --- W axis: separable (2S, S) matmul, batched over rows ---
    rb = jnp.broadcast_to(rw, (2 * s, 2 * s, s))
    out = jnp.einsum("hpw,hwc->hpc", rb, y, preferred_element_type=jnp.float32)
    return out.astype(x.dtype)


# --------------------------- fused scale-head kernel ------------------------
def _make_head_kernel(sizes, upsample, C):
    n_stages = len(sizes)

    def kernel(*refs):
        x_ref = refs[0]
        pos = 1
        stage_refs = []
        for _ in range(n_stages):
            stage_refs.append((refs[pos], refs[pos + 1]))
            pos += 2
        rw_refs = []
        if upsample:
            rw_refs = list(refs[pos:pos + n_stages])
            pos += n_stages
        o_ref = refs[pos]
        xpad_ref = refs[pos + 1]
        patch_ref = refs[pos + 2]

        # In-kernel conv halo: zero the padded scratch once; every stage only
        # writes its interior, so the 1-pixel border stays zero (replaces the
        # old wrapper-side jnp.pad HBM round-trip).
        xpad_ref[...] = jnp.zeros(xpad_ref.shape, xpad_ref.dtype)

        x = x_ref[0]                                       # (S0, S0, C) bf16
        for stage, s in enumerate(sizes):
            w_ref, b_ref = stage_refs[stage]
            xpad_ref[1:s + 1, 1:s + 1, :] = x
            # im2col: assemble (s*s, 9C) patch matrix in VMEM scratch, then one
            # K = 9*C matmul (fills the MXU contraction depth).
            for kh in range(3):
                for kw in range(3):
                    t = kh * 3 + kw
                    slab = xpad_ref[kh:kh + s, kw:kw + s, :]
                    patch_ref[0:s * s, t * C:(t + 1) * C] = slab.reshape(s * s, C)
            acc = jnp.dot(patch_ref[0:s * s, :], w_ref[...],
                          preferred_element_type=jnp.float32)
            acc = jnp.maximum(acc + b_ref[...], 0.0)
            x = acc.reshape(s, s, C).astype(jnp.bfloat16)
            if upsample:
                x = _upsample2x_inner(x, rw_refs[stage][...])
        o_ref[0] = x

    return kernel


def scale_head_forward(x_nhwc, stage_weights, upsample):
    """Fused conv3x3(+bias+relu)[+2x upsample] chain for one FPN level.

    x_nhwc: (N, S0, S0, C) bf16; stage_weights: [(wmat (9C, C) bf16, bias (1, C) f32)].
    Returns (N, 16, 16, C) bf16 at common-stride resolution.
    """
    N, S0, _, C = x_nhwc.shape
    n_stages = len(stage_weights)
    sizes = [S0 * (2 ** i) for i in range(n_stages)]
    max_s = sizes[-1]
    out_s = sizes[-1] * (2 if upsample else 1)

    inputs = [x_nhwc]
    in_specs = [pl.BlockSpec((1, S0, S0, C), lambda n: (n, 0, 0, 0))]
    for wmat, bias in stage_weights:
        inputs += [wmat, bias]
        in_specs += [pl.BlockSpec(wmat.shape, lambda n: (0, 0)),
                     pl.BlockSpec(bias.shape, lambda n: (0, 0))]
    if upsample:
        for s in sizes:
            rw = jnp.asarray(_interp_matrix(2 * s, s), dtype=jnp.bfloat16)
            inputs.append(rw)
            in_specs.append(pl.BlockSpec((2 * s, s), lambda n: (0, 0)))

    return pl.pallas_call(
        _make_head_kernel(sizes, upsample, C),
        out_shape=jax.ShapeDtypeStruct((N, out_s, out_s, C), jnp.bfloat16),
        grid=(N,),
        in_specs=in_specs,
        out_specs=pl.BlockSpec((1, out_s, out_s, C), lambda n: (n, 0, 0, 0)),
        scratch_shapes=[
            pltpu.VMEM((max_s + 2, max_s + 2, C), jnp.bfloat16),   # padded act
            pltpu.VMEM((max_s * max_s, 9 * C), jnp.bfloat16),      # im2col buf
        ],
        compiler_params=pltpu.CompilerParams(
            dimension_semantics=("parallel",),
            vmem_limit_bytes=_VMEM_LIMIT),
    )(*inputs)


# --------------- fused sum + 1x1 predictor + 4x upsample kernel -------------
def _predict_upsample_kernel(h0_ref, h1_ref, h2_ref, h3_ref, wpt_ref, bp_ref,
                             rh_ref, rwt_ref, o_ref):
    H = h0_ref.shape[1]
    W = h0_ref.shape[2]
    C = h0_ref.shape[3]
    NC = wpt_ref.shape[0]
    Wo = rwt_ref.shape[1]

    # sum of the 4 scale heads (no jnp.stack / extra HBM array)
    s = h0_ref[0] + h1_ref[0] + h2_ref[0] + h3_ref[0]          # (H, W, C) bf16

    # 1x1 predictor as a per-row batched matmul -> (H, NC, W)
    wb = jnp.broadcast_to(wpt_ref[...], (H, NC, C))
    logit = jnp.einsum("ikc,ijc->ikj", wb, s,
                       preferred_element_type=jnp.float32)
    logit = logit + bp_ref[...][None]                          # (1, NC, 1)

    # separable 4x bilinear upsample: W axis as one merged (H*NC, W) matmul ...
    lw = jnp.dot(logit.reshape(H * NC, W), rwt_ref[...],
                 preferred_element_type=jnp.float32).reshape(H, NC, Wo)
    # ... H axis per class, storing each (Ho, Wo) plane straight into the
    # NCHW output block (lane-dense stores, no XLA transpose afterwards).
    for k in range(NC):
        o_ref[0, k] = jnp.dot(rh_ref[...], lw[:, k, :],
                              preferred_element_type=jnp.float32
                              ).astype(o_ref.dtype)


def predict_and_upsample(heads, wpT, bias_p):
    """heads: 4x (N, H, W, C) bf16; wpT: (NC, C) bf16; bias_p: (NC, 1) f32."""
    N, H, W, C = heads[0].shape
    NC = wpT.shape[0]
    Ho, Wo = COMMON_STRIDE * H, COMMON_STRIDE * W
    rh = jnp.asarray(_interp_matrix(Ho, H), dtype=jnp.float32)        # (Ho, H)
    rwt = jnp.asarray(_interp_matrix(Wo, W).T, dtype=jnp.float32)     # (W, Wo)

    head_spec = pl.BlockSpec((1, H, W, C), lambda n: (n, 0, 0, 0))
    return pl.pallas_call(
        _predict_upsample_kernel,
        out_shape=jax.ShapeDtypeStruct((N, NC, Ho, Wo), jnp.float32),
        grid=(N,),
        in_specs=[head_spec, head_spec, head_spec, head_spec,
                  pl.BlockSpec((NC, C), lambda n: (0, 0)),
                  pl.BlockSpec((NC, 1), lambda n: (0, 0)),
                  pl.BlockSpec((Ho, H), lambda n: (0, 0)),
                  pl.BlockSpec((W, Wo), lambda n: (0, 0))],
        out_specs=pl.BlockSpec((1, NC, Ho, Wo), lambda n: (n, 0, 0, 0)),
        compiler_params=pltpu.CompilerParams(
            dimension_semantics=("parallel",),
            vmem_limit_bytes=_VMEM_LIMIT),
    )(heads[0], heads[1], heads[2], heads[3], wpT, bias_p, rh, rwt)


# ------------------------- parameter initialization -------------------------
def head_length(stride):
    return max(1, int(np.log2(stride) - np.log2(COMMON_STRIDE)))


def init_params(key):
    """c2_msra_fill-style init (kaiming normal fan_out, zero bias)."""
    params = {"heads": {}, "predictor": None}
    for f in IN_FEATURES:
        layers = []
        for _ in range(head_length(FEATURE_STRIDES[f])):
            key, k1 = jax.random.split(key)
            fan_out = 3 * 3 * CONV_DIMS
            w = np.sqrt(2.0 / fan_out) * jax.random.normal(
                k1, (3, 3, CONV_DIMS, CONV_DIMS), dtype=jnp.float32)
            b = jnp.zeros((CONV_DIMS,), dtype=jnp.float32)
            layers.append((w, b))
        params["heads"][f] = layers
    key, k1 = jax.random.split(key)
    fan_out = NUM_CLASSES
    wp = np.sqrt(2.0 / fan_out) * jax.random.normal(
        k1, (CONV_DIMS, NUM_CLASSES), dtype=jnp.float32)
    bp = jnp.zeros((NUM_CLASSES,), dtype=jnp.float32)
    params["predictor"] = (wp, bp)
    return params


# ------------------------------ forward pass --------------------------------
def sem_seg_fpn_head_forward(features, params):
    """features: dict of NCHW arrays (PyTorch layout). Returns (NCHW logits, {})."""
    heads_out = []
    for f in IN_FEATURES:
        x = jnp.transpose(features[f], (0, 2, 3, 1)).astype(jnp.bfloat16)
        stage_weights = []
        for (w, b) in params["heads"][f]:
            wmat = w.reshape(9 * CONV_DIMS, CONV_DIMS).astype(jnp.bfloat16)
            stage_weights.append((wmat, b.reshape(1, CONV_DIMS)))
        heads_out.append(scale_head_forward(
            x, stage_weights, upsample=(FEATURE_STRIDES[f] != COMMON_STRIDE)))

    wp, bp = params["predictor"]
    wpT = wp.T.astype(jnp.bfloat16)                              # (NC, C)
    logits = predict_and_upsample(heads_out, wpT,
                                  bp.reshape(NUM_CLASSES, 1))    # NCHW f32
    return logits, {}


# ------------------------- pure-JAX (XLA) reference --------------------------
def _reference_forward(features, params):
    """f32 reference (same bf16-rounded weights/inputs) for a sanity check."""
    def up(x, factor):
        _, h, w, _ = x.shape
        Rh = jnp.asarray(_interp_matrix(factor * h, h))
        Rw = jnp.asarray(_interp_matrix(factor * w, w))
        x = jnp.einsum("oh,nhwc->nowc", Rh, x)
        x = jnp.einsum("pw,nowc->nopc", Rw, x)
        return x

    outs = []
    for f in IN_FEATURES:
        x = jnp.transpose(features[f], (0, 2, 3, 1))
        x = x.astype(jnp.bfloat16).astype(jnp.float32)
        for (w, b) in params["heads"][f]:
            wq = w.astype(jnp.bfloat16).astype(jnp.float32)
            y = lax.conv_general_dilated(
                x, wq, window_strides=(1, 1), padding="SAME",
                dimension_numbers=("NHWC", "HWIO", "NHWC"))
            x = jnp.maximum(y + b, 0.0)
            if FEATURE_STRIDES[f] != COMMON_STRIDE:
                x = up(x, 2)
        outs.append(x)
    x = outs[0] + outs[1] + outs[2] + outs[3]
    wp, bp = params["predictor"]
    wpq = wp.astype(jnp.bfloat16).astype(jnp.float32)
    x = jnp.einsum("nhwc,ck->nhwk", x, wpq) + bp
    x = up(x, COMMON_STRIDE)
    return jnp.transpose(x, (0, 3, 1, 2))


# ---------------------------------- main -------------------------------------
if __name__ == "__main__":
    key = jax.random.PRNGKey(0)
    key, pkey = jax.random.split(key)
    params = init_params(pkey)

    # FPN features in PyTorch NCHW layout, channels == conv_dims.
    features = {}
    for f in IN_FEATURES:
        key, fk = jax.random.split(key)
        s = IMG_SIZE // FEATURE_STRIDES[f]
        features[f] = jax.random.normal(
            fk, (BATCH, CONV_DIMS, s, s), dtype=jnp.float32)

    out, losses = sem_seg_fpn_head_forward(features, params)
    out = jax.block_until_ready(out)

    expected = (BATCH, NUM_CLASSES, IMG_SIZE, IMG_SIZE)
    assert out.shape == expected, (out.shape, expected)
    assert losses == {}
    assert bool(jnp.all(jnp.isfinite(out)))

    # numerical sanity check vs an XLA reference (loose tol for the bf16 path)
    ref = _reference_forward(features, params)
    max_err = float(jnp.max(jnp.abs(out - ref)))
    assert max_err < 1.0, f"max abs error vs reference: {max_err}"

    print("KERNEL_OK")
</pallas_src>

<mosaic_0001>
module attributes {stable_mosaic.version = 11 : i64} {
  func.func @kernel(%arg0: i32, %arg1: memref<1x16x16x64xbf16, #tpu.memory_space<vmem>>, %arg2: memref<576x64xbf16, #tpu.memory_space<vmem>>, %arg3: memref<1x64xf32, #tpu.memory_space<vmem>>, %arg4: memref<1x16x16x64xbf16, #tpu.memory_space<vmem>>, %arg5: memref<18x18x64xbf16, #tpu.memory_space<vmem>>, %arg6: memref<256x576xbf16, #tpu.memory_space<vmem>>) attributes {dimension_semantics = [#tpu.dimension_semantics<parallel>], iteration_bounds = array<i64: 2>, scalar_prefetch = 0 : i64, scratch_operands = 2 : i64, tpu.core_type = #tpu.core_type<tc>, window_params = [{transform_indices = @transform_0, window_bounds = array<i64: 1, 16, 16, 64>}, {pipeline_mode = #tpu.pipeline_mode<synchronous>, transform_indices = @transform_1, window_bounds = array<i64: 576, 64>}, {pipeline_mode = #tpu.pipeline_mode<synchronous>, transform_indices = @transform_2, window_bounds = array<i64: 1, 64>}, {transform_indices = @transform_3, window_bounds = array<i64: 1, 16, 16, 64>}]} {
    %cst = arith.constant 0.000000e+00 : bf16
    %0 = vector.broadcast %cst : bf16 to vector<18x18x64xbf16>
    %c0 = arith.constant 0 : index
    %c0_0 = arith.constant 0 : index
    %c0_1 = arith.constant 0 : index
    %1 = vector.load %arg5[%c0, %c0_0, %c0_1] : memref<18x18x64xbf16, #tpu.memory_space<vmem>>, vector<18x18x64xbf16>
    tpu.vector_store %arg5[%c0, %c0_0, %c0_1], %0 {strides = array<i32>} : memref<18x18x64xbf16, #tpu.memory_space<vmem>>, vector<18x18x64xbf16>,
    %c0_2 = arith.constant 0 : index
    %c0_3 = arith.constant 0 : index
    %c0_4 = arith.constant 0 : index
    %c0_5 = arith.constant 0 : index
    %2 = vector.load %arg1[%c0_2, %c0_3, %c0_4, %c0_5] : memref<1x16x16x64xbf16, #tpu.memory_space<vmem>>, vector<1x16x16x64xbf16>
    %3 = vector.shape_cast %2 : vector<1x16x16x64xbf16> to vector<16x16x64xbf16>
    %c1 = arith.constant 1 : index
    %c1_6 = arith.constant 1 : index
    %c0_7 = arith.constant 0 : index
    %4 = vector.load %arg5[%c1, %c1_6, %c0_7] : memref<18x18x64xbf16, #tpu.memory_space<vmem>>, vector<16x16x64xbf16>
    tpu.vector_store %arg5[%c1, %c1_6, %c0_7], %3 {strides = array<i32>} : memref<18x18x64xbf16, #tpu.memory_space<vmem>>, vector<16x16x64xbf16>,
    %c0_8 = arith.constant 0 : index
    %c0_9 = arith.constant 0 : index
    %c0_10 = arith.constant 0 : index
    %5 = vector.load %arg5[%c0_8, %c0_9, %c0_10] : memref<18x18x64xbf16, #tpu.memory_space<vmem>>, vector<16x16x64xbf16>
    %6 = vector.shape_cast %5 : vector<16x16x64xbf16> to vector<256x64xbf16>
    %c0_11 = arith.constant 0 : index
    %c0_12 = arith.constant 0 : index
    %7 = vector.load %arg6[%c0_11, %c0_12] : memref<256x576xbf16, #tpu.memory_space<vmem>>, vector<256x64xbf16>
    tpu.vector_store %arg6[%c0_11, %c0_12], %6 {strides = array<i32>} : memref<256x576xbf16, #tpu.memory_space<vmem>>, vector<256x64xbf16>,
    %c0_13 = arith.constant 0 : index
    %c1_14 = arith.constant 1 : index
    %c0_15 = arith.constant 0 : index
    %8 = vector.load %arg5[%c0_13, %c1_14, %c0_15] : memref<18x18x64xbf16, #tpu.memory_space<vmem>>, vector<16x16x64xbf16>
    %9 = vector.shape_cast %8 : vector<16x16x64xbf16> to vector<256x64xbf16>
    %c0_16 = arith.constant 0 : index
    %c64 = arith.constant 64 : index
    %10 = vector.load %arg6[%c0_16, %c64] : memref<256x576xbf16, #tpu.memory_space<vmem>>, vector<256x64xbf16>
    tpu.vector_store %arg6[%c0_16, %c64], %9 {strides = array<i32>} : memref<256x576xbf16, #tpu.memory_space<vmem>>, vector<256x64xbf16>,
    %c0_17 = arith.constant 0 : index
    %c2 = arith.constant 2 : index
    %c0_18 = arith.constant 0 : index
    %11 = vector.load %arg5[%c0_17, %c2, %c0_18] : memref<18x18x64xbf16, #tpu.memory_space<vmem>>, vector<16x16x64xbf16>
    %12 = vector.shape_cast %11 : vector<16x16x64xbf16> to vector<256x64xbf16>
    %c0_19 = arith.constant 0 : index
    %c128 = arith.constant 128 : index
    %13 = vector.load %arg6[%c0_19, %c128] : memref<256x576xbf16, #tpu.memory_space<vmem>>, vector<256x64xbf16>
    tpu.vector_store %arg6[%c0_19, %c128], %12 {strides = array<i32>} : memref<256x576xbf16, #tpu.memory_space<vmem>>, vector<256x64xbf16>,
    %c1_20 = arith.constant 1 : index
    %c0_21 = arith.constant 0 : index
    %c0_22 = arith.constant 0 : index
    %14 = vector.load %arg5[%c1_20, %c0_21, %c0_22] : memref<18x18x64xbf16, #tpu.memory_space<vmem>>, vector<16x16x64xbf16>
    %15 = vector.shape_cast %14 : vector<16x16x64xbf16> to vector<256x64xbf16>
    %c0_23 = arith.constant 0 : index
    %c192 = arith.constant 192 : index
    %16 = vector.load %arg6[%c0_23, %c192] : memref<256x576xbf16, #tpu.memory_space<vmem>>, vector<256x64xbf16>
    tpu.vector_store %arg6[%c0_23, %c192], %15 {strides = array<i32>} : memref<256x576xbf16, #tpu.memory_space<vmem>>, vector<256x64xbf16>,
    %c1_24 = arith.constant 1 : index
    %c1_25 = arith.constant 1 : index
    %c0_26 = arith.constant 0 : index
    %17 = vector.load %arg5[%c1_24, %c1_25, %c0_26] : memref<18x18x64xbf16, #tpu.memory_space<vmem>>, vector<16x16x64xbf16>
    %18 = vector.shape_cast %17 : vector<16x16x64xbf16> to vector<256x64xbf16>
    %c0_27 = arith.constant 0 : index
    %c256 = arith.constant 256 : index
    %19 = vector.load %arg6[%c0_27, %c256] : memref<256x576xbf16, #tpu.memory_space<vmem>>, vector<256x64xbf16>
    tpu.vector_store %arg6[%c0_27, %c256], %18 {strides = array<i32>} : memref<256x576xbf16, #tpu.memory_space<vmem>>, vector<256x64xbf16>,
    %c1_28 = arith.constant 1 : index
    %c2_29 = arith.constant 2 : index
    %c0_30 = arith.constant 0 : index
    %20 = vector.load %arg5[%c1_28, %c2_29, %c0_30] : memref<18x18x64xbf16, #tpu.memory_space<vmem>>, vector<16x16x64xbf16>
    %21 = vector.shape_cast %20 : vector<16x16x64xbf16> to vector<256x64xbf16>
    %c0_31 = arith.constant 0 : index
    %c320 = arith.constant 320 : index
    %22 = vector.load %arg6[%c0_31, %c320] : memref<256x576xbf16, #tpu.memory_space<vmem>>, vector<256x64xbf16>
    tpu.vector_store %arg6[%c0_31, %c320], %21 {strides = array<i32>} : memref<256x576xbf16, #tpu.memory_space<vmem>>, vector<256x64xbf16>,
    %c2_32 = arith.constant 2 : index
    %c0_33 = arith.constant 0 : index
    %c0_34 = arith.constant 0 : index
    %23 = vector.load %arg5[%c2_32, %c0_33, %c0_34] : memref<18x18x64xbf16, #tpu.memory_space<vmem>>, vector<16x16x64xbf16>
    %24 = vector.shape_cast %23 : vector<16x16x64xbf16> to vector<256x64xbf16>
    %c0_35 = arith.constant 0 : index
    %c384 = arith.constant 384 : index
    %25 = vector.load %arg6[%c0_35, %c384] : memref<256x576xbf16, #tpu.memory_space<vmem>>, vector<256x64xbf16>
    tpu.vector_store %arg6[%c0_35, %c384], %24 {strides = array<i32>} : memref<256x576xbf16, #tpu.memory_space<vmem>>, vector<256x64xbf16>,
    %c2_36 = arith.constant 2 : index
    %c1_37 = arith.constant 1 : index
    %c0_38 = arith.constant 0 : index
    %26 = vector.load %arg5[%c2_36, %c1_37, %c0_38] : memref<18x18x64xbf16, #tpu.memory_space<vmem>>, vector<16x16x64xbf16>
    %27 = vector.shape_cast %26 : vector<16x16x64xbf16> to vector<256x64xbf16>
    %c0_39 = arith.constant 0 : index
    %c448 = arith.constant 448 : index
    %28 = vector.load %arg6[%c0_39, %c448] : memref<256x576xbf16, #tpu.memory_space<vmem>>, vector<256x64xbf16>
    tpu.vector_store %arg6[%c0_39, %c448], %27 {strides = array<i32>} : memref<256x576xbf16, #tpu.memory_space<vmem>>, vector<256x64xbf16>,
    %c2_40 = arith.constant 2 : index
    %c2_41 = arith.constant 2 : index
    %c0_42 = arith.constant 0 : index
    %29 = vector.load %arg5[%c2_40, %c2_41, %c0_42] : memref<18x18x64xbf16, #tpu.memory_space<vmem>>, vector<16x16x64xbf16>
    %30 = vector.shape_cast %29 : vector<16x16x64xbf16> to vector<256x64xbf16>
    %c0_43 = arith.constant 0 : index
    %c512 = arith.constant 512 : index
    %31 = vector.load %arg6[%c0_43, %c512] : memref<256x576xbf16, #tpu.memory_space<vmem>>, vector<256x64xbf16>
    tpu.vector_store %arg6[%c0_43, %c512], %30 {strides = array<i32>} : memref<256x576xbf16, #tpu.memory_space<vmem>>, vector<256x64xbf16>,
    %c0_44 = arith.constant 0 : index
    %c0_45 = arith.constant 0 : index
    %32 = vector.load %arg6[%c0_44, %c0_45] : memref<256x576xbf16, #tpu.memory_space<vmem>>, vector<256x576xbf16>
    %c0_46 = arith.constant 0 : index
    %c0_47 = arith.constant 0 : index
    %33 = vector.load %arg2[%c0_46, %c0_47] : memref<576x64xbf16, #tpu.memory_space<vmem>>, vector<576x64xbf16>
    %cst_48 = arith.constant dense<0.000000e+00> : vector<256x64xf32>
    %34 = tpu.matmul %32, %33, %cst_48 {dimension_numbers = #tpu.dot_dimension_numbers<[1], [0], [0], [1], [0, 0, 1, 1], [], []>} : vector<256x576xbf16>, vector<576x64xbf16>, vector<256x64xf32> -> vector<256x64xf32>
    %c0_49 = arith.constant 0 : index
    %c0_50 = arith.constant 0 : index
    %35 = vector.load %arg3[%c0_49, %c0_50] : memref<1x64xf32, #tpu.memory_space<vmem>>, vector<1x64xf32>
    %36 = vector.broadcast %35 : vector<1x64xf32> to vector<256x64xf32>
    %37 = arith.addf %34, %36 : vector<256x64xf32>
    %cst_51 = arith.constant 0.000000e+00 : f32
    %38 = vector.broadcast %cst_51 : f32 to vector<256x64xf32>
    %39 = arith.maximumf %37, %38 : vector<256x64xf32>
    %40 = vector.shape_cast %39 : vector<256x64xf32> to vector<16x16x64xf32>
    %41 = arith.truncf %40 : vector<16x16x64xf32> to vector<16x16x64xbf16>
    %c0_52 = arith.constant 0 : index
    %c0_53 = arith.constant 0 : index
    %c0_54 = arith.constant 0 : index
    %c0_55 = arith.constant 0 : index
    %42 = vector.load %arg4[%c0_52, %c0_53, %c0_54, %c0_55] : memref<1x16x16x64xbf16, #tpu.memory_space<vmem>>, vector<1x16x16x64xbf16>
    %43 = vector.shape_cast %42 : vector<1x16x16x64xbf16> to vector<16x16x64xbf16>
    %44 = vector.shape_cast %41 : vector<16x16x64xbf16> to vector<1x16x16x64xbf16>
    tpu.vector_store %arg4[%c0_52, %c0_53, %c0_54, %c0_55], %44 {strides = array<i32>} : memref<1x16x16x64xbf16, #tpu.memory_space<vmem>>, vector<1x16x16x64xbf16>,
    return
  }
  func.func @transform_0(%arg0: i32) -> (i32, i32, i32, i32) {
    %c0_i32 = arith.constant 0 : i32
    %c0_i32_0 = arith.constant 0 : i32
    %c0_i32_1 = arith.constant 0 : i32
    %c0_i32_2 = arith.constant 0 : i32
    return %arg0, %c0_i32, %c0_i32_0, %c0_i32_1 : i32, i32, i32, i32
  }
  func.func @transform_1(%arg0: i32) -> (i32, i32) {
    %c0_i32 = arith.constant 0 : i32
    %c0_i32_0 = arith.constant 0 : i32
    %c0_i32_1 = arith.constant 0 : i32
    return %c0_i32, %c0_i32_0 : i32, i32
  }
  func.func @transform_2(%arg0: i32) -> (i32, i32) {
    %c0_i32 = arith.constant 0 : i32
    %c0_i32_0 = arith.constant 0 : i32
    %c0_i32_1 = arith.constant 0 : i32
    return %c0_i32, %c0_i32_0 : i32, i32
  }
  func.func @transform_3(%arg0: i32) -> (i32, i32, i32, i32) {
    %c0_i32 = arith.constant 0 : i32
    %c0_i32_0 = arith.constant 0 : i32
    %c0_i32_1 = arith.constant 0 : i32
    %c0_i32_2 = arith.constant 0 : i32
    return %arg0, %c0_i32, %c0_i32_0, %c0_i32_1 : i32, i32, i32, i32
  }
}

</mosaic_0001>

<llo_original>
// kernel: tpu_custom_call.1
$region0: #{tpu_custom_call.1}
  #allocation0 [shape = 'u32[]', space=smem, size = 0x4, offset = 0x4, fixed_abs, tag = 'smem constant byte address 0x4 - core index']
  #allocation1 [shape = 'u32[144,128]{1,0:T(1,128)}', space=vmem, size = 0x12000, scoped, tag = 'internal scratch']
  #allocation2 [shape = 'bf16[18,18,64]{2,1,0:T(8,128)(2,1)}', space=vmem, size = 0x1b000, scoped, tag = 'scratch operand']
  #allocation3 [shape = 'bf16[256,576]{1,0:T(16,128)(2,1)}', space=vmem, size = 0x50000, scoped, tag = 'scratch operand']
  %s0 = inlined_call_operand.vmem [shape: bf16[2,16,16,64], index: 0, kind: input, shape index: {}]
  %s1 = inlined_call_operand.vmem [shape: bf16[576,64], index: 1, kind: input, shape index: {}]
  %s2 = inlined_call_operand.vmem [shape: f32[1,64], index: 2, kind: input, shape index: {}]
  %s3 = inlined_call_operand.hbm [shape: bf16[2,16,16,64], index: 3, kind: output, shape index: {}]
  %s4 = sld [smem:[#allocation0]]
  $region45: #{tpu_custom_call.1} parent=0
    _
  %s6 = ssub.s32 1, %s4
  %s7 = scalar_select 0, %s6, %s4
  $region1: #{tpu_custom_call.1} parent=0
    #allocation4 [shape = 'u8[131072]{0}', space=vmem, size = 0x20000, scoped, tag = 'output window, operand 0']
    #allocation5 [shape = 's32[2]{0}', space=sflag, size = 0x8, scoped, tag = 'scoped memory for tpu_custom_call.1']
    %8 = vsyncpa [#allocation5], 0
    %s9 = scalar_lea.sflag [#allocation5], 1
    %10 = vsyncpa %s9, 0
    loop: start=0, step=1, limit=4
    $region2: #{tpu_custom_call.1} parent=1 // loop_pre_header
      _
    $region3: #{tpu_custom_call.1} parent=1 // loop_header
      %s12 = sphi 0, %s16
      %p13 = scmp.ge.s32.totalorder %s12, 4
      %s22 = sphi 0, %s24
      %s25 = sphi 0, %s22
      %s26 = sphi 0, %s25
      %s42 = sphi 0, %s26
      %s46 = sphi 0, %s46
      %s48 = sphi 0, %s46
      %s49 = sphi 0, %s48
      %s63 = sphi 0, %s49
      %s67 = sphi 0, %s67
      %s69 = sphi 0, %s67
      %s70 = sphi 0, %s69
      %s84 = sphi 0, %s70
      %s90 = sphi 0, %s92
      %s93 = sphi 0, %s90
      %s94 = sphi 0, %s93
      %s110 = sphi 0, %s94
    $region4: #{tpu_custom_call.1} parent=1 // loop_header_branch
      %15 = sbr.rel (%p13) target = $region8
    $region5: #{tpu_custom_call.1} parent=1 // loop_body
      %s17 = ssub.s32 %s12, 1
      %s18 = ssub.s32 %s12, 2
      %s19 = sadd.s32 %s12, 1
      %s20 = ssub.s32 %s12, %s19
      %p21 = scmp.eq.s32.totalorder %s20, 0
      %s23 = sadd.s32 %s22, 1
      %s24 = scalar_select %p21, %s22, %s23
      %p27 = pneg %p21
      %p28 = scmp.eq.s32.totalorder %s12, 1
      %p29 = por %p27, %p28
      %p30 = scmp.ne.s32.totalorder %s22, %s25
      %p31 = scmp.eq.s32.totalorder %s12, 0
      %p32 = por %p30, %p31
      %p33 = scmp.ne.s32.totalorder %s22, %s25
      %p34 = scmp.eq.s32.totalorder %s17, 1
      %p35 = por %p33, %p34
      %p36 = scmp.ne.s32.totalorder %s25, %s26
      %p37 = scmp.eq.s32.totalorder %s17, 0
      %p38 = por %p36, %p37
      %p39 = scmp.ne.s32.totalorder %s25, %s26
      %p40 = scmp.eq.s32.totalorder %s18, 1
      %p41 = por %p39, %p40
      %p43 = scmp.ne.s32.totalorder %s26, %s42
      %p44 = scmp.eq.s32.totalorder %s18, 0
      %p45 = por %p43, %p44
      %s47 = sadd.s32 %s46, 1
      %p50 = scmp.eq.s32.totalorder %s12, 1
      %p51 = scmp.ne.s32.totalorder %s46, %s48
      %p52 = scmp.eq.s32.totalorder %s12, 0
      %p53 = por %p51, %p52
      %p54 = scmp.ne.s32.totalorder %s46, %s48
      %p55 = scmp.eq.s32.totalorder %s17, 1
      %p56 = por %p54, %p55
      %p57 = scmp.ne.s32.totalorder %s48, %s49
      %p58 = scmp.eq.s32.totalorder %s17, 0
      %p59 = por %p57, %p58
      %p60 = scmp.ne.s32.totalorder %s48, %s49
      %p61 = scmp.eq.s32.totalorder %s18, 1
      %p62 = por %p60, %p61
      %p64 = scmp.ne.s32.totalorder %s49, %s63
      %p65 = scmp.eq.s32.totalorder %s18, 0
      %p66 = por %p64, %p65
      %s68 = sadd.s32 %s67, 1
      %p71 = scmp.eq.s32.totalorder %s12, 1
      %p72 = scmp.ne.s32.totalorder %s67, %s69
      %p73 = scmp.eq.s32.totalorder %s12, 0
      %p74 = por %p72, %p73
      %p75 = scmp.ne.s32.totalorder %s67, %s69
      %p76 = scmp.eq.s32.totalorder %s17, 1
      %p77 = por %p75, %p76
      %p78 = scmp.ne.s32.totalorder %s69, %s70
      %p79 = scmp.eq.s32.totalorder %s17, 0
      %p80 = por %p78, %p79
      %p81 = scmp.ne.s32.totalorder %s69, %s70
      %p82 = scmp.eq.s32.totalorder %s18, 1
      %p83 = por %p81, %p82
      %p85 = scmp.ne.s32.totalorder %s70, %s84
      %p86 = scmp.eq.s32.totalorder %s18, 0
      %p87 = por %p85, %p86
      %s88 = ssub.s32 %s12, %s19
      %p89 = scmp.eq.s32.totalorder %s88, 0
      %s91 = sadd.s32 %s90, 1
      %s92 = scalar_select %p89, %s90, %s91
      %p95 = pneg %p89
      %p96 = scmp.eq.s32.totalorder %s12, 1
      %p97 = por %p95, %p96
      %p98 = scmp.ne.s32.totalorder %s90, %s93
      %p99 = scmp.eq.s32.totalorder %s12, 0
      %p100 = por %p98, %p99
      %p101 = scmp.ne.s32.totalorder %s90, %s93
      %p102 = scmp.eq.s32.totalorder %s17, 1
      %p103 = por %p101, %p102
      %p104 = scmp.ne.s32.totalorder %s93, %s94
      %p105 = scmp.eq.s32.totalorder %s17, 0
      %p106 = por %p104, %p105
      %p107 = scmp.ne.s32.totalorder %s93, %s94
      %p108 = scmp.eq.s32.totalorder %s18, 1
      %p109 = por %p107, %p108
      %p111 = scmp.ne.s32.totalorder %s94, %s110
      %p112 = scmp.eq.s32.totalorder %s18, 0
      %p113 = por %p111, %p112
      %p114 = scmp.le.s32.totalorder 1, %s12
      %p115 = scmp.lt.s32.totalorder %s12, 3
      %p116 = pnand %p114, %p115
      %p117 = pneg %p116
      // Predicated region
      $region9: #{tpu_custom_call.1} parent=5 // pred_check
        _
      $region10: #{tpu_custom_call.1} parent=5 // pred_check_branch
        %119 = sbr.rel (%p116) target = $region12
      $region11: #{tpu_custom_call.1} parent=5 // pred_region
        %s120 = ssub.s32 %s12, 1
        // Predicated region
        $region13: #{tpu_custom_call.1} parent=11 // pred_check
          %p121 = pneg %p59
        $region14: #{tpu_custom_call.1} parent=11 // pred_check_branch
          %123 = sbr.rel (%p121) target = $region16
        $region15: #{tpu_custom_call.1} parent=11 // pred_region
          _
        $region16: #{tpu_custom_call.1} parent=11 // pred_fallthru
          _
        // Predicated region
        $region17: #{tpu_custom_call.1} parent=11 // pred_check
          %p124 = pneg %p80
        $region18: #{tpu_custom_call.1} parent=11 // pred_check_branch
          %126 = sbr.rel (%p124) target = $region20
        $region19: #{tpu_custom_call.1} parent=11 // pred_region
          _
        $region20: #{tpu_custom_call.1} parent=11 // pred_fallthru
          _
      $region12: #{tpu_custom_call.1} parent=5 // pred_fallthru
        _
      %p127 = scmp.lt.s32.totalorder %s12, 2
      // Predicated region
      $region21: #{tpu_custom_call.1} parent=5 // pred_check
        %p128 = pneg %p127
      $region22: #{tpu_custom_call.1} parent=5 // pred_check_branch
        %130 = sbr.rel (%p128) target = $region24
      $region23: #{tpu_custom_call.1} parent=5 // pred_region
        // Predicated region
        $region25: #{tpu_custom_call.1} parent=23 // pred_check
          %p131 = pneg %p32
        $region26: #{tpu_custom_call.1} parent=23 // pred_check_branch
          %133 = sbr.rel (%p131) target = $region28
        $region27: #{tpu_custom_call.1} parent=23 // pred_region
          %p134 = scmp.lt.s32.totalorder %s12, 1
          %s135 = scalar_select %p134, %s12, 1
          %s136 = smul.addr %s135, 32
          %s137 = smul.addr %s136, 4
          %s138 = scalar_lea.vmem %s0, %s137
        $region28: #{tpu_custom_call.1} parent=23 // pred_fallthru
          _
      $region24: #{tpu_custom_call.1} parent=5 // pred_fallthru
        _
      %p139 = scmp.le.s32.totalorder 1, %s12
      %p140 = scmp.lt.s32.totalorder %s12, 3
      %p141 = pnand %p139, %p140
      %p142 = pneg %p141
      // Predicated region
      $region29: #{tpu_custom_call.1} parent=5 // pred_check
        _
      $region30: #{tpu_custom_call.1} parent=5 // pred_check_branch
        %144 = sbr.rel (%p141) target = $region32
      $region31: #{tpu_custom_call.1} parent=5 // pred_region
        %s145 = ssub.s32 %s12, 1
        %p146 = scmp.lt.s32.totalorder %s17, 1
        %s147 = scalar_select %p146, %s17, 1
        %s148 = smul.addr %s147, 32
        %s149 = smul.addr %s148, 4
        %s150 = scalar_lea.vmem %s0, %s149
        %p151 = pneg %p38
        %p152 = pneg %p35
        %p153 = pneg %p59
        %p154 = pneg %p56
        %p155 = pneg %p80
        %p156 = pneg %p77
        %p157 = pneg %p106
        %p158 = pneg %p103
        %s159 = sand.u32 %s93, 1
        %s160 = scalar_lea.sflag [#allocation5], %s159
        %s161 = sand.u32 %s93, 1
        %s162 = smul.addr %s161, 128
        %s163 = scalar_lea.vmem [#allocation4], %s162
        %p164 = scmp.lt.s32.totalorder %s17, 1
        %s165 = scalar_select %p164, %s17, 1
        %s166 = smul.addr %s165, 32
        %s167 = smul.addr %s166, 4
        %s168 = scalar_lea.vmem %s0, %s167
        %vm170 = vcmask 519168
        %171 = vst.msk [vmem:[#allocation2] sm:$0xf] %vm170, 0
        %172 = vst.msk [vmem:[#allocation2 + $0x4] sm:$0xf] %vm170, 0
        %vm173 = vcmask 516096
        %174 = vst.msk [vmem:[#allocation2 + $0x8] sm:$0x1] %vm173, 0
        %175 = vst.msk [vmem:[#allocation2 + $0xc] sm:$0xf] %vm170, 0
        %176 = vst.msk [vmem:[#allocation2 + $0x10] sm:$0xf] %vm170, 0
        %177 = vst.msk [vmem:[#allocation2 + $0x14] sm:$0x1] %vm173, 0
        %178 = vst.msk [vmem:[#allocation2 + $0x18] sm:$0xf] %vm170, 0
        %179 = vst.msk [vmem:[#allocation2 + $0x1c] sm:$0xf] %vm170, 0
        %180 = vst.msk [vmem:[#allocation2 + $0x20] sm:$0x1] %vm173, 0
        %181 = vst.msk [vmem:[#allocation2 + $0x24] sm:$0xf] %vm170, 0
        %182 = vst.msk [vmem:[#allocation2 + $0x28] sm:$0xf] %vm170, 0
        %183 = vst.msk [vmem:[#allocation2 + $0x2c] sm:$0x1] %vm173, 0
        %184 = vst.msk [vmem:[#allocation2 + $0x30] sm:$0xf] %vm170, 0
        %185 = vst.msk [vmem:[#allocation2 + $0x34] sm:$0xf] %vm170, 0
        %186 = vst.msk [vmem:[#allocation2 + $0x38] sm:$0x1] %vm173, 0
        %187 = vst.msk [vmem:[#allocation2 + $0x3c] sm:$0xf] %vm170, 0
        %188 = vst.msk [vmem:[#allocation2 + $0x40] sm:$0xf] %vm170, 0
        %189 = vst.msk [vmem:[#allocation2 + $0x44] sm:$0x1] %vm173, 0
        %190 = vst.msk [vmem:[#allocation2 + $0x48] sm:$0xf] %vm170, 0
        %191 = vst.msk [vmem:[#allocation2 + $0x4c] sm:$0xf] %vm170, 0
        %192 = vst.msk [vmem:[#allocation2 + $0x50] sm:$0x1] %vm173, 0
        %193 = vst.msk [vmem:[#allocation2 + $0x54] sm:$0xf] %vm170, 0
        %194 = vst.msk [vmem:[#allocation2 + $0x58] sm:$0xf] %vm170, 0
        %195 = vst.msk [vmem:[#allocation2 + $0x5c] sm:$0x1] %vm173, 0
        %196 = vst.msk [vmem:[#allocation2 + $0x60] sm:$0xf] %vm170, 0
        %197 = vst.msk [vmem:[#allocation2 + $0x64] sm:$0xf] %vm170, 0
        %198 = vst.msk [vmem:[#allocation2 + $0x68] sm:$0x1] %vm173, 0
        %199 = vst.msk [vmem:[#allocation2 + $0x6c] sm:$0xf] %vm170, 0
        %200 = vst.msk [vmem:[#allocation2 + $0x70] sm:$0xf] %vm170, 0
        %201 = vst.msk [vmem:[#allocation2 + $0x74] sm:$0x1] %vm173, 0
        %202 = vst.msk [vmem:[#allocation2 + $0x78] sm:$0xf] %vm170, 0
        %203 = vst.msk [vmem:[#allocation2 + $0x7c] sm:$0xf] %vm170, 0
        %204 = vst.msk [vmem:[#allocation2 + $0x80] sm:$0x1] %vm173, 0
        %205 = vst.msk [vmem:[#allocation2 + $0x84] sm:$0xf] %vm170, 0
        %206 = vst.msk [vmem:[#allocation2 + $0x88] sm:$0xf] %vm170, 0
        %207 = vst.msk [vmem:[#allocation2 + $0x8c] sm:$0x1] %vm173, 0
        %208 = vst.msk [vmem:[#allocation2 + $0x90] sm:$0xf] %vm170, 0
        %209 = vst.msk [vmem:[#allocation2 + $0x94] sm:$0xf] %vm170, 0
        %210 = vst.msk [vmem:[#allocation2 + $0x98] sm:$0x1] %vm173, 0
        %211 = vst.msk [vmem:[#allocation2 + $0x9c] sm:$0xf] %vm170, 0
        %212 = vst.msk [vmem:[#allocation2 + $0xa0] sm:$0xf] %vm170, 0
        %213 = vst.msk [vmem:[#allocation2 + $0xa4] sm:$0x1] %vm173, 0
        %214 = vst.msk [vmem:[#allocation2 + $0xa8] sm:$0xf] %vm170, 0
        %215 = vst.msk [vmem:[#allocation2 + $0xac] sm:$0xf] %vm170, 0
        %216 = vst.msk [vmem:[#allocation2 + $0xb0] sm:$0x1] %vm173, 0
        %217 = vst.msk [vmem:[#allocation2 + $0xb4] sm:$0xf] %vm170, 0
        %218 = vst.msk [vmem:[#allocation2 + $0xb8] sm:$0xf] %vm170, 0
        %219 = vst.msk [vmem:[#allocation2 + $0xbc] sm:$0x1] %vm173, 0
        %220 = vst.msk [vmem:[#allocation2 + $0xc0] sm:$0xf] %vm170, 0
        %221 = vst.msk [vmem:[#allocation2 + $0xc4] sm:$0xf] %vm170, 0
        %222 = vst.msk [vmem:[#allocation2 + $0xc8] sm:$0x1] %vm173, 0
        %223 = vst.msk [vmem:[#allocation2 + $0xcc] sm:$0xf] %vm170, 0
        %224 = vst.msk [vmem:[#allocation2 + $0xd0] sm:$0xf] %vm170, 0
        %225 = vst.msk [vmem:[#allocation2 + $0xd4] sm:$0x1] %vm173, 0
        %v226 = vld [vmem:[%s168] sm:$0xf]
        %v227 = vld [vmem:[%s168 + $0x4] sm:$0xf]
        %v228 = vld [vmem:[%s168 + $0x8] sm:$0xf]
        %v229 = vld [vmem:[%s168 + $0xc] sm:$0xf]
        %v230 = vld [vmem:[%s168 + $0x10] sm:$0xf]
        %v231 = vld [vmem:[%s168 + $0x14] sm:$0xf]
        %v232 = vld [vmem:[%s168 + $0x18] sm:$0xf]
        %v233 = vld [vmem:[%s168 + $0x1c] sm:$0xf]
        %v234 = vld [vmem:[%s168 + $0x20] sm:$0xf]
        %v235 = vld [vmem:[%s168 + $0x24] sm:$0xf]
        %v236 = vld [vmem:[%s168 + $0x28] sm:$0xf]
        %v237 = vld [vmem:[%s168 + $0x2c] sm:$0xf]
        %v238 = vld [vmem:[%s168 + $0x30] sm:$0xf]
        %v239 = vld [vmem:[%s168 + $0x34] sm:$0xf]
        %v240 = vld [vmem:[%s168 + $0x38] sm:$0xf]
        %v241 = vld [vmem:[%s168 + $0x3c] sm:$0xf]
        %v242 = vld [vmem:[%s168 + $0x40] sm:$0xf]
        %v243 = vld [vmem:[%s168 + $0x44] sm:$0xf]
        %v244 = vld [vmem:[%s168 + $0x48] sm:$0xf]
        %v245 = vld [vmem:[%s168 + $0x4c] sm:$0xf]
        %v246 = vld [vmem:[%s168 + $0x50] sm:$0xf]
        %v247 = vld [vmem:[%s168 + $0x54] sm:$0xf]
        %v248 = vld [vmem:[%s168 + $0x58] sm:$0xf]
        %v249 = vld [vmem:[%s168 + $0x5c] sm:$0xf]
        %v250 = vld [vmem:[%s168 + $0x60] sm:$0xf]
        %v251 = vld [vmem:[%s168 + $0x64] sm:$0xf]
        %v252 = vld [vmem:[%s168 + $0x68] sm:$0xf]
        %v253 = vld [vmem:[%s168 + $0x6c] sm:$0xf]
        %v254 = vld [vmem:[%s168 + $0x70] sm:$0xf]
        %v255 = vld [vmem:[%s168 + $0x74] sm:$0xf]
        %v256 = vld [vmem:[%s168 + $0x78] sm:$0xf]
        %v257 = vld [vmem:[%s168 + $0x7c] sm:$0xf]
        %vm258 = vsmask.f32 256
        %vm259 = vsmask.f32 4368
        %vm260 = vmor %vm258, %vm259
        %v262 = vshrl.u32 %v226, 16
        %v264 = vrot.slane %v262, 7
        %v265 = vshll.u32 %v226, 16
        %v267 = vor.u32 %v264, %v265
        %v268 = vrot.slane %v264, 4
        %v270 = vshrl.u32 %v227, 16
        %v272 = vrot.slane %v270, 7
        %v273 = vshll.u32 %v227, 16
        %v275 = vor.u32 %v272, %v273
        %v276 = vsel %vm260, %v268, %v275
        %v277 = vrot.slane %v272, 4
        %v279 = vshrl.u32 %v228, 16
        %v281 = vrot.slane %v279, 7
        %v282 = vshll.u32 %v228, 16
        %v284 = vor.u32 %v281, %v282
        %v285 = vrot.slane %v281, 4
        %v287 = vshrl.u32 %v229, 16
        %v289 = vrot.slane %v287, 7
        %v290 = vshll.u32 %v229, 16
        %v292 = vor.u32 %v289, %v290
        %v293 = vsel %vm260, %v285, %v292
        %v294 = vrot.slane %v289, 4
        %v296 = vshrl.u32 %v230, 16
        %v298 = vrot.slane %v296, 7
        %v299 = vshll.u32 %v230, 16
        %v301 = vor.u32 %v298, %v299
        %v302 = vrot.slane %v298, 4
        %v304 = vshrl.u32 %v231, 16
        %v306 = vrot.slane %v304, 7
        %v307 = vshll.u32 %v231, 16
        %v309 = vor.u32 %v306, %v307
        %v310 = vsel %vm260, %v302, %v309
        %v311 = vrot.slane %v306, 4
        %v313 = vshrl.u32 %v232, 16
        %v315 = vrot.slane %v313, 7
        %v316 = vshll.u32 %v232, 16
        %v318 = vor.u32 %v315, %v316
        %v319 = vrot.slane %v315, 4
        %v321 = vshrl.u32 %v233, 16
        %v323 = vrot.slane %v321, 7
        %v324 = vshll.u32 %v233, 16
        %v326 = vor.u32 %v323, %v324
        %v327 = vsel %vm260, %v319, %v326
        %v328 = vrot.slane %v323, 4
        %v330 = vshrl.u32 %v234, 16
        %v332 = vrot.slane %v330, 7
        %v333 = vshll.u32 %v234, 16
        %v335 = vor.u32 %v332, %v333
        %v336 = vrot.slane %v332, 4
        %v338 = vshrl.u32 %v235, 16
        %v340 = vrot.slane %v338, 7
        %v341 = vshll.u32 %v235, 16
        %v343 = vor.u32 %v340, %v341
        %v344 = vsel %vm260, %v336, %v343
        %v345 = vrot.slane %v340, 4
        %v347 = vshrl.u32 %v236, 16
        %v349 = vrot.slane %v347, 7
        %v350 = vshll.u32 %v236, 16
        %v352 = vor.u32 %v349, %v350
        %v353 = vrot.slane %v349, 4
        %v355 = vshrl.u32 %v237, 16
        %v357 = vrot.slane %v355, 7
        %v358 = vshll.u32 %v237, 16
        %v360 = vor.u32 %v357, %v358
        %v361 = vsel %vm260, %v353, %v360
        %v362 = vrot.slane %v357, 4
        %v364 = vshrl.u32 %v238, 16
        %v366 = vrot.slane %v364, 7
        %v367 = vshll.u32 %v238, 16
        %v369 = vor.u32 %v366, %v367
        %v370 = vrot.slane %v366, 4
        %v372 = vshrl.u32 %v239, 16
        %v374 = vrot.slane %v372, 7
        %v375 = vshll.u32 %v239, 16
        %v377 = vor.u32 %v374, %v375
        %v378 = vsel %vm260, %v370, %v377
        %v379 = vrot.slane %v374, 4
        %v381 = vshrl.u32 %v240, 16
        %v383 = vrot.slane %v381, 7
        %v384 = vshll.u32 %v240, 16
        %v386 = vor.u32 %v383, %v384
        %v387 = vrot.slane %v383, 4
        %v389 = vshrl.u32 %v241, 16
        %v391 = vrot.slane %v389, 7
        %v392 = vshll.u32 %v241, 16
        %v394 = vor.u32 %v391, %v392
        %v395 = vsel %vm260, %v387, %v394
        %v396 = vrot.slane %v391, 4
        %v398 = vshrl.u32 %v242, 16
        %v400 = vrot.slane %v398, 7
        %v401 = vshll.u32 %v242, 16
        %v403 = vor.u32 %v400, %v401
        %v404 = vrot.slane %v400, 4
        %v406 = vshrl.u32 %v243, 16
        %v408 = vrot.slane %v406, 7
        %v409 = vshll.u32 %v243, 16
        %v411 = vor.u32 %v408, %v409
        %v412 = vsel %vm260, %v404, %v411
        %v413 = vrot.slane %v408, 4
        %v415 = vshrl.u32 %v244, 16
        %v417 = vrot.slane %v415, 7
        %v418 = vshll.u32 %v244, 16
        %v420 = vor.u32 %v417, %v418
        %v421 = vrot.slane %v417, 4
        %v423 = vshrl.u32 %v245, 16
        %v425 = vrot.slane %v423, 7
        %v426 = vshll.u32 %v245, 16
        %v428 = vor.u32 %v425, %v426
        %v429 = vsel %vm260, %v421, %v428
        %v430 = vrot.slane %v425, 4
        %v432 = vshrl.u32 %v246, 16
        %v434 = vrot.slane %v432, 7
        %v435 = vshll.u32 %v246, 16
        %v437 = vor.u32 %v434, %v435
        %v438 = vrot.slane %v434, 4
        %v440 = vshrl.u32 %v247, 16
        %v442 = vrot.slane %v440, 7
        %v443 = vshll.u32 %v247, 16
        %v445 = vor.u32 %v442, %v443
        %v446 = vsel %vm260, %v438, %v445
        %v447 = vrot.slane %v442, 4
        %v449 = vshrl.u32 %v248, 16
        %v451 = vrot.slane %v449, 7
        %v452 = vshll.u32 %v248, 16
        %v454 = vor.u32 %v451, %v452
        %v455 = vrot.slane %v451, 4
        %v457 = vshrl.u32 %v249, 16
        %v459 = vrot.slane %v457, 7
        %v460 = vshll.u32 %v249, 16
        %v462 = vor.u32 %v459, %v460
        %v463 = vsel %vm260, %v455, %v462
        %v464 = vrot.slane %v459, 4
        %v466 = vshrl.u32 %v250, 16
        %v468 = vrot.slane %v466, 7
        %v469 = vshll.u32 %v250, 16
        %v471 = vor.u32 %v468, %v469
        %v472 = vrot.slane %v468, 4
        %v474 = vshrl.u32 %v251, 16
        %v476 = vrot.slane %v474, 7
        %v477 = vshll.u32 %v251, 16
        %v479 = vor.u32 %v476, %v477
        %v480 = vsel %vm260, %v472, %v479
        %v481 = vrot.slane %v476, 4
        %v483 = vshrl.u32 %v252, 16
        %v485 = vrot.slane %v483, 7
        %v486 = vshll.u32 %v252, 16
        %v488 = vor.u32 %v485, %v486
        %v489 = vrot.slane %v485, 4
        %v491 = vshrl.u32 %v253, 16
        %v493 = vrot.slane %v491, 7
        %v494 = vshll.u32 %v253, 16
        %v496 = vor.u32 %v493, %v494
        %v497 = vsel %vm260, %v489, %v496
        %v498 = vrot.slane %v493, 4
        %v500 = vshrl.u32 %v254, 16
        %v502 = vrot.slane %v500, 7
        %v503 = vshll.u32 %v254, 16
        %v505 = vor.u32 %v502, %v503
        %v506 = vrot.slane %v502, 4
        %v508 = vshrl.u32 %v255, 16
        %v510 = vrot.slane %v508, 7
        %v511 = vshll.u32 %v255, 16
        %v513 = vor.u32 %v510, %v511
        %v514 = vsel %vm260, %v506, %v513
        %v515 = vrot.slane %v510, 4
        %v517 = vshrl.u32 %v256, 16
        %v519 = vrot.slane %v517, 7
        %v520 = vshll.u32 %v256, 16
        %v522 = vor.u32 %v519, %v520
        %v523 = vrot.slane %v519, 4
        %v525 = vshrl.u32 %v257, 16
        %v527 = vrot.slane %v525, 7
        %v528 = vshll.u32 %v257, 16
        %v530 = vor.u32 %v527, %v528
        %v531 = vsel %vm260, %v523, %v530
        %v532 = vrot.slane %v527, 4
        %s581 = scalar_lea.vmem [#allocation2], 12
        %vm582 = vcmask 519168
        %vm583 = vsmask.f32 7938
        %vm584 = vmand %vm582, %vm583
        %v585 = vld [vmem:[%s581] sm:$0xf]
        %v586 = vsel %vm584, %v267, %v585
        %587 = vst [vmem:[%s581] sm:$0xf] %v586
        %588 = vst.msk [vmem:[%s581 + $0x4] sm:$0xf] %vm170, %v276
        %vm589 = vcmask 516096
        %vm590 = vmand %vm589, %vm258
        %v591 = vld [vmem:[%s581 + $0x8] sm:$0x1]
        %v592 = vsel %vm590, %v277, %v591
        %593 = vst [vmem:[%s581 + $0x8] sm:$0x1] %v592
        %v594 = vld [vmem:[%s581 + $0xc] sm:$0xf]
        %v595 = vsel %vm584, %v284, %v594
        %596 = vst [vmem:[%s581 + $0xc] sm:$0xf] %v595
        %597 = vst.msk [vmem:[%s581 + $0x10] sm:$0xf] %vm170, %v293
        %v598 = vld [vmem:[%s581 + $0x14] sm:$0x1]
        %v599 = vsel %vm590, %v294, %v598
        %600 = vst [vmem:[%s581 + $0x14] sm:$0x1] %v599
        %v601 = vld [vmem:[%s581 + $0x18] sm:$0xf]
        %v602 = vsel %vm584, %v301, %v601
        %603 = vst [vmem:[%s581 + $0x18] sm:$0xf] %v602
        %604 = vst.msk [vmem:[%s581 + $0x1c] sm:$0xf] %vm170, %v310
        %v605 = vld [vmem:[%s581 + $0x20] sm:$0x1]
        %v606 = vsel %vm590, %v311, %v605
        %607 = vst [vmem:[%s581 + $0x20] sm:$0x1] %v606
        %v608 = vld [vmem:[%s581 + $0x24] sm:$0xf]
        %v609 = vsel %vm584, %v318, %v608
        %610 = vst [vmem:[%s581 + $0x24] sm:$0xf] %v609
        %611 = vst.msk [vmem:[%s581 + $0x28] sm:$0xf] %vm170, %v327
        %v612 = vld [vmem:[%s581 + $0x2c] sm:$0x1]
        %v613 = vsel %vm590, %v328, %v612
        %614 = vst [vmem:[%s581 + $0x2c] sm:$0x1] %v613
        %v615 = vld [vmem:[%s581 + $0x30] sm:$0xf]
        %v616 = vsel %vm584, %v335, %v615
        %617 = vst [vmem:[%s581 + $0x30] sm:$0xf] %v616
        %618 = vst.msk [vmem:[%s581 + $0x34] sm:$0xf] %vm170, %v344
        %v619 = vld [vmem:[%s581 + $0x38] sm:$0x1]
        %v620 = vsel %vm590, %v345, %v619
        %621 = vst [vmem:[%s581 + $0x38] sm:$0x1] %v620
        %v622 = vld [vmem:[%s581 + $0x3c] sm:$0xf]
        %v623 = vsel %vm584, %v352, %v622
        %624 = vst [vmem:[%s581 + $0x3c] sm:$0xf] %v623
        %625 = vst.msk [vmem:[%s581 + $0x40] sm:$0xf] %vm170, %v361
        %v626 = vld [vmem:[%s581 + $0x44] sm:$0x1]
        %v627 = vsel %vm590, %v362, %v626
        %628 = vst [vmem:[%s581 + $0x44] sm:$0x1] %v627
        %v629 = vld [vmem:[%s581 + $0x48] sm:$0xf]
        %v630 = vsel %vm584, %v369, %v629
        %631 = vst [vmem:[%s581 + $0x48] sm:$0xf] %v630
        %632 = vst.msk [vmem:[%s581 + $0x4c] sm:$0xf] %vm170, %v378
        %v633 = vld [vmem:[%s581 + $0x50] sm:$0x1]
        %v634 = vsel %vm590, %v379, %v633
        %635 = vst [vmem:[%s581 + $0x50] sm:$0x1] %v634
        %v636 = vld [vmem:[%s581 + $0x54] sm:$0xf]
        %v637 = vsel %vm584, %v386, %v636
        %638 = vst [vmem:[%s581 + $0x54] sm:$0xf] %v637
        %639 = vst.msk [vmem:[%s581 + $0x58] sm:$0xf] %vm170, %v395
        %v640 = vld [vmem:[%s581 + $0x5c] sm:$0x1]
        %v641 = vsel %vm590, %v396, %v640
        %642 = vst [vmem:[%s581 + $0x5c] sm:$0x1] %v641
        %v643 = vld [vmem:[%s581 + $0x60] sm:$0xf]
        %v644 = vsel %vm584, %v403, %v643
        %645 = vst [vmem:[%s581 + $0x60] sm:$0xf] %v644
        %646 = vst.msk [vmem:[%s581 + $0x64] sm:$0xf] %vm170, %v412
        %v647 = vld [vmem:[%s581 + $0x68] sm:$0x1]
        %v648 = vsel %vm590, %v413, %v647
        %649 = vst [vmem:[%s581 + $0x68] sm:$0x1] %v648
        %v650 = vld [vmem:[%s581 + $0x6c] sm:$0xf]
        %v651 = vsel %vm584, %v420, %v650
        %652 = vst [vmem:[%s581 + $0x6c] sm:$0xf] %v651
        %653 = vst.msk [vmem:[%s581 + $0x70] sm:$0xf] %vm170, %v429
        %v654 = vld [vmem:[%s581 + $0x74] sm:$0x1]
        %v655 = vsel %vm590, %v430, %v654
        %656 = vst [vmem:[%s581 + $0x74] sm:$0x1] %v655
        %v657 = vld [vmem:[%s581 + $0x78] sm:$0xf]
        %v658 = vsel %vm584, %v437, %v657
        %659 = vst [vmem:[%s581 + $0x78] sm:$0xf] %v658
        %660 = vst.msk [vmem:[%s581 + $0x7c] sm:$0xf] %vm170, %v446
        %v661 = vld [vmem:[%s581 + $0x80] sm:$0x1]
        %v662 = vsel %vm590, %v447, %v661
        %663 = vst [vmem:[%s581 + $0x80] sm:$0x1] %v662
        %v664 = vld [vmem:[%s581 + $0x84] sm:$0xf]
        %v665 = vsel %vm584, %v454, %v664
        %666 = vst [vmem:[%s581 + $0x84] sm:$0xf] %v665
        %667 = vst.msk [vmem:[%s581 + $0x88] sm:$0xf] %vm170, %v463
        %v668 = vld [vmem:[%s581 + $0x8c] sm:$0x1]
        %v669 = vsel %vm590, %v464, %v668
        %670 = vst [vmem:[%s581 + $0x8c] sm:$0x1] %v669
        %v671 = vld [vmem:[%s581 + $0x90] sm:$0xf]
        %v672 = vsel %vm584, %v471, %v671
        %673 = vst [vmem:[%s581 + $0x90] sm:$0xf] %v672
        %674 = vst.msk [vmem:[%s581 + $0x94] sm:$0xf] %vm170, %v480
        %v675 = vld [vmem:[%s581 + $0x98] sm:$0x1]
        %v676 = vsel %vm590, %v481, %v675
        %677 = vst [vmem:[%s581 + $0x98] sm:$0x1] %v676
        %v678 = vld [vmem:[%s581 + $0x9c] sm:$0xf]
        %v679 = vsel %vm584, %v488, %v678
        %680 = vst [vmem:[%s581 + $0x9c] sm:$0xf] %v679
        %681 = vst.msk [vmem:[%s581 + $0xa0] sm:$0xf] %vm170, %v497
        %v682 = vld [vmem:[%s581 + $0xa4] sm:$0x1]
        %v683 = vsel %vm590, %v498, %v682
        %684 = vst [vmem:[%s581 + $0xa4] sm:$0x1] %v683
        %v685 = vld [vmem:[%s581 + $0xa8] sm:$0xf]
        %v686 = vsel %vm584, %v505, %v685
        %687 = vst [vmem:[%s581 + $0xa8] sm:$0xf] %v686
        %688 = vst.msk [vmem:[%s581 + $0xac] sm:$0xf] %vm170, %v514
        %v689 = vld [vmem:[%s581 + $0xb0] sm:$0x1]
        %v690 = vsel %vm590, %v515, %v689
        %691 = vst [vmem:[%s581 + $0xb0] sm:$0x1] %v690
        %v692 = vld [vmem:[%s581 + $0xb4] sm:$0xf]
        %v693 = vsel %vm584, %v522, %v692
        %694 = vst [vmem:[%s581 + $0xb4] sm:$0xf] %v693
        %695 = vst.msk [vmem:[%s581 + $0xb8] sm:$0xf] %vm170, %v531
        %v696 = vld [vmem:[%s581 + $0xbc] sm:$0x1]
        %v697 = vsel %vm590, %v532, %v696
        %698 = vst [vmem:[%s581 + $0xbc] sm:$0x1] %v697
        %v699 = vld [vmem:[#allocation2] sm:$0xf]
        %v700 = vld [vmem:[#allocation2 + $0x4] sm:$0xf]
        %v701 = vld [vmem:[#allocation2 + $0xc] sm:$0xf]
        %v702 = vld [vmem:[#allocation2 + $0x10] sm:$0xf]
        %v703 = vld [vmem:[#allocation2 + $0x18] sm:$0xf]
        %v704 = vld [vmem:[#allocation2 + $0x1c] sm:$0xf]
        %v705 = vld [vmem:[#allocation2 + $0x24] sm:$0xf]
        %v706 = vld [vmem:[#allocation2 + $0x28] sm:$0xf]
        %v707 = vld [vmem:[#allocation2 + $0x30] sm:$0xf]
        %v708 = vld [vmem:[#allocation2 + $0x34] sm:$0xf]
        %v709 = vld [vmem:[#allocation2 + $0x3c] sm:$0xf]
        %v710 = vld [vmem:[#allocation2 + $0x40] sm:$0xf]
        %v711 = vld [vmem:[#allocation2 + $0x48] sm:$0xf]
        %v712 = vld [vmem:[#allocation2 + $0x4c] sm:$0xf]
        %v713 = vld [vmem:[#allocation2 + $0x54] sm:$0xf]
        %v714 = vld [vmem:[#allocation2 + $0x58] sm:$0xf]
        %v715 = vld [vmem:[#allocation2 + $0x60] sm:$0xf]
        %v716 = vld [vmem:[#allocation2 + $0x64] sm:$0xf]
        %v717 = vld [vmem:[#allocation2 + $0x6c] sm:$0xf]
        %v718 = vld [vmem:[#allocation2 + $0x70] sm:$0xf]
        %v719 = vld [vmem:[#allocation2 + $0x78] sm:$0xf]
        %v720 = vld [vmem:[#allocation2 + $0x7c] sm:$0xf]
        %v721 = vld [vmem:[#allocation2 + $0x84] sm:$0xf]
        %v722 = vld [vmem:[#allocation2 + $0x88] sm:$0xf]
        %v723 = vld [vmem:[#allocation2 + $0x90] sm:$0xf]
        %v724 = vld [vmem:[#allocation2 + $0x94] sm:$0xf]
        %v725 = vld [vmem:[#allocation2 + $0x9c] sm:$0xf]
        %v726 = vld [vmem:[#allocation2 + $0xa0] sm:$0xf]
        %v727 = vld [vmem:[#allocation2 + $0xa8] sm:$0xf]
        %v728 = vld [vmem:[#allocation2 + $0xac] sm:$0xf]
        %v729 = vld [vmem:[#allocation2 + $0xb4] sm:$0xf]
        %v730 = vld [vmem:[#allocation2 + $0xb8] sm:$0xf]
        %v763 = vunpack.c.l.b16 %v699
        %v764 = vunpack.c.l.b16 %v700
        %v765 = vunpack.c.l.b16 %v701
        %v766 = vunpack.c.l.b16 %v702
        %v767 = vunpack.c.l.b16 %v703
        %v768 = vunpack.c.l.b16 %v704
        %v769 = vunpack.c.l.b16 %v705
        %v770 = vunpack.c.l.b16 %v706
        %v771 = vunpack.c.l.b16 %v707
        %v772 = vunpack.c.l.b16 %v708
        %v773 = vunpack.c.l.b16 %v709
        %v774 = vunpack.c.l.b16 %v710
        %v775 = vunpack.c.l.b16 %v711
        %v776 = vunpack.c.l.b16 %v712
        %v777 = vunpack.c.l.b16 %v713
        %v778 = vunpack.c.l.b16 %v714
        %v779 = vunpack.c.l.b16 %v715
        %v780 = vunpack.c.l.b16 %v716
        %v781 = vunpack.c.l.b16 %v717
        %v782 = vunpack.c.l.b16 %v718
        %v783 = vunpack.c.l.b16 %v719
        %v784 = vunpack.c.l.b16 %v720
        %v785 = vunpack.c.l.b16 %v721
        %v786 = vunpack.c.l.b16 %v722
        %v787 = vunpack.c.l.b16 %v723
        %v788 = vunpack.c.l.b16 %v724
        %v789 = vunpack.c.l.b16 %v725
        %v790 = vunpack.c.l.b16 %v726
        %v791 = vunpack.c.l.b16 %v727
        %v792 = vunpack.c.l.b16 %v728
        %v793 = vunpack.c.l.b16 %v729
        %v794 = vunpack.c.l.b16 %v730
        %v795 = vpack.c.b16 %v764, %v763
        %v796 = vpack.c.b16 %v766, %v765
        %v797 = vpack.c.b16 %v768, %v767
        %v798 = vpack.c.b16 %v770, %v769
        %v799 = vpack.c.b16 %v772, %v771
        %v800 = vpack.c.b16 %v774, %v773
        %v801 = vpack.c.b16 %v776, %v775
        %v802 = vpack.c.b16 %v778, %v777
        %v803 = vpack.c.b16 %v780, %v779
        %v804 = vpack.c.b16 %v782, %v781
        %v805 = vpack.c.b16 %v784, %v783
        %v806 = vpack.c.b16 %v786, %v785
        %v807 = vpack.c.b16 %v788, %v787
        %v808 = vpack.c.b16 %v790, %v789
        %v809 = vpack.c.b16 %v792, %v791
        %v810 = vpack.c.b16 %v794, %v793
        %vm827 = vcmask 523264
        %828 = vst.msk [vmem:[#allocation3] sm:$0xff] %vm827, %v795
        %829 = vst.msk [vmem:[#allocation3 + $0x28] sm:$0xff] %vm827, %v796
        %830 = vst.msk [vmem:[#allocation3 + $0x50] sm:$0xff] %vm827, %v797
        %831 = vst.msk [vmem:[#allocation3 + $0x78] sm:$0xff] %vm827, %v798
        %832 = vst.msk [vmem:[#allocation3 + $0xa0] sm:$0xff] %vm827, %v799
        %833 = vst.msk [vmem:[#allocation3 + $0xc8] sm:$0xff] %vm827, %v800
        %834 = vst.msk [vmem:[#allocation3 + $0xf0] sm:$0xff] %vm827, %v801
        %835 = vst.msk [vmem:[#allocation3 + $0x118] sm:$0xff] %vm827, %v802
        %836 = vst.msk [vmem:[#allocation3 + $0x140] sm:$0xff] %vm827, %v803
        %837 = vst.msk [vmem:[#allocation3 + $0x168] sm:$0xff] %vm827, %v804
        %838 = vst.msk [vmem:[#allocation3 + $0x190] sm:$0xff] %vm827, %v805
        %839 = vst.msk [vmem:[#allocation3 + $0x1b8] sm:$0xff] %vm827, %v806
        %840 = vst.msk [vmem:[#allocation3 + $0x1e0] sm:$0xff] %vm827, %v807
        %841 = vst.msk [vmem:[#allocation3 + $0x208] sm:$0xff] %vm827, %v808
        %842 = vst.msk [vmem:[#allocation3 + $0x230] sm:$0xff] %vm827, %v809
        %843 = vst.msk [vmem:[#allocation3 + $0x258] sm:$0xff] %vm827, %v810
        %v844 = vld [vmem:[#allocation2] sm:$0xf]
        %v845 = vld [vmem:[#allocation2 + $0x4] sm:$0xf]
        %v846 = vld [vmem:[#allocation2 + $0x8] sm:$0x1]
        %v847 = vld [vmem:[#allocation2 + $0xc] sm:$0xf]
        %v848 = vld [vmem:[#allocation2 + $0x10] sm:$0xf]
        %v849 = vld [vmem:[#allocation2 + $0x14] sm:$0x1]
        %v850 = vld [vmem:[#allocation2 + $0x18] sm:$0xf]
        %v851 = vld [vmem:[#allocation2 + $0x1c] sm:$0xf]
        %v852 = vld [vmem:[#allocation2 + $0x20] sm:$0x1]
        %v853 = vld [vmem:[#allocation2 + $0x24] sm:$0xf]
        %v854 = vld [vmem:[#allocation2 + $0x28] sm:$0xf]
        %v855 = vld [vmem:[#allocation2 + $0x2c] sm:$0x1]
        %v856 = vld [vmem:[#allocation2 + $0x30] sm:$0xf]
        %v857 = vld [vmem:[#allocation2 + $0x34] sm:$0xf]
        %v858 = vld [vmem:[#allocation2 + $0x38] sm:$0x1]
        %v859 = vld [vmem:[#allocation2 + $0x3c] sm:$0xf]
        %v860 = vld [vmem:[#allocation2 + $0x40] sm:$0xf]
        %v861 = vld [vmem:[#allocation2 + $0x44] sm:$0x1]
        %v862 = vld [vmem:[#allocation2 + $0x48] sm:$0xf]
        %v863 = vld [vmem:[#allocation2 + $0x4c] sm:$0xf]
        %v864 = vld [vmem:[#allocation2 + $0x50] sm:$0x1]
        %v865 = vld [vmem:[#allocation2 + $0x54] sm:$0xf]
        %v866 = vld [vmem:[#allocation2 + $0x58] sm:$0xf]
        %v867 = vld [vmem:[#allocation2 + $0x5c] sm:$0x1]
        %v868 = vld [vmem:[#allocation2 + $0x60] sm:$0xf]
        %v869 = vld [vmem:[#allocation2 + $0x64] sm:$0xf]
        %v870 = vld [vmem:[#allocation2 + $0x68] sm:$0x1]
        %v871 = vld [vmem:[#allocation2 + $0x6c] sm:$0xf]
        %v872 = vld [vmem:[#allocation2 + $0x70] sm:$0xf]
        %v873 = vld [vmem:[#allocation2 + $0x74] sm:$0x1]
        %v874 = vld [vmem:[#allocation2 + $0x78] sm:$0xf]
        %v875 = vld [vmem:[#allocation2 + $0x7c] sm:$0xf]
        %v876 = vld [vmem:[#allocation2 + $0x80] sm:$0x1]
        %v877 = vld [vmem:[#allocation2 + $0x84] sm:$0xf]
        %v878 = vld [vmem:[#allocation2 + $0x88] sm:$0xf]
        %v879 = vld [vmem:[#allocation2 + $0x8c] sm:$0x1]
        %v880 = vld [vmem:[#allocation2 + $0x90] sm:$0xf]
        %v881 = vld [vmem:[#allocation2 + $0x94] sm:$0xf]
        %v882 = vld [vmem:[#allocation2 + $0x98] sm:$0x1]
        %v883 = vld [vmem:[#allocation2 + $0x9c] sm:$0xf]
        %v884 = vld [vmem:[#allocation2 + $0xa0] sm:$0xf]
        %v885 = vld [vmem:[#allocation2 + $0xa4] sm:$0x1]
        %v886 = vld [vmem:[#allocation2 + $0xa8] sm:$0xf]
        %v887 = vld [vmem:[#allocation2 + $0xac] sm:$0xf]
        %v888 = vld [vmem:[#allocation2 + $0xb0] sm:$0x1]
        %v889 = vld [vmem:[#allocation2 + $0xb4] sm:$0xf]
        %v890 = vld [vmem:[#allocation2 + $0xb8] sm:$0xf]
        %v891 = vld [vmem:[#allocation2 + $0xbc] sm:$0x1]
        %vm892 = vsmask.f32 3328
        %vm893 = vsmask.f32 7440
        %vm894 = vmor %vm892, %vm893
        %v896 = vshrl.u32 %v844, 16
        %v898 = vrot.slane %v896, 4
        %v899 = vshll.u32 %v844, 16
        %v901 = vrot.slane %v899, 5
        %v902 = vor.u32 %v898, %v901
        %v903 = vrot.slane %v902, 4
        %v905 = vshll.u32 %v845, 16
        %v907 = vrot.slane %v905, 5
        %v908 = vsel %vm894, %v903, %v907
        %v909 = vshrl.u32 %v845, 16
        %v911 = vrot.slane %v909, 4
        %v912 = vor.u32 %v911, %v907
        %v913 = vrot.slane %v912, 4
        %v915 = vshll.u32 %v846, 16
        %v917 = vrot.slane %v915, 5
        %v918 = vsel %vm894, %v913, %v917
        %v920 = vshrl.u32 %v847, 16
        %v922 = vrot.slane %v920, 4
        %v923 = vshll.u32 %v847, 16
        %v925 = vrot.slane %v923, 5
        %v926 = vor.u32 %v922, %v925
        %v927 = vrot.slane %v926, 4
        %v929 = vshll.u32 %v848, 16
        %v931 = vrot.slane %v929, 5
        %v932 = vsel %vm894, %v927, %v931
        %v933 = vshrl.u32 %v848, 16
        %v935 = vrot.slane %v933, 4
        %v936 = vor.u32 %v935, %v931
        %v937 = vrot.slane %v936, 4
        %v939 = vshll.u32 %v849, 16
        %v941 = vrot.slane %v939, 5
        %v942 = vsel %vm894, %v937, %v941
        %v944 = vshrl.u32 %v850, 16
        %v946 = vrot.slane %v944, 4
        %v947 = vshll.u32 %v850, 16
        %v949 = vrot.slane %v947, 5
        %v950 = vor.u32 %v946, %v949
        %v951 = vrot.slane %v950, 4
        %v953 = vshll.u32 %v851, 16
        %v955 = vrot.slane %v953, 5
        %v956 = vsel %vm894, %v951, %v955
        %v957 = vshrl.u32 %v851, 16
        %v959 = vrot.slane %v957, 4
        %v960 = vor.u32 %v959, %v955
        %v961 = vrot.slane %v960, 4
        %v963 = vshll.u32 %v852, 16
        %v965 = vrot.slane %v963, 5
        %v966 = vsel %vm894, %v961, %v965
        %v968 = vshrl.u32 %v853, 16
        %v970 = vrot.slane %v968, 4
        %v971 = vshll.u32 %v853, 16
        %v973 = vrot.slane %v971, 5
        %v974 = vor.u32 %v970, %v973
        %v975 = vrot.slane %v974, 4
        %v977 = vshll.u32 %v854, 16
        %v979 = vrot.slane %v977, 5
        %v980 = vsel %vm894, %v975, %v979
        %v981 = vshrl.u32 %v854, 16
        %v983 = vrot.slane %v981, 4
        %v984 = vor.u32 %v983, %v979
        %v985 = vrot.slane %v984, 4
        %v987 = vshll.u32 %v855, 16
        %v989 = vrot.slane %v987, 5
        %v990 = vsel %vm894, %v985, %v989
        %v992 = vshrl.u32 %v856, 16
        %v994 = vrot.slane %v992, 4
        %v995 = vshll.u32 %v856, 16
        %v997 = vrot.slane %v995, 5
        %v998 = vor.u32 %v994, %v997
        %v999 = vrot.slane %v998, 4
        %v1001 = vshll.u32 %v857, 16
        %v1003 = vrot.slane %v1001, 5
        %v1004 = vsel %vm894, %v999, %v1003
        %v1005 = vshrl.u32 %v857, 16
        %v1007 = vrot.slane %v1005, 4
        %v1008 = vor.u32 %v1007, %v1003
        %v1009 = vrot.slane %v1008, 4
        %v1011 = vshll.u32 %v858, 16
        %v1013 = vrot.slane %v1011, 5
        %v1014 = vsel %vm894, %v1009, %v1013
        %v1016 = vshrl.u32 %v859, 16
        %v1018 = vrot.slane %v1016, 4
        %v1019 = vshll.u32 %v859, 16
        %v1021 = vrot.slane %v1019, 5
        %v1022 = vor.u32 %v1018, %v1021
        %v1023 = vrot.slane %v1022, 4
        %v1025 = vshll.u32 %v860, 16
        %v1027 = vrot.slane %v1025, 5
        %v1028 = vsel %vm894, %v1023, %v1027
        %v1029 = vshrl.u32 %v860, 16
        %v1031 = vrot.slane %v1029, 4
        %v1032 = vor.u32 %v1031, %v1027
        %v1033 = vrot.slane %v1032, 4
        %v1035 = vshll.u32 %v861, 16
        %v1037 = vrot.slane %v1035, 5
        %v1038 = vsel %vm894, %v1033, %v1037
        %v1040 = vshrl.u32 %v862, 16
        %v1042 = vrot.slane %v1040, 4
        %v1043 = vshll.u32 %v862, 16
        %v1045 = vrot.slane %v1043, 5
        %v1046 = vor.u32 %v1042, %v1045
        %v1047 = vrot.slane %v1046, 4
        %v1049 = vshll.u32 %v863, 16
        %v1051 = vrot.slane %v1049, 5
        %v1052 = vsel %vm894, %v1047, %v1051
        %v1053 = vshrl.u32 %v863, 16
        %v1055 = vrot.slane %v1053, 4
        %v1056 = vor.u32 %v1055, %v1051
        %v1057 = vrot.slane %v1056, 4
        %v1059 = vshll.u32 %v864, 16
        %v1061 = vrot.slane %v1059, 5
        %v1062 = vsel %vm894, %v1057, %v1061
        %v1064 = vshrl.u32 %v865, 16
        %v1066 = vrot.slane %v1064, 4
        %v1067 = vshll.u32 %v865, 16
        %v1069 = vrot.slane %v1067, 5
        %v1070 = vor.u32 %v1066, %v1069
        %v1071 = vrot.slane %v1070, 4
        %v1073 = vshll.u32 %v866, 16
        %v1075 = vrot.slane %v1073, 5
        %v1076 = vsel %vm894, %v1071, %v1075
        %v1077 = vshrl.u32 %v866, 16
        %v1079 = vrot.slane %v1077, 4
        %v1080 = vor.u32 %v1079, %v1075
        %v1081 = vrot.slane %v1080, 4
        %v1083 = vshll.u32 %v867, 16
        %v1085 = vrot.slane %v1083, 5
        %v1086 = vsel %vm894, %v1081, %v1085
        %v1088 = vshrl.u32 %v868, 16
        %v1090 = vrot.slane %v1088, 4
        %v1091 = vshll.u32 %v868, 16
        %v1093 = vrot.slane %v1091, 5
        %v1094 = vor.u32 %v1090, %v1093
        %v1095 = vrot.slane %v1094, 4
        %v1097 = vshll.u32 %v869, 16
        %v1099 = vrot.slane %v1097, 5
        %v1100 = vsel %vm894, %v1095, %v1099
        %v1101 = vshrl.u32 %v869, 16
        %v1103 = vrot.slane %v1101, 4
        %v1104 = vor.u32 %v1103, %v1099
        %v1105 = vrot.slane %v1104, 4
        %v1107 = vshll.u32 %v870, 16
        %v1109 = vrot.slane %v1107, 5
        %v1110 = vsel %vm894, %v1105, %v1109
        %v1112 = vshrl.u32 %v871, 16
        %v1114 = vrot.slane %v1112, 4
        %v1115 = vshll.u32 %v871, 16
        %v1117 = vrot.slane %v1115, 5
        %v1118 = vor.u32 %v1114, %v1117
        %v1119 = vrot.slane %v1118, 4
        %v1121 = vshll.u32 %v872, 16
        %v1123 = vrot.slane %v1121, 5
        %v1124 = vsel %vm894, %v1119, %v1123
        %v1125 = vshrl.u32 %v872, 16
        %v1127 = vrot.slane %v1125, 4
        %v1128 = vor.u32 %v1127, %v1123
        %v1129 = vrot.slane %v1128, 4
        %v1131 = vshll.u32 %v873, 16
        %v1133 = vrot.slane %v1131, 5
        %v1134 = vsel %vm894, %v1129, %v1133
        %v1136 = vshrl.u32 %v874, 16
        %v1138 = vrot.slane %v1136, 4
        %v1139 = vshll.u32 %v874, 16
        %v1141 = vrot.slane %v1139, 5
        %v1142 = vor.u32 %v1138, %v1141
        %v1143 = vrot.slane %v1142, 4
        %v1145 = vshll.u32 %v875, 16
        %v1147 = vrot.slane %v1145, 5
        %v1148 = vsel %vm894, %v1143, %v1147
        %v1149 = vshrl.u32 %v875, 16
        %v1151 = vrot.slane %v1149, 4
        %v1152 = vor.u32 %v1151, %v1147
        %v1153 = vrot.slane %v1152, 4
        %v1155 = vshll.u32 %v876, 16
        %v1157 = vrot.slane %v1155, 5
        %v1158 = vsel %vm894, %v1153, %v1157
        %v1160 = vshrl.u32 %v877, 16
        %v1162 = vrot.slane %v1160, 4
        %v1163 = vshll.u32 %v877, 16
        %v1165 = vrot.slane %v1163, 5
        %v1166 = vor.u32 %v1162, %v1165
        %v1167 = vrot.slane %v1166, 4
        %v1169 = vshll.u32 %v878, 16
        %v1171 = vrot.slane %v1169, 5
        %v1172 = vsel %vm894, %v1167, %v1171
        %v1173 = vshrl.u32 %v878, 16
        %v1175 = vrot.slane %v1173, 4
        %v1176 = vor.u32 %v1175, %v1171
        %v1177 = vrot.slane %v1176, 4
        %v1179 = vshll.u32 %v879, 16
        %v1181 = vrot.slane %v1179, 5
        %v1182 = vsel %vm894, %v1177, %v1181
        %v1184 = vshrl.u32 %v880, 16
        %v1186 = vrot.slane %v1184, 4
        %v1187 = vshll.u32 %v880, 16
        %v1189 = vrot.slane %v1187, 5
        %v1190 = vor.u32 %v1186, %v1189
        %v1191 = vrot.slane %v1190, 4
        %v1193 = vshll.u32 %v881, 16
        %v1195 = vrot.slane %v1193, 5
        %v1196 = vsel %vm894, %v1191, %v1195
        %v1197 = vshrl.u32 %v881, 16
        %v1199 = vrot.slane %v1197, 4
        %v1200 = vor.u32 %v1199, %v1195
        %v1201 = vrot.slane %v1200, 4
        %v1203 = vshll.u32 %v882, 16
        %v1205 = vrot.slane %v1203, 5
        %v1206 = vsel %vm894, %v1201, %v1205
        %v1208 = vshrl.u32 %v883, 16
        %v1210 = vrot.slane %v1208, 4
        %v1211 = vshll.u32 %v883, 16
        %v1213 = vrot.slane %v1211, 5
        %v1214 = vor.u32 %v1210, %v1213
        %v1215 = vrot.slane %v1214, 4
        %v1217 = vshll.u32 %v884, 16
        %v1219 = vrot.slane %v1217, 5
        %v1220 = vsel %vm894, %v1215, %v1219
        %v1221 = vshrl.u32 %v884, 16
        %v1223 = vrot.slane %v1221, 4
        %v1224 = vor.u32 %v1223, %v1219
        %v1225 = vrot.slane %v1224, 4
        %v1227 = vshll.u32 %v885, 16
        %v1229 = vrot.slane %v1227, 5
        %v1230 = vsel %vm894, %v1225, %v1229
        %v1232 = vshrl.u32 %v886, 16
        %v1234 = vrot.slane %v1232, 4
        %v1235 = vshll.u32 %v886, 16
        %v1237 = vrot.slane %v1235, 5
        %v1238 = vor.u32 %v1234, %v1237
        %v1239 = vrot.slane %v1238, 4
        %v1241 = vshll.u32 %v887, 16
        %v1243 = vrot.slane %v1241, 5
        %v1244 = vsel %vm894, %v1239, %v1243
        %v1245 = vshrl.u32 %v887, 16
        %v1247 = vrot.slane %v1245, 4
        %v1248 = vor.u32 %v1247, %v1243
        %v1249 = vrot.slane %v1248, 4
        %v1251 = vshll.u32 %v888, 16
        %v1253 = vrot.slane %v1251, 5
        %v1254 = vsel %vm894, %v1249, %v1253
        %v1256 = vshrl.u32 %v889, 16
        %v1258 = vrot.slane %v1256, 4
        %v1259 = vshll.u32 %v889, 16
        %v1261 = vrot.slane %v1259, 5
        %v1262 = vor.u32 %v1258, %v1261
        %v1263 = vrot.slane %v1262, 4
        %v1265 = vshll.u32 %v890, 16
        %v1267 = vrot.slane %v1265, 5
        %v1268 = vsel %vm894, %v1263, %v1267
        %v1269 = vshrl.u32 %v890, 16
        %v1271 = vrot.slane %v1269, 4
        %v1272 = vor.u32 %v1271, %v1267
        %v1273 = vrot.slane %v1272, 4
        %v1275 = vshll.u32 %v891, 16
        %v1277 = vrot.slane %v1275, 5
        %v1278 = vsel %vm894, %v1273, %v1277
        %v1279 = vunpack.c.l.b16 %v908
        %v1280 = vunpack.c.l.b16 %v918
        %v1281 = vunpack.c.l.b16 %v932
        %v1282 = vunpack.c.l.b16 %v942
        %v1283 = vunpack.c.l.b16 %v956
        %v1284 = vunpack.c.l.b16 %v966
        %v1285 = vunpack.c.l.b16 %v980
        %v1286 = vunpack.c.l.b16 %v990
        %v1287 = vunpack.c.l.b16 %v1004
        %v1288 = vunpack.c.l.b16 %v1014
        %v1289 = vunpack.c.l.b16 %v1028
        %v1290 = vunpack.c.l.b16 %v1038
        %v1291 = vunpack.c.l.b16 %v1052
        %v1292 = vunpack.c.l.b16 %v1062
        %v1293 = vunpack.c.l.b16 %v1076
        %v1294 = vunpack.c.l.b16 %v1086
        %v1295 = vunpack.c.l.b16 %v1100
        %v1296 = vunpack.c.l.b16 %v1110
        %v1297 = vunpack.c.l.b16 %v1124
        %v1298 = vunpack.c.l.b16 %v1134
        %v1299 = vunpack.c.l.b16 %v1148
        %v1300 = vunpack.c.l.b16 %v1158
        %v1301 = vunpack.c.l.b16 %v1172
        %v1302 = vunpack.c.l.b16 %v1182
        %v1303 = vunpack.c.l.b16 %v1196
        %v1304 = vunpack.c.l.b16 %v1206
        %v1305 = vunpack.c.l.b16 %v1220
        %v1306 = vunpack.c.l.b16 %v1230
        %v1307 = vunpack.c.l.b16 %v1244
        %v1308 = vunpack.c.l.b16 %v1254
        %v1309 = vunpack.c.l.b16 %v1268
        %v1310 = vunpack.c.l.b16 %v1278
        %v1311 = vpack.c.b16 %v1280, %v1279
        %v1312 = vpack.c.b16 %v1282, %v1281
        %v1313 = vpack.c.b16 %v1284, %v1283
        %v1314 = vpack.c.b16 %v1286, %v1285
        %v1315 = vpack.c.b16 %v1288, %v1287
        %v1316 = vpack.c.b16 %v1290, %v1289
        %v1317 = vpack.c.b16 %v1292, %v1291
        %v1318 = vpack.c.b16 %v1294, %v1293
        %v1319 = vpack.c.b16 %v1296, %v1295
        %v1320 = vpack.c.b16 %v1298, %v1297
        %v1321 = vpack.c.b16 %v1300, %v1299
        %v1322 = vpack.c.b16 %v1302, %v1301
        %v1323 = vpack.c.b16 %v1304, %v1303
        %v1324 = vpack.c.b16 %v1306, %v1305
        %v1325 = vpack.c.b16 %v1308, %v1307
        %v1326 = vpack.c.b16 %v1310, %v1309
        %1327 = vrot.lane.b32.xlu0 %v1311, 64
        %v1328 = vpop.permute.xlu0 %1327
        %1329 = vrot.lane.b32.xlu0 %v1312, 64
        %v1330 = vpop.permute.xlu0 %1329
        %1331 = vrot.lane.b32.xlu0 %v1313, 64
        %v1332 = vpop.permute.xlu0 %1331
        %1333 = vrot.lane.b32.xlu0 %v1314, 64
        %v1334 = vpop.permute.xlu0 %1333
        %1335 = vrot.lane.b32.xlu0 %v1315, 64
        %v1336 = vpop.permute.xlu0 %1335
        %1337 = vrot.lane.b32.xlu0 %v1316, 64
        %v1338 = vpop.permute.xlu0 %1337
        %1339 = vrot.lane.b32.xlu0 %v1317, 64
        %v1340 = vpop.permute.xlu0 %1339
        %1341 = vrot.lane.b32.xlu0 %v1318, 64
        %v1342 = vpop.permute.xlu0 %1341
        %1343 = vrot.lane.b32.xlu0 %v1319, 64
        %v1344 = vpop.permute.xlu0 %1343
        %1345 = vrot.lane.b32.xlu0 %v1320, 64
        %v1346 = vpop.permute.xlu0 %1345
        %1347 = vrot.lane.b32.xlu0 %v1321, 64
        %v1348 = vpop.permute.xlu0 %1347
        %1349 = vrot.lane.b32.xlu0 %v1322, 64
        %v1350 = vpop.permute.xlu0 %1349
        %1351 = vrot.lane.b32.xlu0 %v1323, 64
        %v1352 = vpop.permute.xlu0 %1351
        %1353 = vrot.lane.b32.xlu0 %v1324, 64
        %v1354 = vpop.permute.xlu0 %1353
        %1355 = vrot.lane.b32.xlu0 %v1325, 64
        %v1356 = vpop.permute.xlu0 %1355
        %1357 = vrot.lane.b32.xlu0 %v1326, 64
        %v1358 = vpop.permute.xlu0 %1357
        %vm1375 = vcmask 1048064
        %1376 = vst.msk [vmem:[#allocation3] sm:$0xff] %vm1375, %v1328
        %1377 = vst.msk [vmem:[#allocation3 + $0x28] sm:$0xff] %vm1375, %v1330
        %1378 = vst.msk [vmem:[#allocation3 + $0x50] sm:$0xff] %vm1375, %v1332
        %1379 = vst.msk [vmem:[#allocation3 + $0x78] sm:$0xff] %vm1375, %v1334
        %1380 = vst.msk [vmem:[#allocation3 + $0xa0] sm:$0xff] %vm1375, %v1336
        %1381 = vst.msk [vmem:[#allocation3 + $0xc8] sm:$0xff] %vm1375, %v1338
        %1382 = vst.msk [vmem:[#allocation3 + $0xf0] sm:$0xff] %vm1375, %v1340
        %1383 = vst.msk [vmem:[#allocation3 + $0x118] sm:$0xff] %vm1375, %v1342
        %1384 = vst.msk [vmem:[#allocation3 + $0x140] sm:$0xff] %vm1375, %v1344
        %1385 = vst.msk [vmem:[#allocation3 + $0x168] sm:$0xff] %vm1375, %v1346
        %1386 = vst.msk [vmem:[#allocation3 + $0x190] sm:$0xff] %vm1375, %v1348
        %1387 = vst.msk [vmem:[#allocation3 + $0x1b8] sm:$0xff] %vm1375, %v1350
        %1388 = vst.msk [vmem:[#allocation3 + $0x1e0] sm:$0xff] %vm1375, %v1352
        %1389 = vst.msk [vmem:[#allocation3 + $0x208] sm:$0xff] %vm1375, %v1354
        %1390 = vst.msk [vmem:[#allocation3 + $0x230] sm:$0xff] %vm1375, %v1356
        %1391 = vst.msk [vmem:[#allocation3 + $0x258] sm:$0xff] %vm1375, %v1358
        %v1392 = vld [vmem:[#allocation2] sm:$0xe]
        %v1393 = vld [vmem:[#allocation2 + $0x4] sm:$0xf]
        %v1394 = vld [vmem:[#allocation2 + $0x8] sm:$0x1]
        %v1395 = vld [vmem:[#allocation2 + $0xc] sm:$0xe]
        %v1396 = vld [vmem:[#allocation2 + $0x10] sm:$0xf]
        %v1397 = vld [vmem:[#allocation2 + $0x14] sm:$0x1]
        %v1398 = vld [vmem:[#allocation2 + $0x18] sm:$0xe]
        %v1399 = vld [vmem:[#allocation2 + $0x1c] sm:$0xf]
        %v1400 = vld [vmem:[#allocation2 + $0x20] sm:$0x1]
        %v1401 = vld [vmem:[#allocation2 + $0x24] sm:$0xe]
        %v1402 = vld [vmem:[#allocation2 + $0x28] sm:$0xf]
        %v1403 = vld [vmem:[#allocation2 + $0x2c] sm:$0x1]
        %v1404 = vld [vmem:[#allocation2 + $0x30] sm:$0xe]
        %v1405 = vld [vmem:[#allocation2 + $0x34] sm:$0xf]
        %v1406 = vld [vmem:[#allocation2 + $0x38] sm:$0x1]
        %v1407 = vld [vmem:[#allocation2 + $0x3c] sm:$0xe]
        %v1408 = vld [vmem:[#allocation2 + $0x40] sm:$0xf]
        %v1409 = vld [vmem:[#allocation2 + $0x44] sm:$0x1]
        %v1410 = vld [vmem:[#allocation2 + $0x48] sm:$0xe]
        %v1411 = vld [vmem:[#allocation2 + $0x4c] sm:$0xf]
        %v1412 = vld [vmem:[#allocation2 + $0x50] sm:$0x1]
        %v1413 = vld [vmem:[#allocation2 + $0x54] sm:$0xe]
        %v1414 = vld [vmem:[#allocation2 + $0x58] sm:$0xf]
        %v1415 = vld [vmem:[#allocation2 + $0x5c] sm:$0x1]
        %v1416 = vld [vmem:[#allocation2 + $0x60] sm:$0xe]
        %v1417 = vld [vmem:[#allocation2 + $0x64] sm:$0xf]
        %v1418 = vld [vmem:[#allocation2 + $0x68] sm:$0x1]
        %v1419 = vld [vmem:[#allocation2 + $0x6c] sm:$0xe]
        %v1420 = vld [vmem:[#allocation2 + $0x70] sm:$0xf]
        %v1421 = vld [vmem:[#allocation2 + $0x74] sm:$0x1]
        %v1422 = vld [vmem:[#allocation2 + $0x78] sm:$0xe]
        %v1423 = vld [vmem:[#allocation2 + $0x7c] sm:$0xf]
        %v1424 = vld [vmem:[#allocation2 + $0x80] sm:$0x1]
        %v1425 = vld [vmem:[#allocation2 + $0x84] sm:$0xe]
        %v1426 = vld [vmem:[#allocation2 + $0x88] sm:$0xf]
        %v1427 = vld [vmem:[#allocation2 + $0x8c] sm:$0x1]
        %v1428 = vld [vmem:[#allocation2 + $0x90] sm:$0xe]
        %v1429 = vld [vmem:[#allocation2 + $0x94] sm:$0xf]
        %v1430 = vld [vmem:[#allocation2 + $0x98] sm:$0x1]
        %v1431 = vld [vmem:[#allocation2 + $0x9c] sm:$0xe]
        %v1432 = vld [vmem:[#allocation2 + $0xa0] sm:$0xf]
        %v1433 = vld [vmem:[#allocation2 + $0xa4] sm:$0x1]
        %v1434 = vld [vmem:[#allocation2 + $0xa8] sm:$0xe]
        %v1435 = vld [vmem:[#allocation2 + $0xac] sm:$0xf]
        %v1436 = vld [vmem:[#allocation2 + $0xb0] sm:$0x1]
        %v1437 = vld [vmem:[#allocation2 + $0xb4] sm:$0xe]
        %v1438 = vld [vmem:[#allocation2 + $0xb8] sm:$0xf]
        %v1439 = vld [vmem:[#allocation2 + $0xbc] sm:$0x1]
        %vm1488 = vcmask 1042432
        %vm1489 = vcmask 1046532
        %vm1490 = vmor %vm1488, %vm1489
        %v1491 = vrot.slane %v1392, 5
        %v1492 = vrot.slane %v1491, 4
        %v1493 = vrot.slane %v1393, 5
        %v1494 = vsel %vm1490, %v1492, %v1493
        %v1495 = vrot.slane %v1493, 4
        %v1496 = vrot.slane %v1394, 5
        %v1497 = vsel %vm1490, %v1495, %v1496
        %v1498 = vrot.slane %v1395, 5
        %v1499 = vrot.slane %v1498, 4
        %v1500 = vrot.slane %v1396, 5
        %v1501 = vsel %vm1490, %v1499, %v1500
        %v1502 = vrot.slane %v1500, 4
        %v1503 = vrot.slane %v1397, 5
        %v1504 = vsel %vm1490, %v1502, %v1503
        %v1505 = vrot.slane %v1398, 5
        %v1506 = vrot.slane %v1505, 4
        %v1507 = vrot.slane %v1399, 5
        %v1508 = vsel %vm1490, %v1506, %v1507
        %v1509 = vrot.slane %v1507, 4
        %v1510 = vrot.slane %v1400, 5
        %v1511 = vsel %vm1490, %v1509, %v1510
        %v1512 = vrot.slane %v1401, 5
        %v1513 = vrot.slane %v1512, 4
        %v1514 = vrot.slane %v1402, 5
        %v1515 = vsel %vm1490, %v1513, %v1514
        %v1516 = vrot.slane %v1514, 4
        %v1517 = vrot.slane %v1403, 5
        %v1518 = vsel %vm1490, %v1516, %v1517
        %v1519 = vrot.slane %v1404, 5
        %v1520 = vrot.slane %v1519, 4
        %v1521 = vrot.slane %v1405, 5
        %v1522 = vsel %vm1490, %v1520, %v1521
        %v1523 = vrot.slane %v1521, 4
        %v1524 = vrot.slane %v1406, 5
        %v1525 = vsel %vm1490, %v1523, %v1524
        %v1526 = vrot.slane %v1407, 5
        %v1527 = vrot.slane %v1526, 4
        %v1528 = vrot.slane %v1408, 5
        %v1529 = vsel %vm1490, %v1527, %v1528
        %v1530 = vrot.slane %v1528, 4
        %v1531 = vrot.slane %v1409, 5
        %v1532 = vsel %vm1490, %v1530, %v1531
        %v1533 = vrot.slane %v1410, 5
        %v1534 = vrot.slane %v1533, 4
        %v1535 = vrot.slane %v1411, 5
        %v1536 = vsel %vm1490, %v1534, %v1535
        %v1537 = vrot.slane %v1535, 4
        %v1538 = vrot.slane %v1412, 5
        %v1539 = vsel %vm1490, %v1537, %v1538
        %v1540 = vrot.slane %v1413, 5
        %v1541 = vrot.slane %v1540, 4
        %v1542 = vrot.slane %v1414, 5
        %v1543 = vsel %vm1490, %v1541, %v1542
        %v1544 = vrot.slane %v1542, 4
        %v1545 = vrot.slane %v1415, 5
        %v1546 = vsel %vm1490, %v1544, %v1545
        %v1547 = vrot.slane %v1416, 5
        %v1548 = vrot.slane %v1547, 4
        %v1549 = vrot.slane %v1417, 5
        %v1550 = vsel %vm1490, %v1548, %v1549
        %v1551 = vrot.slane %v1549, 4
        %v1552 = vrot.slane %v1418, 5
        %v1553 = vsel %vm1490, %v1551, %v1552
        %v1554 = vrot.slane %v1419, 5
        %v1555 = vrot.slane %v1554, 4
        %v1556 = vrot.slane %v1420, 5
        %v1557 = vsel %vm1490, %v1555, %v1556
        %v1558 = vrot.slane %v1556, 4
        %v1559 = vrot.slane %v1421, 5
        %v1560 = vsel %vm1490, %v1558, %v1559
        %v1561 = vrot.slane %v1422, 5
        %v1562 = vrot.slane %v1561, 4
        %v1563 = vrot.slane %v1423, 5
        %v1564 = vsel %vm1490, %v1562, %v1563
        %v1565 = vrot.slane %v1563, 4
        %v1566 = vrot.slane %v1424, 5
        %v1567 = vsel %vm1490, %v1565, %v1566
        %v1568 = vrot.slane %v1425, 5
        %v1569 = vrot.slane %v1568, 4
        %v1570 = vrot.slane %v1426, 5
        %v1571 = vsel %vm1490, %v1569, %v1570
        %v1572 = vrot.slane %v1570, 4
        %v1573 = vrot.slane %v1427, 5
        %v1574 = vsel %vm1490, %v1572, %v1573
        %v1575 = vrot.slane %v1428, 5
        %v1576 = vrot.slane %v1575, 4
        %v1577 = vrot.slane %v1429, 5
        %v1578 = vsel %vm1490, %v1576, %v1577
        %v1579 = vrot.slane %v1577, 4
        %v1580 = vrot.slane %v1430, 5
        %v1581 = vsel %vm1490, %v1579, %v1580
        %v1582 = vrot.slane %v1431, 5
        %v1583 = vrot.slane %v1582, 4
        %v1584 = vrot.slane %v1432, 5
        %v1585 = vsel %vm1490, %v1583, %v1584
        %v1586 = vrot.slane %v1584, 4
        %v1587 = vrot.slane %v1433, 5
        %v1588 = vsel %vm1490, %v1586, %v1587
        %v1589 = vrot.slane %v1434, 5
        %v1590 = vrot.slane %v1589, 4
        %v1591 = vrot.slane %v1435, 5
        %v1592 = vsel %vm1490, %v1590, %v1591
        %v1593 = vrot.slane %v1591, 4
        %v1594 = vrot.slane %v1436, 5
        %v1595 = vsel %vm1490, %v1593, %v1594
        %v1596 = vrot.slane %v1437, 5
        %v1597 = vrot.slane %v1596, 4
        %v1598 = vrot.slane %v1438, 5
        %v1599 = vsel %vm1490, %v1597, %v1598
        %v1600 = vrot.slane %v1598, 4
        %v1601 = vrot.slane %v1439, 5
        %v1602 = vsel %vm1490, %v1600, %v1601
        %v1603 = vunpack.c.l.b16 %v1494
        %v1604 = vunpack.c.l.b16 %v1497
        %v1605 = vunpack.c.l.b16 %v1501
        %v1606 = vunpack.c.l.b16 %v1504
        %v1607 = vunpack.c.l.b16 %v1508
        %v1608 = vunpack.c.l.b16 %v1511
        %v1609 = vunpack.c.l.b16 %v1515
        %v1610 = vunpack.c.l.b16 %v1518
        %v1611 = vunpack.c.l.b16 %v1522
        %v1612 = vunpack.c.l.b16 %v1525
        %v1613 = vunpack.c.l.b16 %v1529
        %v1614 = vunpack.c.l.b16 %v1532
        %v1615 = vunpack.c.l.b16 %v1536
        %v1616 = vunpack.c.l.b16 %v1539
        %v1617 = vunpack.c.l.b16 %v1543
        %v1618 = vunpack.c.l.b16 %v1546
        %v1619 = vunpack.c.l.b16 %v1550
        %v1620 = vunpack.c.l.b16 %v1553
        %v1621 = vunpack.c.l.b16 %v1557
        %v1622 = vunpack.c.l.b16 %v1560
        %v1623 = vunpack.c.l.b16 %v1564
        %v1624 = vunpack.c.l.b16 %v1567
        %v1625 = vunpack.c.l.b16 %v1571
        %v1626 = vunpack.c.l.b16 %v1574
        %v1627 = vunpack.c.l.b16 %v1578
        %v1628 = vunpack.c.l.b16 %v1581
        %v1629 = vunpack.c.l.b16 %v1585
        %v1630 = vunpack.c.l.b16 %v1588
        %v1631 = vunpack.c.l.b16 %v1592
        %v1632 = vunpack.c.l.b16 %v1595
        %v1633 = vunpack.c.l.b16 %v1599
        %v1634 = vunpack.c.l.b16 %v1602
        %v1635 = vpack.c.b16 %v1604, %v1603
        %v1636 = vpack.c.b16 %v1606, %v1605
        %v1637 = vpack.c.b16 %v1608, %v1607
        %v1638 = vpack.c.b16 %v1610, %v1609
        %v1639 = vpack.c.b16 %v1612, %v1611
        %v1640 = vpack.c.b16 %v1614, %v1613
        %v1641 = vpack.c.b16 %v1616, %v1615
        %v1642 = vpack.c.b16 %v1618, %v1617
        %v1643 = vpack.c.b16 %v1620, %v1619
        %v1644 = vpack.c.b16 %v1622, %v1621
        %v1645 = vpack.c.b16 %v1624, %v1623
        %v1646 = vpack.c.b16 %v1626, %v1625
        %v1647 = vpack.c.b16 %v1628, %v1627
        %v1648 = vpack.c.b16 %v1630, %v1629
        %v1649 = vpack.c.b16 %v1632, %v1631
        %v1650 = vpack.c.b16 %v1634, %v1633
        %1667 = vst.msk [vmem:[#allocation3 + $0x8] sm:$0xff] %vm827, %v1635
        %1668 = vst.msk [vmem:[#allocation3 + $0x30] sm:$0xff] %vm827, %v1636
        %1669 = vst.msk [vmem:[#allocation3 + $0x58] sm:$0xff] %vm827, %v1637
        %1670 = vst.msk [vmem:[#allocation3 + $0x80] sm:$0xff] %vm827, %v1638
        %1671 = vst.msk [vmem:[#allocation3 + $0xa8] sm:$0xff] %vm827, %v1639
        %1672 = vst.msk [vmem:[#allocation3 + $0xd0] sm:$0xff] %vm827, %v1640
        %1673 = vst.msk [vmem:[#allocation3 + $0xf8] sm:$0xff] %vm827, %v1641
        %1674 = vst.msk [vmem:[#allocation3 + $0x120] sm:$0xff] %vm827, %v1642
        %1675 = vst.msk [vmem:[#allocation3 + $0x148] sm:$0xff] %vm827, %v1643
        %1676 = vst.msk [vmem:[#allocation3 + $0x170] sm:$0xff] %vm827, %v1644
        %1677 = vst.msk [vmem:[#allocation3 + $0x198] sm:$0xff] %vm827, %v1645
        %1678 = vst.msk [vmem:[#allocation3 + $0x1c0] sm:$0xff] %vm827, %v1646
        %1679 = vst.msk [vmem:[#allocation3 + $0x1e8] sm:$0xff] %vm827, %v1647
        %1680 = vst.msk [vmem:[#allocation3 + $0x210] sm:$0xff] %vm827, %v1648
        %1681 = vst.msk [vmem:[#allocation3 + $0x238] sm:$0xff] %vm827, %v1649
        %1682 = vst.msk [vmem:[#allocation3 + $0x260] sm:$0xff] %vm827, %v1650
        %v1683 = vld [vmem:[%s581] sm:$0xf]
        %v1684 = vld [vmem:[%s581 + $0x4] sm:$0xf]
        %v1685 = vld [vmem:[%s581 + $0xc] sm:$0xf]
        %v1686 = vld [vmem:[%s581 + $0x10] sm:$0xf]
        %v1687 = vld [vmem:[%s581 + $0x18] sm:$0xf]
        %v1688 = vld [vmem:[%s581 + $0x1c] sm:$0xf]
        %v1689 = vld [vmem:[%s581 + $0x24] sm:$0xf]
        %v1690 = vld [vmem:[%s581 + $0x28] sm:$0xf]
        %v1691 = vld [vmem:[%s581 + $0x30] sm:$0xf]
        %v1692 = vld [vmem:[%s581 + $0x34] sm:$0xf]
        %v1693 = vld [vmem:[%s581 + $0x3c] sm:$0xf]
        %v1694 = vld [vmem:[%s581 + $0x40] sm:$0xf]
        %v1695 = vld [vmem:[%s581 + $0x48] sm:$0xf]
        %v1696 = vld [vmem:[%s581 + $0x4c] sm:$0xf]
        %v1697 = vld [vmem:[%s581 + $0x54] sm:$0xf]
        %v1698 = vld [vmem:[%s581 + $0x58] sm:$0xf]
        %v1699 = vld [vmem:[%s581 + $0x60] sm:$0xf]
        %v1700 = vld [vmem:[%s581 + $0x64] sm:$0xf]
        %v1701 = vld [vmem:[%s581 + $0x6c] sm:$0xf]
        %v1702 = vld [vmem:[%s581 + $0x70] sm:$0xf]
        %v1703 = vld [vmem:[%s581 + $0x78] sm:$0xf]
        %v1704 = vld [vmem:[%s581 + $0x7c] sm:$0xf]
        %v1705 = vld [vmem:[%s581 + $0x84] sm:$0xf]
        %v1706 = vld [vmem:[%s581 + $0x88] sm:$0xf]
        %v1707 = vld [vmem:[%s581 + $0x90] sm:$0xf]
        %v1708 = vld [vmem:[%s581 + $0x94] sm:$0xf]
        %v1709 = vld [vmem:[%s581 + $0x9c] sm:$0xf]
        %v1710 = vld [vmem:[%s581 + $0xa0] sm:$0xf]
        %v1711 = vld [vmem:[%s581 + $0xa8] sm:$0xf]
        %v1712 = vld [vmem:[%s581 + $0xac] sm:$0xf]
        %v1713 = vld [vmem:[%s581 + $0xb4] sm:$0xf]
        %v1714 = vld [vmem:[%s581 + $0xb8] sm:$0xf]
        %v1747 = vunpack.c.l.b16 %v1683
        %v1748 = vunpack.c.l.b16 %v1684
        %v1749 = vunpack.c.l.b16 %v1685
        %v1750 = vunpack.c.l.b16 %v1686
        %v1751 = vunpack.c.l.b16 %v1687
        %v1752 = vunpack.c.l.b16 %v1688
        %v1753 = vunpack.c.l.b16 %v1689
        %v1754 = vunpack.c.l.b16 %v1690
        %v1755 = vunpack.c.l.b16 %v1691
        %v1756 = vunpack.c.l.b16 %v1692
        %v1757 = vunpack.c.l.b16 %v1693
        %v1758 = vunpack.c.l.b16 %v1694
        %v1759 = vunpack.c.l.b16 %v1695
        %v1760 = vunpack.c.l.b16 %v1696
        %v1761 = vunpack.c.l.b16 %v1697
        %v1762 = vunpack.c.l.b16 %v1698
        %v1763 = vunpack.c.l.b16 %v1699
        %v1764 = vunpack.c.l.b16 %v1700
        %v1765 = vunpack.c.l.b16 %v1701
        %v1766 = vunpack.c.l.b16 %v1702
        %v1767 = vunpack.c.l.b16 %v1703
        %v1768 = vunpack.c.l.b16 %v1704
        %v1769 = vunpack.c.l.b16 %v1705
        %v1770 = vunpack.c.l.b16 %v1706
        %v1771 = vunpack.c.l.b16 %v1707
        %v1772 = vunpack.c.l.b16 %v1708
        %v1773 = vunpack.c.l.b16 %v1709
        %v1774 = vunpack.c.l.b16 %v1710
        %v1775 = vunpack.c.l.b16 %v1711
        %v1776 = vunpack.c.l.b16 %v1712
        %v1777 = vunpack.c.l.b16 %v1713
        %v1778 = vunpack.c.l.b16 %v1714
        %v1779 = vpack.c.b16 %v1748, %v1747
        %v1780 = vpack.c.b16 %v1750, %v1749
        %v1781 = vpack.c.b16 %v1752, %v1751
        %v1782 = vpack.c.b16 %v1754, %v1753
        %v1783 = vpack.c.b16 %v1756, %v1755
        %v1784 = vpack.c.b16 %v1758, %v1757
        %v1785 = vpack.c.b16 %v1760, %v1759
        %v1786 = vpack.c.b16 %v1762, %v1761
        %v1787 = vpack.c.b16 %v1764, %v1763
        %v1788 = vpack.c.b16 %v1766, %v1765
        %v1789 = vpack.c.b16 %v1768, %v1767
        %v1790 = vpack.c.b16 %v1770, %v1769
        %v1791 = vpack.c.b16 %v1772, %v1771
        %v1792 = vpack.c.b16 %v1774, %v1773
        %v1793 = vpack.c.b16 %v1776, %v1775
        %v1794 = vpack.c.b16 %v1778, %v1777
        %1795 = vrot.lane.b32.xlu0 %v1779, 64
        %v1796 = vpop.permute.xlu0 %1795
        %1797 = vrot.lane.b32.xlu0 %v1780, 64
        %v1798 = vpop.permute.xlu0 %1797
        %1799 = vrot.lane.b32.xlu0 %v1781, 64
        %v1800 = vpop.permute.xlu0 %1799
        %1801 = vrot.lane.b32.xlu0 %v1782, 64
        %v1802 = vpop.permute.xlu0 %1801
        %1803 = vrot.lane.b32.xlu0 %v1783, 64
        %v1804 = vpop.permute.xlu0 %1803
        %1805 = vrot.lane.b32.xlu0 %v1784, 64
        %v1806 = vpop.permute.xlu0 %1805
        %1807 = vrot.lane.b32.xlu0 %v1785, 64
        %v1808 = vpop.permute.xlu0 %1807
        %1809 = vrot.lane.b32.xlu0 %v1786, 64
        %v1810 = vpop.permute.xlu0 %1809
        %1811 = vrot.lane.b32.xlu0 %v1787, 64
        %v1812 = vpop.permute.xlu0 %1811
        %1813 = vrot.lane.b32.xlu0 %v1788, 64
        %v1814 = vpop.permute.xlu0 %1813
        %1815 = vrot.lane.b32.xlu0 %v1789, 64
        %v1816 = vpop.permute.xlu0 %1815
        %1817 = vrot.lane.b32.xlu0 %v1790, 64
        %v1818 = vpop.permute.xlu0 %1817
        %1819 = vrot.lane.b32.xlu0 %v1791, 64
        %v1820 = vpop.permute.xlu0 %1819
        %1821 = vrot.lane.b32.xlu0 %v1792, 64
        %v1822 = vpop.permute.xlu0 %1821
        %1823 = vrot.lane.b32.xlu0 %v1793, 64
        %v1824 = vpop.permute.xlu0 %1823
        %1825 = vrot.lane.b32.xlu0 %v1794, 64
        %v1826 = vpop.permute.xlu0 %1825
        %1843 = vst.msk [vmem:[#allocation3 + $0x8] sm:$0xff] %vm1375, %v1796
        %1844 = vst.msk [vmem:[#allocation3 + $0x30] sm:$0xff] %vm1375, %v1798
        %1845 = vst.msk [vmem:[#allocation3 + $0x58] sm:$0xff] %vm1375, %v1800
        %1846 = vst.msk [vmem:[#allocation3 + $0x80] sm:$0xff] %vm1375, %v1802
        %1847 = vst.msk [vmem:[#allocation3 + $0xa8] sm:$0xff] %vm1375, %v1804
        %1848 = vst.msk [vmem:[#allocation3 + $0xd0] sm:$0xff] %vm1375, %v1806
        %1849 = vst.msk [vmem:[#allocation3 + $0xf8] sm:$0xff] %vm1375, %v1808
        %1850 = vst.msk [vmem:[#allocation3 + $0x120] sm:$0xff] %vm1375, %v1810
        %1851 = vst.msk [vmem:[#allocation3 + $0x148] sm:$0xff] %vm1375, %v1812
        %1852 = vst.msk [vmem:[#allocation3 + $0x170] sm:$0xff] %vm1375, %v1814
        %1853 = vst.msk [vmem:[#allocation3 + $0x198] sm:$0xff] %vm1375, %v1816
        %1854 = vst.msk [vmem:[#allocation3 + $0x1c0] sm:$0xff] %vm1375, %v1818
        %1855 = vst.msk [vmem:[#allocation3 + $0x1e8] sm:$0xff] %vm1375, %v1820
        %1856 = vst.msk [vmem:[#allocation3 + $0x210] sm:$0xff] %vm1375, %v1822
        %1857 = vst.msk [vmem:[#allocation3 + $0x238] sm:$0xff] %vm1375, %v1824
        %1858 = vst.msk [vmem:[#allocation3 + $0x260] sm:$0xff] %vm1375, %v1826
        %v1859 = vld [vmem:[%s581] sm:$0xf]
        %v1860 = vld [vmem:[%s581 + $0x4] sm:$0xf]
        %v1861 = vld [vmem:[%s581 + $0x8] sm:$0x1]
        %v1862 = vld [vmem:[%s581 + $0xc] sm:$0xf]
        %v1863 = vld [vmem:[%s581 + $0x10] sm:$0xf]
        %v1864 = vld [vmem:[%s581 + $0x14] sm:$0x1]
        %v1865 = vld [vmem:[%s581 + $0x18] sm:$0xf]
        %v1866 = vld [vmem:[%s581 + $0x1c] sm:$0xf]
        %v1867 = vld [vmem:[%s581 + $0x20] sm:$0x1]
        %v1868 = vld [vmem:[%s581 + $0x24] sm:$0xf]
        %v1869 = vld [vmem:[%s581 + $0x28] sm:$0xf]
        %v1870 = vld [vmem:[%s581 + $0x2c] sm:$0x1]
        %v1871 = vld [vmem:[%s581 + $0x30] sm:$0xf]
        %v1872 = vld [vmem:[%s581 + $0x34] sm:$0xf]
        %v1873 = vld [vmem:[%s581 + $0x38] sm:$0x1]
        %v1874 = vld [vmem:[%s581 + $0x3c] sm:$0xf]
        %v1875 = vld [vmem:[%s581 + $0x40] sm:$0xf]
        %v1876 = vld [vmem:[%s581 + $0x44] sm:$0x1]
        %v1877 = vld [vmem:[%s581 + $0x48] sm:$0xf]
        %v1878 = vld [vmem:[%s581 + $0x4c] sm:$0xf]
        %v1879 = vld [vmem:[%s581 + $0x50] sm:$0x1]
        %v1880 = vld [vmem:[%s581 + $0x54] sm:$0xf]
        %v1881 = vld [vmem:[%s581 + $0x58] sm:$0xf]
        %v1882 = vld [vmem:[%s581 + $0x5c] sm:$0x1]
        %v1883 = vld [vmem:[%s581 + $0x60] sm:$0xf]
        %v1884 = vld [vmem:[%s581 + $0x64] sm:$0xf]
        %v1885 = vld [vmem:[%s581 + $0x68] sm:$0x1]
        %v1886 = vld [vmem:[%s581 + $0x6c] sm:$0xf]
        %v1887 = vld [vmem:[%s581 + $0x70] sm:$0xf]
        %v1888 = vld [vmem:[%s581 + $0x74] sm:$0x1]
        %v1889 = vld [vmem:[%s581 + $0x78] sm:$0xf]
        %v1890 = vld [vmem:[%s581 + $0x7c] sm:$0xf]
        %v1891 = vld [vmem:[%s581 + $0x80] sm:$0x1]
        %v1892 = vld [vmem:[%s581 + $0x84] sm:$0xf]
        %v1893 = vld [vmem:[%s581 + $0x88] sm:$0xf]
        %v1894 = vld [vmem:[%s581 + $0x8c] sm:$0x1]
        %v1895 = vld [vmem:[%s581 + $0x90] sm:$0xf]
        %v1896 = vld [vmem:[%s581 + $0x94] sm:$0xf]
        %v1897 = vld [vmem:[%s581 + $0x98] sm:$0x1]
        %v1898 = vld [vmem:[%s581 + $0x9c] sm:$0xf]
        %v1899 = vld [vmem:[%s581 + $0xa0] sm:$0xf]
        %v1900 = vld [vmem:[%s581 + $0xa4] sm:$0x1]
        %v1901 = vld [vmem:[%s581 + $0xa8] sm:$0xf]
        %v1902 = vld [vmem:[%s581 + $0xac] sm:$0xf]
        %v1903 = vld [vmem:[%s581 + $0xb0] sm:$0x1]
        %v1904 = vld [vmem:[%s581 + $0xb4] sm:$0xf]
        %v1905 = vld [vmem:[%s581 + $0xb8] sm:$0xf]
        %v1906 = vld [vmem:[%s581 + $0xbc] sm:$0x1]
        %v1908 = vshrl.u32 %v1859, 16
        %v1910 = vrot.slane %v1908, 4
        %v1911 = vshll.u32 %v1859, 16
        %v1913 = vrot.slane %v1911, 5
        %v1914 = vor.u32 %v1910, %v1913
        %v1915 = vrot.slane %v1914, 4
        %v1917 = vshll.u32 %v1860, 16
        %v1919 = vrot.slane %v1917, 5
        %v1920 = vsel %vm894, %v1915, %v1919
        %v1921 = vshrl.u32 %v1860, 16
        %v1923 = vrot.slane %v1921, 4
        %v1924 = vor.u32 %v1923, %v1919
        %v1925 = vrot.slane %v1924, 4
        %v1927 = vshll.u32 %v1861, 16
        %v1929 = vrot.slane %v1927, 5
        %v1930 = vsel %vm894, %v1925, %v1929
        %v1932 = vshrl.u32 %v1862, 16
        %v1934 = vrot.slane %v1932, 4
        %v1935 = vshll.u32 %v1862, 16
        %v1937 = vrot.slane %v1935, 5
        %v1938 = vor.u32 %v1934, %v1937
        %v1939 = vrot.slane %v1938, 4
        %v1941 = vshll.u32 %v1863, 16
        %v1943 = vrot.slane %v1941, 5
        %v1944 = vsel %vm894, %v1939, %v1943
        %v1945 = vshrl.u32 %v1863, 16
        %v1947 = vrot.slane %v1945, 4
        %v1948 = vor.u32 %v1947, %v1943
        %v1949 = vrot.slane %v1948, 4
        %v1951 = vshll.u32 %v1864, 16
        %v1953 = vrot.slane %v1951, 5
        %v1954 = vsel %vm894, %v1949, %v1953
        %v1956 = vshrl.u32 %v1865, 16
        %v1958 = vrot.slane %v1956, 4
        %v1959 = vshll.u32 %v1865, 16
        %v1961 = vrot.slane %v1959, 5
        %v1962 = vor.u32 %v1958, %v1961
        %v1963 = vrot.slane %v1962, 4
        %v1965 = vshll.u32 %v1866, 16
        %v1967 = vrot.slane %v1965, 5
        %v1968 = vsel %vm894, %v1963, %v1967
        %v1969 = vshrl.u32 %v1866, 16
        %v1971 = vrot.slane %v1969, 4
        %v1972 = vor.u32 %v1971, %v1967
        %v1973 = vrot.slane %v1972, 4
        %v1975 = vshll.u32 %v1867, 16
        %v1977 = vrot.slane %v1975, 5
        %v1978 = vsel %vm894, %v1973, %v1977
        %v1980 = vshrl.u32 %v1868, 16
        %v1982 = vrot.slane %v1980, 4
        %v1983 = vshll.u32 %v1868, 16
        %v1985 = vrot.slane %v1983, 5
        %v1986 = vor.u32 %v1982, %v1985
        %v1987 = vrot.slane %v1986, 4
        %v1989 = vshll.u32 %v1869, 16
        %v1991 = vrot.slane %v1989, 5
        %v1992 = vsel %vm894, %v1987, %v1991
        %v1993 = vshrl.u32 %v1869, 16
        %v1995 = vrot.slane %v1993, 4
        %v1996 = vor.u32 %v1995, %v1991
        %v1997 = vrot.slane %v1996, 4
        %v1999 = vshll.u32 %v1870, 16
        %v2001 = vrot.slane %v1999, 5
        %v2002 = vsel %vm894, %v1997, %v2001
        %v2004 = vshrl.u32 %v1871, 16
        %v2006 = vrot.slane %v2004, 4
        %v2007 = vshll.u32 %v1871, 16
        %v2009 = vrot.slane %v2007, 5
        %v2010 = vor.u32 %v2006, %v2009
        %v2011 = vrot.slane %v2010, 4
        %v2013 = vshll.u32 %v1872, 16
        %v2015 = vrot.slane %v2013, 5
        %v2016 = vsel %vm894, %v2011, %v2015
        %v2017 = vshrl.u32 %v1872, 16
        %v2019 = vrot.slane %v2017, 4
        %v2020 = vor.u32 %v2019, %v2015
        %v2021 = vrot.slane %v2020, 4
        %v2023 = vshll.u32 %v1873, 16
        %v2025 = vrot.slane %v2023, 5
        %v2026 = vsel %vm894, %v2021, %v2025
        %v2028 = vshrl.u32 %v1874, 16
        %v2030 = vrot.slane %v2028, 4
        %v2031 = vshll.u32 %v1874, 16
        %v2033 = vrot.slane %v2031, 5
        %v2034 = vor.u32 %v2030, %v2033
        %v2035 = vrot.slane %v2034, 4
        %v2037 = vshll.u32 %v1875, 16
        %v2039 = vrot.slane %v2037, 5
        %v2040 = vsel %vm894, %v2035, %v2039
        %v2041 = vshrl.u32 %v1875, 16
        %v2043 = vrot.slane %v2041, 4
        %v2044 = vor.u32 %v2043, %v2039
        %v2045 = vrot.slane %v2044, 4
        %v2047 = vshll.u32 %v1876, 16
        %v2049 = vrot.slane %v2047, 5
        %v2050 = vsel %vm894, %v2045, %v2049
        %v2052 = vshrl.u32 %v1877, 16
        %v2054 = vrot.slane %v2052, 4
        %v2055 = vshll.u32 %v1877, 16
        %v2057 = vrot.slane %v2055, 5
        %v2058 = vor.u32 %v2054, %v2057
        %v2059 = vrot.slane %v2058, 4
        %v2061 = vshll.u32 %v1878, 16
        %v2063 = vrot.slane %v2061, 5
        %v2064 = vsel %vm894, %v2059, %v2063
        %v2065 = vshrl.u32 %v1878, 16
        %v2067 = vrot.slane %v2065, 4
        %v2068 = vor.u32 %v2067, %v2063
        %v2069 = vrot.slane %v2068, 4
        %v2071 = vshll.u32 %v1879, 16
        %v2073 = vrot.slane %v2071, 5
        %v2074 = vsel %vm894, %v2069, %v2073
        %v2076 = vshrl.u32 %v1880, 16
        %v2078 = vrot.slane %v2076, 4
        %v2079 = vshll.u32 %v1880, 16
        %v2081 = vrot.slane %v2079, 5
        %v2082 = vor.u32 %v2078, %v2081
        %v2083 = vrot.slane %v2082, 4
        %v2085 = vshll.u32 %v1881, 16
        %v2087 = vrot.slane %v2085, 5
        %v2088 = vsel %vm894, %v2083, %v2087
        %v2089 = vshrl.u32 %v1881, 16
        %v2091 = vrot.slane %v2089, 4
        %v2092 = vor.u32 %v2091, %v2087
        %v2093 = vrot.slane %v2092, 4
        %v2095 = vshll.u32 %v1882, 16
        %v2097 = vrot.slane %v2095, 5
        %v2098 = vsel %vm894, %v2093, %v2097
        %v2100 = vshrl.u32 %v1883, 16
        %v2102 = vrot.slane %v2100, 4
        %v2103 = vshll.u32 %v1883, 16
        %v2105 = vrot.slane %v2103, 5
        %v2106 = vor.u32 %v2102, %v2105
        %v2107 = vrot.slane %v2106, 4
        %v2109 = vshll.u32 %v1884, 16
        %v2111 = vrot.slane %v2109, 5
        %v2112 = vsel %vm894, %v2107, %v2111
        %v2113 = vshrl.u32 %v1884, 16
        %v2115 = vrot.slane %v2113, 4
        %v2116 = vor.u32 %v2115, %v2111
        %v2117 = vrot.slane %v2116, 4
        %v2119 = vshll.u32 %v1885, 16
        %v2121 = vrot.slane %v2119, 5
        %v2122 = vsel %vm894, %v2117, %v2121
        %v2124 = vshrl.u32 %v1886, 16
        %v2126 = vrot.slane %v2124, 4
        %v2127 = vshll.u32 %v1886, 16
        %v2129 = vrot.slane %v2127, 5
        %v2130 = vor.u32 %v2126, %v2129
        %v2131 = vrot.slane %v2130, 4
        %v2133 = vshll.u32 %v1887, 16
        %v2135 = vrot.slane %v2133, 5
        %v2136 = vsel %vm894, %v2131, %v2135
        %v2137 = vshrl.u32 %v1887, 16
        %v2139 = vrot.slane %v2137, 4
        %v2140 = vor.u32 %v2139, %v2135
        %v2141 = vrot.slane %v2140, 4
        %v2143 = vshll.u32 %v1888, 16
        %v2145 = vrot.slane %v2143, 5
        %v2146 = vsel %vm894, %v2141, %v2145
        %v2148 = vshrl.u32 %v1889, 16
        %v2150 = vrot.slane %v2148, 4
        %v2151 = vshll.u32 %v1889, 16
        %v2153 = vrot.slane %v2151, 5
        %v2154 = vor.u32 %v2150, %v2153
        %v2155 = vrot.slane %v2154, 4
        %v2157 = vshll.u32 %v1890, 16
        %v2159 = vrot.slane %v2157, 5
        %v2160 = vsel %vm894, %v2155, %v2159
        %v2161 = vshrl.u32 %v1890, 16
        %v2163 = vrot.slane %v2161, 4
        %v2164 = vor.u32 %v2163, %v2159
        %v2165 = vrot.slane %v2164, 4
        %v2167 = vshll.u32 %v1891, 16
        %v2169 = vrot.slane %v2167, 5
        %v2170 = vsel %vm894, %v2165, %v2169
        %v2172 = vshrl.u32 %v1892, 16
        %v2174 = vrot.slane %v2172, 4
        %v2175 = vshll.u32 %v1892, 16
        %v2177 = vrot.slane %v2175, 5
        %v2178 = vor.u32 %v2174, %v2177
        %v2179 = vrot.slane %v2178, 4
        %v2181 = vshll.u32 %v1893, 16
        %v2183 = vrot.slane %v2181, 5
        %v2184 = vsel %vm894, %v2179, %v2183
        %v2185 = vshrl.u32 %v1893, 16
        %v2187 = vrot.slane %v2185, 4
        %v2188 = vor.u32 %v2187, %v2183
        %v2189 = vrot.slane %v2188, 4
        %v2191 = vshll.u32 %v1894, 16
        %v2193 = vrot.slane %v2191, 5
        %v2194 = vsel %vm894, %v2189, %v2193
        %v2196 = vshrl.u32 %v1895, 16
        %v2198 = vrot.slane %v2196, 4
        %v2199 = vshll.u32 %v1895, 16
        %v2201 = vrot.slane %v2199, 5
        %v2202 = vor.u32 %v2198, %v2201
        %v2203 = vrot.slane %v2202, 4
        %v2205 = vshll.u32 %v1896, 16
        %v2207 = vrot.slane %v2205, 5
        %v2208 = vsel %vm894, %v2203, %v2207
        %v2209 = vshrl.u32 %v1896, 16
        %v2211 = vrot.slane %v2209, 4
        %v2212 = vor.u32 %v2211, %v2207
        %v2213 = vrot.slane %v2212, 4
        %v2215 = vshll.u32 %v1897, 16
        %v2217 = vrot.slane %v2215, 5
        %v2218 = vsel %vm894, %v2213, %v2217
        %v2220 = vshrl.u32 %v1898, 16
        %v2222 = vrot.slane %v2220, 4
        %v2223 = vshll.u32 %v1898, 16
        %v2225 = vrot.slane %v2223, 5
        %v2226 = vor.u32 %v2222, %v2225
        %v2227 = vrot.slane %v2226, 4
        %v2229 = vshll.u32 %v1899, 16
        %v2231 = vrot.slane %v2229, 5
        %v2232 = vsel %vm894, %v2227, %v2231
        %v2233 = vshrl.u32 %v1899, 16
        %v2235 = vrot.slane %v2233, 4
        %v2236 = vor.u32 %v2235, %v2231
        %v2237 = vrot.slane %v2236, 4
        %v2239 = vshll.u32 %v1900, 16
        %v2241 = vrot.slane %v2239, 5
        %v2242 = vsel %vm894, %v2237, %v2241
        %v2244 = vshrl.u32 %v1901, 16
        %v2246 = vrot.slane %v2244, 4
        %v2247 = vshll.u32 %v1901, 16
        %v2249 = vrot.slane %v2247, 5
        %v2250 = vor.u32 %v2246, %v2249
        %v2251 = vrot.slane %v2250, 4
        %v2253 = vshll.u32 %v1902, 16
        %v2255 = vrot.slane %v2253, 5
        %v2256 = vsel %vm894, %v2251, %v2255
        %v2257 = vshrl.u32 %v1902, 16
        %v2259 = vrot.slane %v2257, 4
        %v2260 = vor.u32 %v2259, %v2255
        %v2261 = vrot.slane %v2260, 4
        %v2263 = vshll.u32 %v1903, 16
        %v2265 = vrot.slane %v2263, 5
        %v2266 = vsel %vm894, %v2261, %v2265
        %v2268 = vshrl.u32 %v1904, 16
        %v2270 = vrot.slane %v2268, 4
        %v2271 = vshll.u32 %v1904, 16
        %v2273 = vrot.slane %v2271, 5
        %v2274 = vor.u32 %v2270, %v2273
        %v2275 = vrot.slane %v2274, 4
        %v2277 = vshll.u32 %v1905, 16
        %v2279 = vrot.slane %v2277, 5
        %v2280 = vsel %vm894, %v2275, %v2279
        %v2281 = vshrl.u32 %v1905, 16
        %v2283 = vrot.slane %v2281, 4
        %v2284 = vor.u32 %v2283, %v2279
        %v2285 = vrot.slane %v2284, 4
        %v2287 = vshll.u32 %v1906, 16
        %v2289 = vrot.slane %v2287, 5
        %v2290 = vsel %vm894, %v2285, %v2289
        %v2291 = vunpack.c.l.b16 %v1920
        %v2292 = vunpack.c.l.b16 %v1930
        %v2293 = vunpack.c.l.b16 %v1944
        %v2294 = vunpack.c.l.b16 %v1954
        %v2295 = vunpack.c.l.b16 %v1968
        %v2296 = vunpack.c.l.b16 %v1978
        %v2297 = vunpack.c.l.b16 %v1992
        %v2298 = vunpack.c.l.b16 %v2002
        %v2299 = vunpack.c.l.b16 %v2016
        %v2300 = vunpack.c.l.b16 %v2026
        %v2301 = vunpack.c.l.b16 %v2040
        %v2302 = vunpack.c.l.b16 %v2050
        %v2303 = vunpack.c.l.b16 %v2064
        %v2304 = vunpack.c.l.b16 %v2074
        %v2305 = vunpack.c.l.b16 %v2088
        %v2306 = vunpack.c.l.b16 %v2098
        %v2307 = vunpack.c.l.b16 %v2112
        %v2308 = vunpack.c.l.b16 %v2122
        %v2309 = vunpack.c.l.b16 %v2136
        %v2310 = vunpack.c.l.b16 %v2146
        %v2311 = vunpack.c.l.b16 %v2160
        %v2312 = vunpack.c.l.b16 %v2170
        %v2313 = vunpack.c.l.b16 %v2184
        %v2314 = vunpack.c.l.b16 %v2194
        %v2315 = vunpack.c.l.b16 %v2208
        %v2316 = vunpack.c.l.b16 %v2218
        %v2317 = vunpack.c.l.b16 %v2232
        %v2318 = vunpack.c.l.b16 %v2242
        %v2319 = vunpack.c.l.b16 %v2256
        %v2320 = vunpack.c.l.b16 %v2266
        %v2321 = vunpack.c.l.b16 %v2280
        %v2322 = vunpack.c.l.b16 %v2290
        %v2323 = vpack.c.b16 %v2292, %v2291
        %v2324 = vpack.c.b16 %v2294, %v2293
        %v2325 = vpack.c.b16 %v2296, %v2295
        %v2326 = vpack.c.b16 %v2298, %v2297
        %v2327 = vpack.c.b16 %v2300, %v2299
        %v2328 = vpack.c.b16 %v2302, %v2301
        %v2329 = vpack.c.b16 %v2304, %v2303
        %v2330 = vpack.c.b16 %v2306, %v2305
        %v2331 = vpack.c.b16 %v2308, %v2307
        %v2332 = vpack.c.b16 %v2310, %v2309
        %v2333 = vpack.c.b16 %v2312, %v2311
        %v2334 = vpack.c.b16 %v2314, %v2313
        %v2335 = vpack.c.b16 %v2316, %v2315
        %v2336 = vpack.c.b16 %v2318, %v2317
        %v2337 = vpack.c.b16 %v2320, %v2319
        %v2338 = vpack.c.b16 %v2322, %v2321
        %2355 = vst.msk [vmem:[#allocation3 + $0x10] sm:$0xff] %vm827, %v2323
        %2356 = vst.msk [vmem:[#allocation3 + $0x38] sm:$0xff] %vm827, %v2324
        %2357 = vst.msk [vmem:[#allocation3 + $0x60] sm:$0xff] %vm827, %v2325
        %2358 = vst.msk [vmem:[#allocation3 + $0x88] sm:$0xff] %vm827, %v2326
        %2359 = vst.msk [vmem:[#allocation3 + $0xb0] sm:$0xff] %vm827, %v2327
        %2360 = vst.msk [vmem:[#allocation3 + $0xd8] sm:$0xff] %vm827, %v2328
        %2361 = vst.msk [vmem:[#allocation3 + $0x100] sm:$0xff] %vm827, %v2329
        %2362 = vst.msk [vmem:[#allocation3 + $0x128] sm:$0xff] %vm827, %v2330
        %2363 = vst.msk [vmem:[#allocation3 + $0x150] sm:$0xff] %vm827, %v2331
        %2364 = vst.msk [vmem:[#allocation3 + $0x178] sm:$0xff] %vm827, %v2332
        %2365 = vst.msk [vmem:[#allocation3 + $0x1a0] sm:$0xff] %vm827, %v2333
        %2366 = vst.msk [vmem:[#allocation3 + $0x1c8] sm:$0xff] %vm827, %v2334
        %2367 = vst.msk [vmem:[#allocation3 + $0x1f0] sm:$0xff] %vm827, %v2335
        %2368 = vst.msk [vmem:[#allocation3 + $0x218] sm:$0xff] %vm827, %v2336
        %2369 = vst.msk [vmem:[#allocation3 + $0x240] sm:$0xff] %vm827, %v2337
        %2370 = vst.msk [vmem:[#allocation3 + $0x268] sm:$0xff] %vm827, %v2338
        %v2371 = vld [vmem:[%s581] sm:$0xe]
        %v2372 = vld [vmem:[%s581 + $0x4] sm:$0xf]
        %v2373 = vld [vmem:[%s581 + $0x8] sm:$0x1]
        %v2374 = vld [vmem:[%s581 + $0xc] sm:$0xe]
        %v2375 = vld [vmem:[%s581 + $0x10] sm:$0xf]
        %v2376 = vld [vmem:[%s581 + $0x14] sm:$0x1]
        %v2377 = vld [vmem:[%s581 + $0x18] sm:$0xe]
        %v2378 = vld [vmem:[%s581 + $0x1c] sm:$0xf]
        %v2379 = vld [vmem:[%s581 + $0x20] sm:$0x1]
        %v2380 = vld [vmem:[%s581 + $0x24] sm:$0xe]
        %v2381 = vld [vmem:[%s581 + $0x28] sm:$0xf]
        %v2382 = vld [vmem:[%s581 + $0x2c] sm:$0x1]
        %v2383 = vld [vmem:[%s581 + $0x30] sm:$0xe]
        %v2384 = vld [vmem:[%s581 + $0x34] sm:$0xf]
        %v2385 = vld [vmem:[%s581 + $0x38] sm:$0x1]
        %v2386 = vld [vmem:[%s581 + $0x3c] sm:$0xe]
        %v2387 = vld [vmem:[%s581 + $0x40] sm:$0xf]
        %v2388 = vld [vmem:[%s581 + $0x44] sm:$0x1]
        %v2389 = vld [vmem:[%s581 + $0x48] sm:$0xe]
        %v2390 = vld [vmem:[%s581 + $0x4c] sm:$0xf]
        %v2391 = vld [vmem:[%s581 + $0x50] sm:$0x1]
        %v2392 = vld [vmem:[%s581 + $0x54] sm:$0xe]
        %v2393 = vld [vmem:[%s581 + $0x58] sm:$0xf]
        %v2394 = vld [vmem:[%s581 + $0x5c] sm:$0x1]
        %v2395 = vld [vmem:[%s581 + $0x60] sm:$0xe]
        %v2396 = vld [vmem:[%s581 + $0x64] sm:$0xf]
        %v2397 = vld [vmem:[%s581 + $0x68] sm:$0x1]
        %v2398 = vld [vmem:[%s581 + $0x6c] sm:$0xe]
        %v2399 = vld [vmem:[%s581 + $0x70] sm:$0xf]
        %v2400 = vld [vmem:[%s581 + $0x74] sm:$0x1]
        %v2401 = vld [vmem:[%s581 + $0x78] sm:$0xe]
        %v2402 = vld [vmem:[%s581 + $0x7c] sm:$0xf]
        %v2403 = vld [vmem:[%s581 + $0x80] sm:$0x1]
        %v2404 = vld [vmem:[%s581 + $0x84] sm:$0xe]
        %v2405 = vld [vmem:[%s581 + $0x88] sm:$0xf]
        %v2406 = vld [vmem:[%s581 + $0x8c] sm:$0x1]
        %v2407 = vld [vmem:[%s581 + $0x90] sm:$0xe]
        %v2408 = vld [vmem:[%s581 + $0x94] sm:$0xf]
        %v2409 = vld [vmem:[%s581 + $0x98] sm:$0x1]
        %v2410 = vld [vmem:[%s581 + $0x9c] sm:$0xe]
        %v2411 = vld [vmem:[%s581 + $0xa0] sm:$0xf]
        %v2412 = vld [vmem:[%s581 + $0xa4] sm:$0x1]
        %v2413 = vld [vmem:[%s581 + $0xa8] sm:$0xe]
        %v2414 = vld [vmem:[%s581 + $0xac] sm:$0xf]
        %v2415 = vld [vmem:[%s581 + $0xb0] sm:$0x1]
        %v2416 = vld [vmem:[%s581 + $0xb4] sm:$0xe]
        %v2417 = vld [vmem:[%s581 + $0xb8] sm:$0xf]
        %v2418 = vld [vmem:[%s581 + $0xbc] sm:$0x1]
        %v2467 = vrot.slane %v2371, 5
        %v2468 = vrot.slane %v2467, 4
        %v2469 = vrot.slane %v2372, 5
        %v2470 = vsel %vm1490, %v2468, %v2469
        %v2471 = vrot.slane %v2469, 4
        %v2472 = vrot.slane %v2373, 5
        %v2473 = vsel %vm1490, %v2471, %v2472
        %v2474 = vrot.slane %v2374, 5
        %v2475 = vrot.slane %v2474, 4
        %v2476 = vrot.slane %v2375, 5
        %v2477 = vsel %vm1490, %v2475, %v2476
        %v2478 = vrot.slane %v2476, 4
        %v2479 = vrot.slane %v2376, 5
        %v2480 = vsel %vm1490, %v2478, %v2479
        %v2481 = vrot.slane %v2377, 5
        %v2482 = vrot.slane %v2481, 4
        %v2483 = vrot.slane %v2378, 5
        %v2484 = vsel %vm1490, %v2482, %v2483
        %v2485 = vrot.slane %v2483, 4
        %v2486 = vrot.slane %v2379, 5
        %v2487 = vsel %vm1490, %v2485, %v2486
        %v2488 = vrot.slane %v2380, 5
        %v2489 = vrot.slane %v2488, 4
        %v2490 = vrot.slane %v2381, 5
        %v2491 = vsel %vm1490, %v2489, %v2490
        %v2492 = vrot.slane %v2490, 4
        %v2493 = vrot.slane %v2382, 5
        %v2494 = vsel %vm1490, %v2492, %v2493
        %v2495 = vrot.slane %v2383, 5
        %v2496 = vrot.slane %v2495, 4
        %v2497 = vrot.slane %v2384, 5
        %v2498 = vsel %vm1490, %v2496, %v2497
        %v2499 = vrot.slane %v2497, 4
        %v2500 = vrot.slane %v2385, 5
        %v2501 = vsel %vm1490, %v2499, %v2500
        %v2502 = vrot.slane %v2386, 5
        %v2503 = vrot.slane %v2502, 4
        %v2504 = vrot.slane %v2387, 5
        %v2505 = vsel %vm1490, %v2503, %v2504
        %v2506 = vrot.slane %v2504, 4
        %v2507 = vrot.slane %v2388, 5
        %v2508 = vsel %vm1490, %v2506, %v2507
        %v2509 = vrot.slane %v2389, 5
        %v2510 = vrot.slane %v2509, 4
        %v2511 = vrot.slane %v2390, 5
        %v2512 = vsel %vm1490, %v2510, %v2511
        %v2513 = vrot.slane %v2511, 4
        %v2514 = vrot.slane %v2391, 5
        %v2515 = vsel %vm1490, %v2513, %v2514
        %v2516 = vrot.slane %v2392, 5
        %v2517 = vrot.slane %v2516, 4
        %v2518 = vrot.slane %v2393, 5
        %v2519 = vsel %vm1490, %v2517, %v2518
        %v2520 = vrot.slane %v2518, 4
        %v2521 = vrot.slane %v2394, 5
        %v2522 = vsel %vm1490, %v2520, %v2521
        %v2523 = vrot.slane %v2395, 5
        %v2524 = vrot.slane %v2523, 4
        %v2525 = vrot.slane %v2396, 5
        %v2526 = vsel %vm1490, %v2524, %v2525
        %v2527 = vrot.slane %v2525, 4
        %v2528 = vrot.slane %v2397, 5
        %v2529 = vsel %vm1490, %v2527, %v2528
        %v2530 = vrot.slane %v2398, 5
        %v2531 = vrot.slane %v2530, 4
        %v2532 = vrot.slane %v2399, 5
        %v2533 = vsel %vm1490, %v2531, %v2532
        %v2534 = vrot.slane %v2532, 4
        %v2535 = vrot.slane %v2400, 5
        %v2536 = vsel %vm1490, %v2534, %v2535
        %v2537 = vrot.slane %v2401, 5
        %v2538 = vrot.slane %v2537, 4
        %v2539 = vrot.slane %v2402, 5
        %v2540 = vsel %vm1490, %v2538, %v2539
        %v2541 = vrot.slane %v2539, 4
        %v2542 = vrot.slane %v2403, 5
        %v2543 = vsel %vm1490, %v2541, %v2542
        %v2544 = vrot.slane %v2404, 5
        %v2545 = vrot.slane %v2544, 4
        %v2546 = vrot.slane %v2405, 5
        %v2547 = vsel %vm1490, %v2545, %v2546
        %v2548 = vrot.slane %v2546, 4
        %v2549 = vrot.slane %v2406, 5
        %v2550 = vsel %vm1490, %v2548, %v2549
        %v2551 = vrot.slane %v2407, 5
        %v2552 = vrot.slane %v2551, 4
        %v2553 = vrot.slane %v2408, 5
        %v2554 = vsel %vm1490, %v2552, %v2553
        %v2555 = vrot.slane %v2553, 4
        %v2556 = vrot.slane %v2409, 5
        %v2557 = vsel %vm1490, %v2555, %v2556
        %v2558 = vrot.slane %v2410, 5
        %v2559 = vrot.slane %v2558, 4
        %v2560 = vrot.slane %v2411, 5
        %v2561 = vsel %vm1490, %v2559, %v2560
        %v2562 = vrot.slane %v2560, 4
        %v2563 = vrot.slane %v2412, 5
        %v2564 = vsel %vm1490, %v2562, %v2563
        %v2565 = vrot.slane %v2413, 5
        %v2566 = vrot.slane %v2565, 4
        %v2567 = vrot.slane %v2414, 5
        %v2568 = vsel %vm1490, %v2566, %v2567
        %v2569 = vrot.slane %v2567, 4
        %v2570 = vrot.slane %v2415, 5
        %v2571 = vsel %vm1490, %v2569, %v2570
        %v2572 = vrot.slane %v2416, 5
        %v2573 = vrot.slane %v2572, 4
        %v2574 = vrot.slane %v2417, 5
        %v2575 = vsel %vm1490, %v2573, %v2574
        %v2576 = vrot.slane %v2574, 4
        %v2577 = vrot.slane %v2418, 5
        %v2578 = vsel %vm1490, %v2576, %v2577
        %v2579 = vunpack.c.l.b16 %v2470
        %v2580 = vunpack.c.l.b16 %v2473
        %v2581 = vunpack.c.l.b16 %v2477
        %v2582 = vunpack.c.l.b16 %v2480
        %v2583 = vunpack.c.l.b16 %v2484
        %v2584 = vunpack.c.l.b16 %v2487
        %v2585 = vunpack.c.l.b16 %v2491
        %v2586 = vunpack.c.l.b16 %v2494
        %v2587 = vunpack.c.l.b16 %v2498
        %v2588 = vunpack.c.l.b16 %v2501
        %v2589 = vunpack.c.l.b16 %v2505
        %v2590 = vunpack.c.l.b16 %v2508
        %v2591 = vunpack.c.l.b16 %v2512
        %v2592 = vunpack.c.l.b16 %v2515
        %v2593 = vunpack.c.l.b16 %v2519
        %v2594 = vunpack.c.l.b16 %v2522
        %v2595 = vunpack.c.l.b16 %v2526
        %v2596 = vunpack.c.l.b16 %v2529
        %v2597 = vunpack.c.l.b16 %v2533
        %v2598 = vunpack.c.l.b16 %v2536
        %v2599 = vunpack.c.l.b16 %v2540
        %v2600 = vunpack.c.l.b16 %v2543
        %v2601 = vunpack.c.l.b16 %v2547
        %v2602 = vunpack.c.l.b16 %v2550
        %v2603 = vunpack.c.l.b16 %v2554
        %v2604 = vunpack.c.l.b16 %v2557
        %v2605 = vunpack.c.l.b16 %v2561
        %v2606 = vunpack.c.l.b16 %v2564
        %v2607 = vunpack.c.l.b16 %v2568
        %v2608 = vunpack.c.l.b16 %v2571
        %v2609 = vunpack.c.l.b16 %v2575
        %v2610 = vunpack.c.l.b16 %v2578
        %v2611 = vpack.c.b16 %v2580, %v2579
        %v2612 = vpack.c.b16 %v2582, %v2581
        %v2613 = vpack.c.b16 %v2584, %v2583
        %v2614 = vpack.c.b16 %v2586, %v2585
        %v2615 = vpack.c.b16 %v2588, %v2587
        %v2616 = vpack.c.b16 %v2590, %v2589
        %v2617 = vpack.c.b16 %v2592, %v2591
        %v2618 = vpack.c.b16 %v2594, %v2593
        %v2619 = vpack.c.b16 %v2596, %v2595
        %v2620 = vpack.c.b16 %v2598, %v2597
        %v2621 = vpack.c.b16 %v2600, %v2599
        %v2622 = vpack.c.b16 %v2602, %v2601
        %v2623 = vpack.c.b16 %v2604, %v2603
        %v2624 = vpack.c.b16 %v2606, %v2605
        %v2625 = vpack.c.b16 %v2608, %v2607
        %v2626 = vpack.c.b16 %v2610, %v2609
        %2627 = vrot.lane.b32.xlu0 %v2611, 64
        %v2628 = vpop.permute.xlu0 %2627
        %2629 = vrot.lane.b32.xlu0 %v2612, 64
        %v2630 = vpop.permute.xlu0 %2629
        %2631 = vrot.lane.b32.xlu0 %v2613, 64
        %v2632 = vpop.permute.xlu0 %2631
        %2633 = vrot.lane.b32.xlu0 %v2614, 64
        %v2634 = vpop.permute.xlu0 %2633
        %2635 = vrot.lane.b32.xlu0 %v2615, 64
        %v2636 = vpop.permute.xlu0 %2635
        %2637 = vrot.lane.b32.xlu0 %v2616, 64
        %v2638 = vpop.permute.xlu0 %2637
        %2639 = vrot.lane.b32.xlu0 %v2617, 64
        %v2640 = vpop.permute.xlu0 %2639
        %2641 = vrot.lane.b32.xlu0 %v2618, 64
        %v2642 = vpop.permute.xlu0 %2641
        %2643 = vrot.lane.b32.xlu0 %v2619, 64
        %v2644 = vpop.permute.xlu0 %2643
        %2645 = vrot.lane.b32.xlu0 %v2620, 64
        %v2646 = vpop.permute.xlu0 %2645
        %2647 = vrot.lane.b32.xlu0 %v2621, 64
        %v2648 = vpop.permute.xlu0 %2647
        %2649 = vrot.lane.b32.xlu0 %v2622, 64
        %v2650 = vpop.permute.xlu0 %2649
        %2651 = vrot.lane.b32.xlu0 %v2623, 64
        %v2652 = vpop.permute.xlu0 %2651
        %2653 = vrot.lane.b32.xlu0 %v2624, 64
        %v2654 = vpop.permute.xlu0 %2653
        %2655 = vrot.lane.b32.xlu0 %v2625, 64
        %v2656 = vpop.permute.xlu0 %2655
        %2657 = vrot.lane.b32.xlu0 %v2626, 64
        %v2658 = vpop.permute.xlu0 %2657
        %2675 = vst.msk [vmem:[#allocation3 + $0x10] sm:$0xff] %vm1375, %v2628
        %2676 = vst.msk [vmem:[#allocation3 + $0x38] sm:$0xff] %vm1375, %v2630
        %2677 = vst.msk [vmem:[#allocation3 + $0x60] sm:$0xff] %vm1375, %v2632
        %2678 = vst.msk [vmem:[#allocation3 + $0x88] sm:$0xff] %vm1375, %v2634
        %2679 = vst.msk [vmem:[#allocation3 + $0xb0] sm:$0xff] %vm1375, %v2636
        %2680 = vst.msk [vmem:[#allocation3 + $0xd8] sm:$0xff] %vm1375, %v2638
        %2681 = vst.msk [vmem:[#allocation3 + $0x100] sm:$0xff] %vm1375, %v2640
        %2682 = vst.msk [vmem:[#allocation3 + $0x128] sm:$0xff] %vm1375, %v2642
        %2683 = vst.msk [vmem:[#allocation3 + $0x150] sm:$0xff] %vm1375, %v2644
        %2684 = vst.msk [vmem:[#allocation3 + $0x178] sm:$0xff] %vm1375, %v2646
        %2685 = vst.msk [vmem:[#allocation3 + $0x1a0] sm:$0xff] %vm1375, %v2648
        %2686 = vst.msk [vmem:[#allocation3 + $0x1c8] sm:$0xff] %vm1375, %v2650
        %2687 = vst.msk [vmem:[#allocation3 + $0x1f0] sm:$0xff] %vm1375, %v2652
        %2688 = vst.msk [vmem:[#allocation3 + $0x218] sm:$0xff] %vm1375, %v2654
        %2689 = vst.msk [vmem:[#allocation3 + $0x240] sm:$0xff] %vm1375, %v2656
        %2690 = vst.msk [vmem:[#allocation3 + $0x268] sm:$0xff] %vm1375, %v2658
        %s2691 = scalar_lea.vmem [#allocation2], 24
        %v2692 = vld [vmem:[%s2691] sm:$0xf]
        %v2693 = vld [vmem:[%s2691 + $0x4] sm:$0xf]
        %v2694 = vld [vmem:[%s2691 + $0xc] sm:$0xf]
        %v2695 = vld [vmem:[%s2691 + $0x10] sm:$0xf]
        %v2696 = vld [vmem:[%s2691 + $0x18] sm:$0xf]
        %v2697 = vld [vmem:[%s2691 + $0x1c] sm:$0xf]
        %v2698 = vld [vmem:[%s2691 + $0x24] sm:$0xf]
        %v2699 = vld [vmem:[%s2691 + $0x28] sm:$0xf]
        %v2700 = vld [vmem:[%s2691 + $0x30] sm:$0xf]
        %v2701 = vld [vmem:[%s2691 + $0x34] sm:$0xf]
        %v2702 = vld [vmem:[%s2691 + $0x3c] sm:$0xf]
        %v2703 = vld [vmem:[%s2691 + $0x40] sm:$0xf]
        %v2704 = vld [vmem:[%s2691 + $0x48] sm:$0xf]
        %v2705 = vld [vmem:[%s2691 + $0x4c] sm:$0xf]
        %v2706 = vld [vmem:[%s2691 + $0x54] sm:$0xf]
        %v2707 = vld [vmem:[%s2691 + $0x58] sm:$0xf]
        %v2708 = vld [vmem:[%s2691 + $0x60] sm:$0xf]
        %v2709 = vld [vmem:[%s2691 + $0x64] sm:$0xf]
        %v2710 = vld [vmem:[%s2691 + $0x6c] sm:$0xf]
        %v2711 = vld [vmem:[%s2691 + $0x70] sm:$0xf]
        %v2712 = vld [vmem:[%s2691 + $0x78] sm:$0xf]
        %v2713 = vld [vmem:[%s2691 + $0x7c] sm:$0xf]
        %v2714 = vld [vmem:[%s2691 + $0x84] sm:$0xf]
        %v2715 = vld [vmem:[%s2691 + $0x88] sm:$0xf]
        %v2716 = vld [vmem:[%s2691 + $0x90] sm:$0xf]
        %v2717 = vld [vmem:[%s2691 + $0x94] sm:$0xf]
        %v2718 = vld [vmem:[%s2691 + $0x9c] sm:$0xf]
        %v2719 = vld [vmem:[%s2691 + $0xa0] sm:$0xf]
        %v2720 = vld [vmem:[%s2691 + $0xa8] sm:$0xf]
        %v2721 = vld [vmem:[%s2691 + $0xac] sm:$0xf]
        %v2722 = vld [vmem:[%s2691 + $0xb4] sm:$0xf]
        %v2723 = vld [vmem:[%s2691 + $0xb8] sm:$0xf]
        %v2756 = vunpack.c.l.b16 %v2692
        %v2757 = vunpack.c.l.b16 %v2693
        %v2758 = vunpack.c.l.b16 %v2694
        %v2759 = vunpack.c.l.b16 %v2695
        %v2760 = vunpack.c.l.b16 %v2696
        %v2761 = vunpack.c.l.b16 %v2697
        %v2762 = vunpack.c.l.b16 %v2698
        %v2763 = vunpack.c.l.b16 %v2699
        %v2764 = vunpack.c.l.b16 %v2700
        %v2765 = vunpack.c.l.b16 %v2701
        %v2766 = vunpack.c.l.b16 %v2702
        %v2767 = vunpack.c.l.b16 %v2703
        %v2768 = vunpack.c.l.b16 %v2704
        %v2769 = vunpack.c.l.b16 %v2705
        %v2770 = vunpack.c.l.b16 %v2706
        %v2771 = vunpack.c.l.b16 %v2707
        %v2772 = vunpack.c.l.b16 %v2708
        %v2773 = vunpack.c.l.b16 %v2709
        %v2774 = vunpack.c.l.b16 %v2710
        %v2775 = vunpack.c.l.b16 %v2711
        %v2776 = vunpack.c.l.b16 %v2712
        %v2777 = vunpack.c.l.b16 %v2713
        %v2778 = vunpack.c.l.b16 %v2714
        %v2779 = vunpack.c.l.b16 %v2715
        %v2780 = vunpack.c.l.b16 %v2716
        %v2781 = vunpack.c.l.b16 %v2717
        %v2782 = vunpack.c.l.b16 %v2718
        %v2783 = vunpack.c.l.b16 %v2719
        %v2784 = vunpack.c.l.b16 %v2720
        %v2785 = vunpack.c.l.b16 %v2721
        %v2786 = vunpack.c.l.b16 %v2722
        %v2787 = vunpack.c.l.b16 %v2723
        %v2788 = vpack.c.b16 %v2757, %v2756
        %v2789 = vpack.c.b16 %v2759, %v2758
        %v2790 = vpack.c.b16 %v2761, %v2760
        %v2791 = vpack.c.b16 %v2763, %v2762
        %v2792 = vpack.c.b16 %v2765, %v2764
        %v2793 = vpack.c.b16 %v2767, %v2766
        %v2794 = vpack.c.b16 %v2769, %v2768
        %v2795 = vpack.c.b16 %v2771, %v2770
        %v2796 = vpack.c.b16 %v2773, %v2772
        %v2797 = vpack.c.b16 %v2775, %v2774
        %v2798 = vpack.c.b16 %v2777, %v2776
        %v2799 = vpack.c.b16 %v2779, %v2778
        %v2800 = vpack.c.b16 %v2781, %v2780
        %v2801 = vpack.c.b16 %v2783, %v2782
        %v2802 = vpack.c.b16 %v2785, %v2784
        %v2803 = vpack.c.b16 %v2787, %v2786
        %2820 = vst.msk [vmem:[#allocation3 + $0x18] sm:$0xff] %vm827, %v2788
        %2821 = vst.msk [vmem:[#allocation3 + $0x40] sm:$0xff] %vm827, %v2789
        %2822 = vst.msk [vmem:[#allocation3 + $0x68] sm:$0xff] %vm827, %v2790
        %2823 = vst.msk [vmem:[#allocation3 + $0x90] sm:$0xff] %vm827, %v2791
        %2824 = vst.msk [vmem:[#allocation3 + $0xb8] sm:$0xff] %vm827, %v2792
        %2825 = vst.msk [vmem:[#allocation3 + $0xe0] sm:$0xff] %vm827, %v2793
        %2826 = vst.msk [vmem:[#allocation3 + $0x108] sm:$0xff] %vm827, %v2794
        %2827 = vst.msk [vmem:[#allocation3 + $0x130] sm:$0xff] %vm827, %v2795
        %2828 = vst.msk [vmem:[#allocation3 + $0x158] sm:$0xff] %vm827, %v2796
        %2829 = vst.msk [vmem:[#allocation3 + $0x180] sm:$0xff] %vm827, %v2797
        %2830 = vst.msk [vmem:[#allocation3 + $0x1a8] sm:$0xff] %vm827, %v2798
        %2831 = vst.msk [vmem:[#allocation3 + $0x1d0] sm:$0xff] %vm827, %v2799
        %2832 = vst.msk [vmem:[#allocation3 + $0x1f8] sm:$0xff] %vm827, %v2800
        %2833 = vst.msk [vmem:[#allocation3 + $0x220] sm:$0xff] %vm827, %v2801
        %2834 = vst.msk [vmem:[#allocation3 + $0x248] sm:$0xff] %vm827, %v2802
        %2835 = vst.msk [vmem:[#allocation3 + $0x270] sm:$0xff] %vm827, %v2803
        %v2836 = vld [vmem:[%s2691] sm:$0xf]
        %v2837 = vld [vmem:[%s2691 + $0x4] sm:$0xf]
        %v2838 = vld [vmem:[%s2691 + $0x8] sm:$0x1]
        %v2839 = vld [vmem:[%s2691 + $0xc] sm:$0xf]
        %v2840 = vld [vmem:[%s2691 + $0x10] sm:$0xf]
        %v2841 = vld [vmem:[%s2691 + $0x14] sm:$0x1]
        %v2842 = vld [vmem:[%s2691 + $0x18] sm:$0xf]
        %v2843 = vld [vmem:[%s2691 + $0x1c] sm:$0xf]
        %v2844 = vld [vmem:[%s2691 + $0x20] sm:$0x1]
        %v2845 = vld [vmem:[%s2691 + $0x24] sm:$0xf]
        %v2846 = vld [vmem:[%s2691 + $0x28] sm:$0xf]
        %v2847 = vld [vmem:[%s2691 + $0x2c] sm:$0x1]
        %v2848 = vld [vmem:[%s2691 + $0x30] sm:$0xf]
        %v2849 = vld [vmem:[%s2691 + $0x34] sm:$0xf]
        %v2850 = vld [vmem:[%s2691 + $0x38] sm:$0x1]
        %v2851 = vld [vmem:[%s2691 + $0x3c] sm:$0xf]
        %v2852 = vld [vmem:[%s2691 + $0x40] sm:$0xf]
        %v2853 = vld [vmem:[%s2691 + $0x44] sm:$0x1]
        %v2854 = vld [vmem:[%s2691 + $0x48] sm:$0xf]
        %v2855 = vld [vmem:[%s2691 + $0x4c] sm:$0xf]
        %v2856 = vld [vmem:[%s2691 + $0x50] sm:$0x1]
        %v2857 = vld [vmem:[%s2691 + $0x54] sm:$0xf]
        %v2858 = vld [vmem:[%s2691 + $0x58] sm:$0xf]
        %v2859 = vld [vmem:[%s2691 + $0x5c] sm:$0x1]
        %v2860 = vld [vmem:[%s2691 + $0x60] sm:$0xf]
        %v2861 = vld [vmem:[%s2691 + $0x64] sm:$0xf]
        %v2862 = vld [vmem:[%s2691 + $0x68] sm:$0x1]
        %v2863 = vld [vmem:[%s2691 + $0x6c] sm:$0xf]
        %v2864 = vld [vmem:[%s2691 + $0x70] sm:$0xf]
        %v2865 = vld [vmem:[%s2691 + $0x74] sm:$0x1]
        %v2866 = vld [vmem:[%s2691 + $0x78] sm:$0xf]
        %v2867 = vld [vmem:[%s2691 + $0x7c] sm:$0xf]
        %v2868 = vld [vmem:[%s2691 + $0x80] sm:$0x1]
        %v2869 = vld [vmem:[%s2691 + $0x84] sm:$0xf]
        %v2870 = vld [vmem:[%s2691 + $0x88] sm:$0xf]
        %v2871 = vld [vmem:[%s2691 + $0x8c] sm:$0x1]
        %v2872 = vld [vmem:[%s2691 + $0x90] sm:$0xf]
        %v2873 = vld [vmem:[%s2691 + $0x94] sm:$0xf]
        %v2874 = vld [vmem:[%s2691 + $0x98] sm:$0x1]
        %v2875 = vld [vmem:[%s2691 + $0x9c] sm:$0xf]
        %v2876 = vld [vmem:[%s2691 + $0xa0] sm:$0xf]
        %v2877 = vld [vmem:[%s2691 + $0xa4] sm:$0x1]
        %v2878 = vld [vmem:[%s2691 + $0xa8] sm:$0xf]
        %v2879 = vld [vmem:[%s2691 + $0xac] sm:$0xf]
        %v2880 = vld [vmem:[%s2691 + $0xb0] sm:$0x1]
        %v2881 = vld [vmem:[%s2691 + $0xb4] sm:$0xf]
        %v2882 = vld [vmem:[%s2691 + $0xb8] sm:$0xf]
        %v2883 = vld [vmem:[%s2691 + $0xbc] sm:$0x1]
        %v2885 = vshrl.u32 %v2836, 16
        %v2887 = vrot.slane %v2885, 4
        %v2888 = vshll.u32 %v2836, 16
        %v2890 = vrot.slane %v2888, 5
        %v2891 = vor.u32 %v2887, %v2890
        %v2892 = vrot.slane %v2891, 4
        %v2894 = vshll.u32 %v2837, 16
        %v2896 = vrot.slane %v2894, 5
        %v2897 = vsel %vm894, %v2892, %v2896
        %v2898 = vshrl.u32 %v2837, 16
        %v2900 = vrot.slane %v2898, 4
        %v2901 = vor.u32 %v2900, %v2896
        %v2902 = vrot.slane %v2901, 4
        %v2904 = vshll.u32 %v2838, 16
        %v2906 = vrot.slane %v2904, 5
        %v2907 = vsel %vm894, %v2902, %v2906
        %v2909 = vshrl.u32 %v2839, 16
        %v2911 = vrot.slane %v2909, 4
        %v2912 = vshll.u32 %v2839, 16
        %v2914 = vrot.slane %v2912, 5
        %v2915 = vor.u32 %v2911, %v2914
        %v2916 = vrot.slane %v2915, 4
        %v2918 = vshll.u32 %v2840, 16
        %v2920 = vrot.slane %v2918, 5
        %v2921 = vsel %vm894, %v2916, %v2920
        %v2922 = vshrl.u32 %v2840, 16
        %v2924 = vrot.slane %v2922, 4
        %v2925 = vor.u32 %v2924, %v2920
        %v2926 = vrot.slane %v2925, 4
        %v2928 = vshll.u32 %v2841, 16
        %v2930 = vrot.slane %v2928, 5
        %v2931 = vsel %vm894, %v2926, %v2930
        %v2933 = vshrl.u32 %v2842, 16
        %v2935 = vrot.slane %v2933, 4
        %v2936 = vshll.u32 %v2842, 16
        %v2938 = vrot.slane %v2936, 5
        %v2939 = vor.u32 %v2935, %v2938
        %v2940 = vrot.slane %v2939, 4
        %v2942 = vshll.u32 %v2843, 16
        %v2944 = vrot.slane %v2942, 5
        %v2945 = vsel %vm894, %v2940, %v2944
        %v2946 = vshrl.u32 %v2843, 16
        %v2948 = vrot.slane %v2946, 4
        %v2949 = vor.u32 %v2948, %v2944
        %v2950 = vrot.slane %v2949, 4
        %v2952 = vshll.u32 %v2844, 16
        %v2954 = vrot.slane %v2952, 5
        %v2955 = vsel %vm894, %v2950, %v2954
        %v2957 = vshrl.u32 %v2845, 16
        %v2959 = vrot.slane %v2957, 4
        %v2960 = vshll.u32 %v2845, 16
        %v2962 = vrot.slane %v2960, 5
        %v2963 = vor.u32 %v2959, %v2962
        %v2964 = vrot.slane %v2963, 4
        %v2966 = vshll.u32 %v2846, 16
        %v2968 = vrot.slane %v2966, 5
        %v2969 = vsel %vm894, %v2964, %v2968
        %v2970 = vshrl.u32 %v2846, 16
        %v2972 = vrot.slane %v2970, 4
        %v2973 = vor.u32 %v2972, %v2968
        %v2974 = vrot.slane %v2973, 4
        %v2976 = vshll.u32 %v2847, 16
        %v2978 = vrot.slane %v2976, 5
        %v2979 = vsel %vm894, %v2974, %v2978
        %v2981 = vshrl.u32 %v2848, 16
        %v2983 = vrot.slane %v2981, 4
        %v2984 = vshll.u32 %v2848, 16
        %v2986 = vrot.slane %v2984, 5
        %v2987 = vor.u32 %v2983, %v2986
        %v2988 = vrot.slane %v2987, 4
        %v2990 = vshll.u32 %v2849, 16
        %v2992 = vrot.slane %v2990, 5
        %v2993 = vsel %vm894, %v2988, %v2992
        %v2994 = vshrl.u32 %v2849, 16
        %v2996 = vrot.slane %v2994, 4
        %v2997 = vor.u32 %v2996, %v2992
        %v2998 = vrot.slane %v2997, 4
        %v3000 = vshll.u32 %v2850, 16
        %v3002 = vrot.slane %v3000, 5
        %v3003 = vsel %vm894, %v2998, %v3002
        %v3005 = vshrl.u32 %v2851, 16
        %v3007 = vrot.slane %v3005, 4
        %v3008 = vshll.u32 %v2851, 16
        %v3010 = vrot.slane %v3008, 5
        %v3011 = vor.u32 %v3007, %v3010
        %v3012 = vrot.slane %v3011, 4
        %v3014 = vshll.u32 %v2852, 16
        %v3016 = vrot.slane %v3014, 5
        %v3017 = vsel %vm894, %v3012, %v3016
        %v3018 = vshrl.u32 %v2852, 16
        %v3020 = vrot.slane %v3018, 4
        %v3021 = vor.u32 %v3020, %v3016
        %v3022 = vrot.slane %v3021, 4
        %v3024 = vshll.u32 %v2853, 16
        %v3026 = vrot.slane %v3024, 5
        %v3027 = vsel %vm894, %v3022, %v3026
        %v3029 = vshrl.u32 %v2854, 16
        %v3031 = vrot.slane %v3029, 4
        %v3032 = vshll.u32 %v2854, 16
        %v3034 = vrot.slane %v3032, 5
        %v3035 = vor.u32 %v3031, %v3034
        %v3036 = vrot.slane %v3035, 4
        %v3038 = vshll.u32 %v2855, 16
        %v3040 = vrot.slane %v3038, 5
        %v3041 = vsel %vm894, %v3036, %v3040
        %v3042 = vshrl.u32 %v2855, 16
        %v3044 = vrot.slane %v3042, 4
        %v3045 = vor.u32 %v3044, %v3040
        %v3046 = vrot.slane %v3045, 4
        %v3048 = vshll.u32 %v2856, 16
        %v3050 = vrot.slane %v3048, 5
        %v3051 = vsel %vm894, %v3046, %v3050
        %v3053 = vshrl.u32 %v2857, 16
        %v3055 = vrot.slane %v3053, 4
        %v3056 = vshll.u32 %v2857, 16
        %v3058 = vrot.slane %v3056, 5
        %v3059 = vor.u32 %v3055, %v3058
        %v3060 = vrot.slane %v3059, 4
        %v3062 = vshll.u32 %v2858, 16
        %v3064 = vrot.slane %v3062, 5
        %v3065 = vsel %vm894, %v3060, %v3064
        %v3066 = vshrl.u32 %v2858, 16
        %v3068 = vrot.slane %v3066, 4
        %v3069 = vor.u32 %v3068, %v3064
        %v3070 = vrot.slane %v3069, 4
        %v3072 = vshll.u32 %v2859, 16
        %v3074 = vrot.slane %v3072, 5
        %v3075 = vsel %vm894, %v3070, %v3074
        %v3077 = vshrl.u32 %v2860, 16
        %v3079 = vrot.slane %v3077, 4
        %v3080 = vshll.u32 %v2860, 16
        %v3082 = vrot.slane %v3080, 5
        %v3083 = vor.u32 %v3079, %v3082
        %v3084 = vrot.slane %v3083, 4
        %v3086 = vshll.u32 %v2861, 16
        %v3088 = vrot.slane %v3086, 5
        %v3089 = vsel %vm894, %v3084, %v3088
        %v3090 = vshrl.u32 %v2861, 16
        %v3092 = vrot.slane %v3090, 4
        %v3093 = vor.u32 %v3092, %v3088
        %v3094 = vrot.slane %v3093, 4
        %v3096 = vshll.u32 %v2862, 16
        %v3098 = vrot.slane %v3096, 5
        %v3099 = vsel %vm894, %v3094, %v3098
        %v3101 = vshrl.u32 %v2863, 16
        %v3103 = vrot.slane %v3101, 4
        %v3104 = vshll.u32 %v2863, 16
        %v3106 = vrot.slane %v3104, 5
        %v3107 = vor.u32 %v3103, %v3106
        %v3108 = vrot.slane %v3107, 4
        %v3110 = vshll.u32 %v2864, 16
        %v3112 = vrot.slane %v3110, 5
        %v3113 = vsel %vm894, %v3108, %v3112
        %v3114 = vshrl.u32 %v2864, 16
        %v3116 = vrot.slane %v3114, 4
        %v3117 = vor.u32 %v3116, %v3112
        %v3118 = vrot.slane %v3117, 4
        %v3120 = vshll.u32 %v2865, 16
        %v3122 = vrot.slane %v3120, 5
        %v3123 = vsel %vm894, %v3118, %v3122
        %v3125 = vshrl.u32 %v2866, 16
        %v3127 = vrot.slane %v3125, 4
        %v3128 = vshll.u32 %v2866, 16
        %v3130 = vrot.slane %v3128, 5
        %v3131 = vor.u32 %v3127, %v3130
        %v3132 = vrot.slane %v3131, 4
        %v3134 = vshll.u32 %v2867, 16
        %v3136 = vrot.slane %v3134, 5
        %v3137 = vsel %vm894, %v3132, %v3136
        %v3138 = vshrl.u32 %v2867, 16
        %v3140 = vrot.slane %v3138, 4
        %v3141 = vor.u32 %v3140, %v3136
        %v3142 = vrot.slane %v3141, 4
        %v3144 = vshll.u32 %v2868, 16
        %v3146 = vrot.slane %v3144, 5
        %v3147 = vsel %vm894, %v3142, %v3146
        %v3149 = vshrl.u32 %v2869, 16
        %v3151 = vrot.slane %v3149, 4
        %v3152 = vshll.u32 %v2869, 16
        %v3154 = vrot.slane %v3152, 5
        %v3155 = vor.u32 %v3151, %v3154
        %v3156 = vrot.slane %v3155, 4
        %v3158 = vshll.u32 %v2870, 16
        %v3160 = vrot.slane %v3158, 5
        %v3161 = vsel %vm894, %v3156, %v3160
        %v3162 = vshrl.u32 %v2870, 16
        %v3164 = vrot.slane %v3162, 4
        %v3165 = vor.u32 %v3164, %v3160
        %v3166 = vrot.slane %v3165, 4
        %v3168 = vshll.u32 %v2871, 16
        %v3170 = vrot.slane %v3168, 5
        %v3171 = vsel %vm894, %v3166, %v3170
        %v3173 = vshrl.u32 %v2872, 16
        %v3175 = vrot.slane %v3173, 4
        %v3176 = vshll.u32 %v2872, 16
        %v3178 = vrot.slane %v3176, 5
        %v3179 = vor.u32 %v3175, %v3178
        %v3180 = vrot.slane %v3179, 4
        %v3182 = vshll.u32 %v2873, 16
        %v3184 = vrot.slane %v3182, 5
        %v3185 = vsel %vm894, %v3180, %v3184
        %v3186 = vshrl.u32 %v2873, 16
        %v3188 = vrot.slane %v3186, 4
        %v3189 = vor.u32 %v3188, %v3184
        %v3190 = vrot.slane %v3189, 4
        %v3192 = vshll.u32 %v2874, 16
        %v3194 = vrot.slane %v3192, 5
        %v3195 = vsel %vm894, %v3190, %v3194
        %v3197 = vshrl.u32 %v2875, 16
        %v3199 = vrot.slane %v3197, 4
        %v3200 = vshll.u32 %v2875, 16
        %v3202 = vrot.slane %v3200, 5
        %v3203 = vor.u32 %v3199, %v3202
        %v3204 = vrot.slane %v3203, 4
        %v3206 = vshll.u32 %v2876, 16
        %v3208 = vrot.slane %v3206, 5
        %v3209 = vsel %vm894, %v3204, %v3208
        %v3210 = vshrl.u32 %v2876, 16
        %v3212 = vrot.slane %v3210, 4
        %v3213 = vor.u32 %v3212, %v3208
        %v3214 = vrot.slane %v3213, 4
        %v3216 = vshll.u32 %v2877, 16
        %v3218 = vrot.slane %v3216, 5
        %v3219 = vsel %vm894, %v3214, %v3218
        %v3221 = vshrl.u32 %v2878, 16
        %v3223 = vrot.slane %v3221, 4
        %v3224 = vshll.u32 %v2878, 16
        %v3226 = vrot.slane %v3224, 5
        %v3227 = vor.u32 %v3223, %v3226
        %v3228 = vrot.slane %v3227, 4
        %v3230 = vshll.u32 %v2879, 16
        %v3232 = vrot.slane %v3230, 5
        %v3233 = vsel %vm894, %v3228, %v3232
        %v3234 = vshrl.u32 %v2879, 16
        %v3236 = vrot.slane %v3234, 4
        %v3237 = vor.u32 %v3236, %v3232
        %v3238 = vrot.slane %v3237, 4
        %v3240 = vshll.u32 %v2880, 16
        %v3242 = vrot.slane %v3240, 5
        %v3243 = vsel %vm894, %v3238, %v3242
        %v3245 = vshrl.u32 %v2881, 16
        %v3247 = vrot.slane %v3245, 4
        %v3248 = vshll.u32 %v2881, 16
        %v3250 = vrot.slane %v3248, 5
        %v3251 = vor.u32 %v3247, %v3250
        %v3252 = vrot.slane %v3251, 4
        %v3254 = vshll.u32 %v2882, 16
        %v3256 = vrot.slane %v3254, 5
        %v3257 = vsel %vm894, %v3252, %v3256
        %v3258 = vshrl.u32 %v2882, 16
        %v3260 = vrot.slane %v3258, 4
        %v3261 = vor.u32 %v3260, %v3256
        %v3262 = vrot.slane %v3261, 4
        %v3264 = vshll.u32 %v2883, 16
        %v3266 = vrot.slane %v3264, 5
        %v3267 = vsel %vm894, %v3262, %v3266
        %v3268 = vunpack.c.l.b16 %v2897
        %v3269 = vunpack.c.l.b16 %v2907
        %v3270 = vunpack.c.l.b16 %v2921
        %v3271 = vunpack.c.l.b16 %v2931
        %v3272 = vunpack.c.l.b16 %v2945
        %v3273 = vunpack.c.l.b16 %v2955
        %v3274 = vunpack.c.l.b16 %v2969
        %v3275 = vunpack.c.l.b16 %v2979
        %v3276 = vunpack.c.l.b16 %v2993
        %v3277 = vunpack.c.l.b16 %v3003
        %v3278 = vunpack.c.l.b16 %v3017
        %v3279 = vunpack.c.l.b16 %v3027
        %v3280 = vunpack.c.l.b16 %v3041
        %v3281 = vunpack.c.l.b16 %v3051
        %v3282 = vunpack.c.l.b16 %v3065
        %v3283 = vunpack.c.l.b16 %v3075
        %v3284 = vunpack.c.l.b16 %v3089
        %v3285 = vunpack.c.l.b16 %v3099
        %v3286 = vunpack.c.l.b16 %v3113
        %v3287 = vunpack.c.l.b16 %v3123
        %v3288 = vunpack.c.l.b16 %v3137
        %v3289 = vunpack.c.l.b16 %v3147
        %v3290 = vunpack.c.l.b16 %v3161
        %v3291 = vunpack.c.l.b16 %v3171
        %v3292 = vunpack.c.l.b16 %v3185
        %v3293 = vunpack.c.l.b16 %v3195
        %v3294 = vunpack.c.l.b16 %v3209
        %v3295 = vunpack.c.l.b16 %v3219
        %v3296 = vunpack.c.l.b16 %v3233
        %v3297 = vunpack.c.l.b16 %v3243
        %v3298 = vunpack.c.l.b16 %v3257
        %v3299 = vunpack.c.l.b16 %v3267
        %v3300 = vpack.c.b16 %v3269, %v3268
        %v3301 = vpack.c.b16 %v3271, %v3270
        %v3302 = vpack.c.b16 %v3273, %v3272
        %v3303 = vpack.c.b16 %v3275, %v3274
        %v3304 = vpack.c.b16 %v3277, %v3276
        %v3305 = vpack.c.b16 %v3279, %v3278
        %v3306 = vpack.c.b16 %v3281, %v3280
        %v3307 = vpack.c.b16 %v3283, %v3282
        %v3308 = vpack.c.b16 %v3285, %v3284
        %v3309 = vpack.c.b16 %v3287, %v3286
        %v3310 = vpack.c.b16 %v3289, %v3288
        %v3311 = vpack.c.b16 %v3291, %v3290
        %v3312 = vpack.c.b16 %v3293, %v3292
        %v3313 = vpack.c.b16 %v3295, %v3294
        %v3314 = vpack.c.b16 %v3297, %v3296
        %v3315 = vpack.c.b16 %v3299, %v3298
        %3316 = vrot.lane.b32.xlu0 %v3300, 64
        %v3317 = vpop.permute.xlu0 %3316
        %3318 = vrot.lane.b32.xlu0 %v3301, 64
        %v3319 = vpop.permute.xlu0 %3318
        %3320 = vrot.lane.b32.xlu0 %v3302, 64
        %v3321 = vpop.permute.xlu0 %3320
        %3322 = vrot.lane.b32.xlu0 %v3303, 64
        %v3323 = vpop.permute.xlu0 %3322
        %3324 = vrot.lane.b32.xlu0 %v3304, 64
        %v3325 = vpop.permute.xlu0 %3324
        %3326 = vrot.lane.b32.xlu0 %v3305, 64
        %v3327 = vpop.permute.xlu0 %3326
        %3328 = vrot.lane.b32.xlu0 %v3306, 64
        %v3329 = vpop.permute.xlu0 %3328
        %3330 = vrot.lane.b32.xlu0 %v3307, 64
        %v3331 = vpop.permute.xlu0 %3330
        %3332 = vrot.lane.b32.xlu0 %v3308, 64
        %v3333 = vpop.permute.xlu0 %3332
        %3334 = vrot.lane.b32.xlu0 %v3309, 64
        %v3335 = vpop.permute.xlu0 %3334
        %3336 = vrot.lane.b32.xlu0 %v3310, 64
        %v3337 = vpop.permute.xlu0 %3336
        %3338 = vrot.lane.b32.xlu0 %v3311, 64
        %v3339 = vpop.permute.xlu0 %3338
        %3340 = vrot.lane.b32.xlu0 %v3312, 64
        %v3341 = vpop.permute.xlu0 %3340
        %3342 = vrot.lane.b32.xlu0 %v3313, 64
        %v3343 = vpop.permute.xlu0 %3342
        %3344 = vrot.lane.b32.xlu0 %v3314, 64
        %v3345 = vpop.permute.xlu0 %3344
        %3346 = vrot.lane.b32.xlu0 %v3315, 64
        %v3347 = vpop.permute.xlu0 %3346
        %3364 = vst.msk [vmem:[#allocation3 + $0x18] sm:$0xff] %vm1375, %v3317
        %3365 = vst.msk [vmem:[#allocation3 + $0x40] sm:$0xff] %vm1375, %v3319
        %3366 = vst.msk [vmem:[#allocation3 + $0x68] sm:$0xff] %vm1375, %v3321
        %3367 = vst.msk [vmem:[#allocation3 + $0x90] sm:$0xff] %vm1375, %v3323
        %3368 = vst.msk [vmem:[#allocation3 + $0xb8] sm:$0xff] %vm1375, %v3325
        %3369 = vst.msk [vmem:[#allocation3 + $0xe0] sm:$0xff] %vm1375, %v3327
        %3370 = vst.msk [vmem:[#allocation3 + $0x108] sm:$0xff] %vm1375, %v3329
        %3371 = vst.msk [vmem:[#allocation3 + $0x130] sm:$0xff] %vm1375, %v3331
        %3372 = vst.msk [vmem:[#allocation3 + $0x158] sm:$0xff] %vm1375, %v3333
        %3373 = vst.msk [vmem:[#allocation3 + $0x180] sm:$0xff] %vm1375, %v3335
        %3374 = vst.msk [vmem:[#allocation3 + $0x1a8] sm:$0xff] %vm1375, %v3337
        %3375 = vst.msk [vmem:[#allocation3 + $0x1d0] sm:$0xff] %vm1375, %v3339
        %3376 = vst.msk [vmem:[#allocation3 + $0x1f8] sm:$0xff] %vm1375, %v3341
        %3377 = vst.msk [vmem:[#allocation3 + $0x220] sm:$0xff] %vm1375, %v3343
        %3378 = vst.msk [vmem:[#allocation3 + $0x248] sm:$0xff] %vm1375, %v3345
        %3379 = vst.msk [vmem:[#allocation3 + $0x270] sm:$0xff] %vm1375, %v3347
        %v3380 = vld [vmem:[%s2691] sm:$0xe]
        %v3381 = vld [vmem:[%s2691 + $0x4] sm:$0xf]
        %v3382 = vld [vmem:[%s2691 + $0x8] sm:$0x1]
        %v3383 = vld [vmem:[%s2691 + $0xc] sm:$0xe]
        %v3384 = vld [vmem:[%s2691 + $0x10] sm:$0xf]
        %v3385 = vld [vmem:[%s2691 + $0x14] sm:$0x1]
        %v3386 = vld [vmem:[%s2691 + $0x18] sm:$0xe]
        %v3387 = vld [vmem:[%s2691 + $0x1c] sm:$0xf]
        %v3388 = vld [vmem:[%s2691 + $0x20] sm:$0x1]
        %v3389 = vld [vmem:[%s2691 + $0x24] sm:$0xe]
        %v3390 = vld [vmem:[%s2691 + $0x28] sm:$0xf]
        %v3391 = vld [vmem:[%s2691 + $0x2c] sm:$0x1]
        %v3392 = vld [vmem:[%s2691 + $0x30] sm:$0xe]
        %v3393 = vld [vmem:[%s2691 + $0x34] sm:$0xf]
        %v3394 = vld [vmem:[%s2691 + $0x38] sm:$0x1]
        %v3395 = vld [vmem:[%s2691 + $0x3c] sm:$0xe]
        %v3396 = vld [vmem:[%s2691 + $0x40] sm:$0xf]
        %v3397 = vld [vmem:[%s2691 + $0x44] sm:$0x1]
        %v3398 = vld [vmem:[%s2691 + $0x48] sm:$0xe]
        %v3399 = vld [vmem:[%s2691 + $0x4c] sm:$0xf]
        %v3400 = vld [vmem:[%s2691 + $0x50] sm:$0x1]
        %v3401 = vld [vmem:[%s2691 + $0x54] sm:$0xe]
        %v3402 = vld [vmem:[%s2691 + $0x58] sm:$0xf]
        %v3403 = vld [vmem:[%s2691 + $0x5c] sm:$0x1]
        %v3404 = vld [vmem:[%s2691 + $0x60] sm:$0xe]
        %v3405 = vld [vmem:[%s2691 + $0x64] sm:$0xf]
        %v3406 = vld [vmem:[%s2691 + $0x68] sm:$0x1]
        %v3407 = vld [vmem:[%s2691 + $0x6c] sm:$0xe]
        %v3408 = vld [vmem:[%s2691 + $0x70] sm:$0xf]
        %v3409 = vld [vmem:[%s2691 + $0x74] sm:$0x1]
        %v3410 = vld [vmem:[%s2691 + $0x78] sm:$0xe]
        %v3411 = vld [vmem:[%s2691 + $0x7c] sm:$0xf]
        %v3412 = vld [vmem:[%s2691 + $0x80] sm:$0x1]
        %v3413 = vld [vmem:[%s2691 + $0x84] sm:$0xe]
        %v3414 = vld [vmem:[%s2691 + $0x88] sm:$0xf]
        %v3415 = vld [vmem:[%s2691 + $0x8c] sm:$0x1]
        %v3416 = vld [vmem:[%s2691 + $0x90] sm:$0xe]
        %v3417 = vld [vmem:[%s2691 + $0x94] sm:$0xf]
        %v3418 = vld [vmem:[%s2691 + $0x98] sm:$0x1]
        %v3419 = vld [vmem:[%s2691 + $0x9c] sm:$0xe]
        %v3420 = vld [vmem:[%s2691 + $0xa0] sm:$0xf]
        %v3421 = vld [vmem:[%s2691 + $0xa4] sm:$0x1]
        %v3422 = vld [vmem:[%s2691 + $0xa8] sm:$0xe]
        %v3423 = vld [vmem:[%s2691 + $0xac] sm:$0xf]
        %v3424 = vld [vmem:[%s2691 + $0xb0] sm:$0x1]
        %v3425 = vld [vmem:[%s2691 + $0xb4] sm:$0xe]
        %v3426 = vld [vmem:[%s2691 + $0xb8] sm:$0xf]
        %v3427 = vld [vmem:[%s2691 + $0xbc] sm:$0x1]
        %v3476 = vrot.slane %v3380, 5
        %v3477 = vrot.slane %v3476, 4
        %v3478 = vrot.slane %v3381, 5
        %v3479 = vsel %vm1490, %v3477, %v3478
        %v3480 = vrot.slane %v3478, 4
        %v3481 = vrot.slane %v3382, 5
        %v3482 = vsel %vm1490, %v3480, %v3481
        %v3483 = vrot.slane %v3383, 5
        %v3484 = vrot.slane %v3483, 4
        %v3485 = vrot.slane %v3384, 5
        %v3486 = vsel %vm1490, %v3484, %v3485
        %v3487 = vrot.slane %v3485, 4
        %v3488 = vrot.slane %v3385, 5
        %v3489 = vsel %vm1490, %v3487, %v3488
        %v3490 = vrot.slane %v3386, 5
        %v3491 = vrot.slane %v3490, 4
        %v3492 = vrot.slane %v3387, 5
        %v3493 = vsel %vm1490, %v3491, %v3492
        %v3494 = vrot.slane %v3492, 4
        %v3495 = vrot.slane %v3388, 5
        %v3496 = vsel %vm1490, %v3494, %v3495
        %v3497 = vrot.slane %v3389, 5
        %v3498 = vrot.slane %v3497, 4
        %v3499 = vrot.slane %v3390, 5
        %v3500 = vsel %vm1490, %v3498, %v3499
        %v3501 = vrot.slane %v3499, 4
        %v3502 = vrot.slane %v3391, 5
        %v3503 = vsel %vm1490, %v3501, %v3502
        %v3504 = vrot.slane %v3392, 5
        %v3505 = vrot.slane %v3504, 4
        %v3506 = vrot.slane %v3393, 5
        %v3507 = vsel %vm1490, %v3505, %v3506
        %v3508 = vrot.slane %v3506, 4
        %v3509 = vrot.slane %v3394, 5
        %v3510 = vsel %vm1490, %v3508, %v3509
        %v3511 = vrot.slane %v3395, 5
        %v3512 = vrot.slane %v3511, 4
        %v3513 = vrot.slane %v3396, 5
        %v3514 = vsel %vm1490, %v3512, %v3513
        %v3515 = vrot.slane %v3513, 4
        %v3516 = vrot.slane %v3397, 5
        %v3517 = vsel %vm1490, %v3515, %v3516
        %v3518 = vrot.slane %v3398, 5
        %v3519 = vrot.slane %v3518, 4
        %v3520 = vrot.slane %v3399, 5
        %v3521 = vsel %vm1490, %v3519, %v3520
        %v3522 = vrot.slane %v3520, 4
        %v3523 = vrot.slane %v3400, 5
        %v3524 = vsel %vm1490, %v3522, %v3523
        %v3525 = vrot.slane %v3401, 5
        %v3526 = vrot.slane %v3525, 4
        %v3527 = vrot.slane %v3402, 5
        %v3528 = vsel %vm1490, %v3526, %v3527
        %v3529 = vrot.slane %v3527, 4
        %v3530 = vrot.slane %v3403, 5
        %v3531 = vsel %vm1490, %v3529, %v3530
        %v3532 = vrot.slane %v3404, 5
        %v3533 = vrot.slane %v3532, 4
        %v3534 = vrot.slane %v3405, 5
        %v3535 = vsel %vm1490, %v3533, %v3534
        %v3536 = vrot.slane %v3534, 4
        %v3537 = vrot.slane %v3406, 5
        %v3538 = vsel %vm1490, %v3536, %v3537
        %v3539 = vrot.slane %v3407, 5
        %v3540 = vrot.slane %v3539, 4
        %v3541 = vrot.slane %v3408, 5
        %v3542 = vsel %vm1490, %v3540, %v3541
        %v3543 = vrot.slane %v3541, 4
        %v3544 = vrot.slane %v3409, 5
        %v3545 = vsel %vm1490, %v3543, %v3544
        %v3546 = vrot.slane %v3410, 5
        %v3547 = vrot.slane %v3546, 4
        %v3548 = vrot.slane %v3411, 5
        %v3549 = vsel %vm1490, %v3547, %v3548
        %v3550 = vrot.slane %v3548, 4
        %v3551 = vrot.slane %v3412, 5
        %v3552 = vsel %vm1490, %v3550, %v3551
        %v3553 = vrot.slane %v3413, 5
        %v3554 = vrot.slane %v3553, 4
        %v3555 = vrot.slane %v3414, 5
        %v3556 = vsel %vm1490, %v3554, %v3555
        %v3557 = vrot.slane %v3555, 4
        %v3558 = vrot.slane %v3415, 5
        %v3559 = vsel %vm1490, %v3557, %v3558
        %v3560 = vrot.slane %v3416, 5
        %v3561 = vrot.slane %v3560, 4
        %v3562 = vrot.slane %v3417, 5
        %v3563 = vsel %vm1490, %v3561, %v3562
        %v3564 = vrot.slane %v3562, 4
        %v3565 = vrot.slane %v3418, 5
        %v3566 = vsel %vm1490, %v3564, %v3565
        %v3567 = vrot.slane %v3419, 5
        %v3568 = vrot.slane %v3567, 4
        %v3569 = vrot.slane %v3420, 5
        %v3570 = vsel %vm1490, %v3568, %v3569
        %v3571 = vrot.slane %v3569, 4
        %v3572 = vrot.slane %v3421, 5
        %v3573 = vsel %vm1490, %v3571, %v3572
        %v3574 = vrot.slane %v3422, 5
        %v3575 = vrot.slane %v3574, 4
        %v3576 = vrot.slane %v3423, 5
        %v3577 = vsel %vm1490, %v3575, %v3576
        %v3578 = vrot.slane %v3576, 4
        %v3579 = vrot.slane %v3424, 5
        %v3580 = vsel %vm1490, %v3578, %v3579
        %v3581 = vrot.slane %v3425, 5
        %v3582 = vrot.slane %v3581, 4
        %v3583 = vrot.slane %v3426, 5
        %v3584 = vsel %vm1490, %v3582, %v3583
        %v3585 = vrot.slane %v3583, 4
        %v3586 = vrot.slane %v3427, 5
        %v3587 = vsel %vm1490, %v3585, %v3586
        %v3588 = vunpack.c.l.b16 %v3479
        %v3589 = vunpack.c.l.b16 %v3482
        %v3590 = vunpack.c.l.b16 %v3486
        %v3591 = vunpack.c.l.b16 %v3489
        %v3592 = vunpack.c.l.b16 %v3493
        %v3593 = vunpack.c.l.b16 %v3496
        %v3594 = vunpack.c.l.b16 %v3500
        %v3595 = vunpack.c.l.b16 %v3503
        %v3596 = vunpack.c.l.b16 %v3507
        %v3597 = vunpack.c.l.b16 %v3510
        %v3598 = vunpack.c.l.b16 %v3514
        %v3599 = vunpack.c.l.b16 %v3517
        %v3600 = vunpack.c.l.b16 %v3521
        %v3601 = vunpack.c.l.b16 %v3524
        %v3602 = vunpack.c.l.b16 %v3528
        %v3603 = vunpack.c.l.b16 %v3531
        %v3604 = vunpack.c.l.b16 %v3535
        %v3605 = vunpack.c.l.b16 %v3538
        %v3606 = vunpack.c.l.b16 %v3542
        %v3607 = vunpack.c.l.b16 %v3545
        %v3608 = vunpack.c.l.b16 %v3549
        %v3609 = vunpack.c.l.b16 %v3552
        %v3610 = vunpack.c.l.b16 %v3556
        %v3611 = vunpack.c.l.b16 %v3559
        %v3612 = vunpack.c.l.b16 %v3563
        %v3613 = vunpack.c.l.b16 %v3566
        %v3614 = vunpack.c.l.b16 %v3570
        %v3615 = vunpack.c.l.b16 %v3573
        %v3616 = vunpack.c.l.b16 %v3577
        %v3617 = vunpack.c.l.b16 %v3580
        %v3618 = vunpack.c.l.b16 %v3584
        %v3619 = vunpack.c.l.b16 %v3587
        %v3620 = vpack.c.b16 %v3589, %v3588
        %v3621 = vpack.c.b16 %v3591, %v3590
        %v3622 = vpack.c.b16 %v3593, %v3592
        %v3623 = vpack.c.b16 %v3595, %v3594
        %v3624 = vpack.c.b16 %v3597, %v3596
        %v3625 = vpack.c.b16 %v3599, %v3598
        %v3626 = vpack.c.b16 %v3601, %v3600
        %v3627 = vpack.c.b16 %v3603, %v3602
        %v3628 = vpack.c.b16 %v3605, %v3604
        %v3629 = vpack.c.b16 %v3607, %v3606
        %v3630 = vpack.c.b16 %v3609, %v3608
        %v3631 = vpack.c.b16 %v3611, %v3610
        %v3632 = vpack.c.b16 %v3613, %v3612
        %v3633 = vpack.c.b16 %v3615, %v3614
        %v3634 = vpack.c.b16 %v3617, %v3616
        %v3635 = vpack.c.b16 %v3619, %v3618
        %3652 = vst.msk [vmem:[#allocation3 + $0x20] sm:$0xff] %vm827, %v3620
        %3653 = vst.msk [vmem:[#allocation3 + $0x48] sm:$0xff] %vm827, %v3621
        %3654 = vst.msk [vmem:[#allocation3 + $0x70] sm:$0xff] %vm827, %v3622
        %3655 = vst.msk [vmem:[#allocation3 + $0x98] sm:$0xff] %vm827, %v3623
        %3656 = vst.msk [vmem:[#allocation3 + $0xc0] sm:$0xff] %vm827, %v3624
        %3657 = vst.msk [vmem:[#allocation3 + $0xe8] sm:$0xff] %vm827, %v3625
        %3658 = vst.msk [vmem:[#allocation3 + $0x110] sm:$0xff] %vm827, %v3626
        %3659 = vst.msk [vmem:[#allocation3 + $0x138] sm:$0xff] %vm827, %v3627
        %3660 = vst.msk [vmem:[#allocation3 + $0x160] sm:$0xff] %vm827, %v3628
        %3661 = vst.msk [vmem:[#allocation3 + $0x188] sm:$0xff] %vm827, %v3629
        %3662 = vst.msk [vmem:[#allocation3 + $0x1b0] sm:$0xff] %vm827, %v3630
        %3663 = vst.msk [vmem:[#allocation3 + $0x1d8] sm:$0xff] %vm827, %v3631
        %3664 = vst.msk [vmem:[#allocation3 + $0x200] sm:$0xff] %vm827, %v3632
        %3665 = vst.msk [vmem:[#allocation3 + $0x228] sm:$0xff] %vm827, %v3633
        %3666 = vst.msk [vmem:[#allocation3 + $0x250] sm:$0xff] %vm827, %v3634
        %3667 = vst.msk [vmem:[#allocation3 + $0x278] sm:$0xff] %vm827, %v3635
        %v3668 = vld [vmem:[#allocation3] sm:$0xff]
        %v3669 = vld [vmem:[#allocation3 + $0x8] sm:$0xff]
        %v3670 = vld [vmem:[#allocation3 + $0x10] sm:$0xff]
        %v3671 = vld [vmem:[#allocation3 + $0x18] sm:$0xff]
        %v3672 = vld [vmem:[#allocation3 + $0x20] sm:$0xff]
        %v3673 = vld [vmem:[#allocation3 + $0x28] sm:$0xff]
        %v3674 = vld [vmem:[#allocation3 + $0x30] sm:$0xff]
        %v3675 = vld [vmem:[#allocation3 + $0x38] sm:$0xff]
        %v3676 = vld [vmem:[#allocation3 + $0x40] sm:$0xff]
        %v3677 = vld [vmem:[#allocation3 + $0x48] sm:$0xff]
        %v3678 = vld [vmem:[#allocation3 + $0x50] sm:$0xff]
        %v3679 = vld [vmem:[#allocation3 + $0x58] sm:$0xff]
        %v3680 = vld [vmem:[#allocation3 + $0x60] sm:$0xff]
        %v3681 = vld [vmem:[#allocation3 + $0x68] sm:$0xff]
        %v3682 = vld [vmem:[#allocation3 + $0x70] sm:$0xff]
        %v3683 = vld [vmem:[#allocation3 + $0x78] sm:$0xff]
        %v3684 = vld [vmem:[#allocation3 + $0x80] sm:$0xff]
        %v3685 = vld [vmem:[#allocation3 + $0x88] sm:$0xff]
        %v3686 = vld [vmem:[#allocation3 + $0x90] sm:$0xff]
        %v3687 = vld [vmem:[#allocation3 + $0x98] sm:$0xff]
        %v3688 = vld [vmem:[#allocation3 + $0xa0] sm:$0xff]
        %v3689 = vld [vmem:[#allocation3 + $0xa8] sm:$0xff]
        %v3690 = vld [vmem:[#allocation3 + $0xb0] sm:$0xff]
        %v3691 = vld [vmem:[#allocation3 + $0xb8] sm:$0xff]
        %v3692 = vld [vmem:[#allocation3 + $0xc0] sm:$0xff]
        %v3693 = vld [vmem:[#allocation3 + $0xc8] sm:$0xff]
        %v3694 = vld [vmem:[#allocation3 + $0xd0] sm:$0xff]
        %v3695 = vld [vmem:[#allocation3 + $0xd8] sm:$0xff]
        %v3696 = vld [vmem:[#allocation3 + $0xe0] sm:$0xff]
        %v3697 = vld [vmem:[#allocation3 + $0xe8] sm:$0xff]
        %v3698 = vld [vmem:[#allocation3 + $0xf0] sm:$0xff]
        %v3699 = vld [vmem:[#allocation3 + $0xf8] sm:$0xff]
        %v3700 = vld [vmem:[#allocation3 + $0x100] sm:$0xff]
        %v3701 = vld [vmem:[#allocation3 + $0x108] sm:$0xff]
        %v3702 = vld [vmem:[#allocation3 + $0x110] sm:$0xff]
        %v3703 = vld [vmem:[#allocation3 + $0x118] sm:$0xff]
        %v3704 = vld [vmem:[#allocation3 + $0x120] sm:$0xff]
        %v3705 = vld [vmem:[#allocation3 + $0x128] sm:$0xff]
        %v3706 = vld [vmem:[#allocation3 + $0x130] sm:$0xff]
        %v3707 = vld [vmem:[#allocation3 + $0x138] sm:$0xff]
        %v3708 = vld [vmem:[#allocation3 + $0x140] sm:$0xff]
        %v3709 = vld [vmem:[#allocation3 + $0x148] sm:$0xff]
        %v3710 = vld [vmem:[#allocation3 + $0x150] sm:$0xff]
        %v3711 = vld [vmem:[#allocation3 + $0x158] sm:$0xff]
        %v3712 = vld [vmem:[#allocation3 + $0x160] sm:$0xff]
        %v3713 = vld [vmem:[#allocation3 + $0x168] sm:$0xff]
        %v3714 = vld [vmem:[#allocation3 + $0x170] sm:$0xff]
        %v3715 = vld [vmem:[#allocation3 + $0x178] sm:$0xff]
        %v3716 = vld [vmem:[#allocation3 + $0x180] sm:$0xff]
        %v3717 = vld [vmem:[#allocation3 + $0x188] sm:$0xff]
        %v3718 = vld [vmem:[#allocation3 + $0x190] sm:$0xff]
        %v3719 = vld [vmem:[#allocation3 + $0x198] sm:$0xff]
        %v3720 = vld [vmem:[#allocation3 + $0x1a0] sm:$0xff]
        %v3721 = vld [vmem:[#allocation3 + $0x1a8] sm:$0xff]
        %v3722 = vld [vmem:[#allocation3 + $0x1b0] sm:$0xff]
        %v3723 = vld [vmem:[#allocation3 + $0x1b8] sm:$0xff]
        %v3724 = vld [vmem:[#allocation3 + $0x1c0] sm:$0xff]
        %v3725 = vld [vmem:[#allocation3 + $0x1c8] sm:$0xff]
        %v3726 = vld [vmem:[#allocation3 + $0x1d0] sm:$0xff]
        %v3727 = vld [vmem:[#allocation3 + $0x1d8] sm:$0xff]
        %v3728 = vld [vmem:[#allocation3 + $0x1e0] sm:$0xff]
        %v3729 = vld [vmem:[#allocation3 + $0x1e8] sm:$0xff]
        %v3730 = vld [vmem:[#allocation3 + $0x1f0] sm:$0xff]
        %v3731 = vld [vmem:[#allocation3 + $0x1f8] sm:$0xff]
        %v3732 = vld [vmem:[#allocation3 + $0x200] sm:$0xff]
        %v3733 = vld [vmem:[#allocation3 + $0x208] sm:$0xff]
        %v3734 = vld [vmem:[#allocation3 + $0x210] sm:$0xff]
        %v3735 = vld [vmem:[#allocation3 + $0x218] sm:$0xff]
        %v3736 = vld [vmem:[#allocation3 + $0x220] sm:$0xff]
        %v3737 = vld [vmem:[#allocation3 + $0x228] sm:$0xff]
        %v3738 = vld [vmem:[#allocation3 + $0x230] sm:$0xff]
        %v3739 = vld [vmem:[#allocation3 + $0x238] sm:$0xff]
        %v3740 = vld [vmem:[#allocation3 + $0x240] sm:$0xff]
        %v3741 = vld [vmem:[#allocation3 + $0x248] sm:$0xff]
        %v3742 = vld [vmem:[#allocation3 + $0x250] sm:$0xff]
        %v3743 = vld [vmem:[#allocation3 + $0x258] sm:$0xff]
        %v3744 = vld [vmem:[#allocation3 + $0x260] sm:$0xff]
        %v3745 = vld [vmem:[#allocation3 + $0x268] sm:$0xff]
        %v3746 = vld [vmem:[#allocation3 + $0x270] sm:$0xff]
        %v3747 = vld [vmem:[#allocation3 + $0x278] sm:$0xff]
        %v3748 = vld [vmem:[%s1] sm:$0xf]
        %v3749 = vld [vmem:[%s1 + $0x4] sm:$0xf]
        %v3750 = vld [vmem:[%s1 + $0x8] sm:$0xf]
        %v3751 = vld [vmem:[%s1 + $0xc] sm:$0xf]
        %v3752 = vld [vmem:[%s1 + $0x10] sm:$0xf]
        %v3753 = vld [vmem:[%s1 + $0x14] sm:$0xf]
        %v3754 = vld [vmem:[%s1 + $0x18] sm:$0xf]
        %v3755 = vld [vmem:[%s1 + $0x1c] sm:$0xf]
        %v3756 = vld [vmem:[%s1 + $0x20] sm:$0xf]
        %v3757 = vld [vmem:[%s1 + $0x24] sm:$0xf]
        %v3758 = vld [vmem:[%s1 + $0x28] sm:$0xf]
        %v3759 = vld [vmem:[%s1 + $0x2c] sm:$0xf]
        %v3760 = vld [vmem:[%s1 + $0x30] sm:$0xf]
        %v3761 = vld [vmem:[%s1 + $0x34] sm:$0xf]
        %v3762 = vld [vmem:[%s1 + $0x38] sm:$0xf]
        %v3763 = vld [vmem:[%s1 + $0x3c] sm:$0xf]
        %v3764 = vld [vmem:[%s1 + $0x40] sm:$0xf]
        %v3765 = vld [vmem:[%s1 + $0x44] sm:$0xf]
        %v3766 = vld [vmem:[%s1 + $0x48] sm:$0xf]
        %v3767 = vld [vmem:[%s1 + $0x4c] sm:$0xf]
        %v3768 = vld [vmem:[%s1 + $0x50] sm:$0xf]
        %v3769 = vld [vmem:[%s1 + $0x54] sm:$0xf]
        %v3770 = vld [vmem:[%s1 + $0x58] sm:$0xf]
        %v3771 = vld [vmem:[%s1 + $0x5c] sm:$0xf]
        %v3772 = vld [vmem:[%s1 + $0x60] sm:$0xf]
        %v3773 = vld [vmem:[%s1 + $0x64] sm:$0xf]
        %v3774 = vld [vmem:[%s1 + $0x68] sm:$0xf]
        %v3775 = vld [vmem:[%s1 + $0x6c] sm:$0xf]
        %v3776 = vld [vmem:[%s1 + $0x70] sm:$0xf]
        %v3777 = vld [vmem:[%s1 + $0x74] sm:$0xf]
        %v3778 = vld [vmem:[%s1 + $0x78] sm:$0xf]
        %v3779 = vld [vmem:[%s1 + $0x7c] sm:$0xf]
        %v3780 = vld [vmem:[%s1 + $0x80] sm:$0xf]
        %v3781 = vld [vmem:[%s1 + $0x84] sm:$0xf]
        %v3782 = vld [vmem:[%s1 + $0x88] sm:$0xf]
        %v3783 = vld [vmem:[%s1 + $0x8c] sm:$0xf]
        %v3784 = vld [vmem:[%s1 + $0x90] sm:$0xf]
        %v3785 = vld [vmem:[%s1 + $0x94] sm:$0xf]
        %v3786 = vld [vmem:[%s1 + $0x98] sm:$0xf]
        %v3787 = vld [vmem:[%s1 + $0x9c] sm:$0xf]
        %v3788 = vld [vmem:[%s1 + $0xa0] sm:$0xf]
        %v3789 = vld [vmem:[%s1 + $0xa4] sm:$0xf]
        %v3790 = vld [vmem:[%s1 + $0xa8] sm:$0xf]
        %v3791 = vld [vmem:[%s1 + $0xac] sm:$0xf]
        %v3792 = vld [vmem:[%s1 + $0xb0] sm:$0xf]
        %v3793 = vld [vmem:[%s1 + $0xb4] sm:$0xf]
        %v3794 = vld [vmem:[%s1 + $0xb8] sm:$0xf]
        %v3795 = vld [vmem:[%s1 + $0xbc] sm:$0xf]
        %v3796 = vld [vmem:[%s1 + $0xc0] sm:$0xf]
        %v3797 = vld [vmem:[%s1 + $0xc4] sm:$0xf]
        %v3798 = vld [vmem:[%s1 + $0xc8] sm:$0xf]
        %v3799 = vld [vmem:[%s1 + $0xcc] sm:$0xf]
        %v3800 = vld [vmem:[%s1 + $0xd0] sm:$0xf]
        %v3801 = vld [vmem:[%s1 + $0xd4] sm:$0xf]
        %v3802 = vld [vmem:[%s1 + $0xd8] sm:$0xf]
        %v3803 = vld [vmem:[%s1 + $0xdc] sm:$0xf]
        %v3804 = vld [vmem:[%s1 + $0xe0] sm:$0xf]
        %v3805 = vld [vmem:[%s1 + $0xe4] sm:$0xf]
        %v3806 = vld [vmem:[%s1 + $0xe8] sm:$0xf]
        %v3807 = vld [vmem:[%s1 + $0xec] sm:$0xf]
        %v3808 = vld [vmem:[%s1 + $0xf0] sm:$0xf]
        %v3809 = vld [vmem:[%s1 + $0xf4] sm:$0xf]
        %v3810 = vld [vmem:[%s1 + $0xf8] sm:$0xf]
        %v3811 = vld [vmem:[%s1 + $0xfc] sm:$0xf]
        %v3812 = vld [vmem:[%s1 + $0x100] sm:$0xf]
        %v3813 = vld [vmem:[%s1 + $0x104] sm:$0xf]
        %v3814 = vld [vmem:[%s1 + $0x108] sm:$0xf]
        %v3815 = vld [vmem:[%s1 + $0x10c] sm:$0xf]
        %v3816 = vld [vmem:[%s1 + $0x110] sm:$0xf]
        %v3817 = vld [vmem:[%s1 + $0x114] sm:$0xf]
        %v3818 = vld [vmem:[%s1 + $0x118] sm:$0xf]
        %v3819 = vld [vmem:[%s1 + $0x11c] sm:$0xf]
        %v3820 = vld [vmem:[%s2] sm:$0x1]
        %v3822 = vlaneseq
        %v3823 = vshrl.u32 %v3822, 7
        %v3824 = vsub.s32 0, %v3823
        %v3825 = vrot.slane %v3820, %v3824
        %v3899 = vunpack.c.l.b16 %v3748
        %v3900 = vunpack.c.l.b16 %v3749
        %v3901 = vunpack.c.l.b16 %v3750
        %v3902 = vunpack.c.l.b16 %v3751
        %v3903 = vunpack.c.l.b16 %v3752
        %v3904 = vunpack.c.l.b16 %v3753
        %v3905 = vunpack.c.l.b16 %v3754
        %v3906 = vunpack.c.l.b16 %v3755
        %v3907 = vunpack.c.l.b16 %v3756
        %v3908 = vunpack.c.l.b16 %v3757
        %v3909 = vunpack.c.l.b16 %v3758
        %v3910 = vunpack.c.l.b16 %v3759
        %v3911 = vunpack.c.l.b16 %v3760
        %v3912 = vunpack.c.l.b16 %v3761
        %v3913 = vunpack.c.l.b16 %v3762
        %v3914 = vunpack.c.l.b16 %v3763
        %v3915 = vunpack.c.l.b16 %v3764
        %v3916 = vunpack.c.l.b16 %v3765
        %v3917 = vunpack.c.l.b16 %v3766
        %v3918 = vunpack.c.l.b16 %v3767
        %v3919 = vunpack.c.l.b16 %v3768
        %v3920 = vunpack.c.l.b16 %v3769
        %v3921 = vunpack.c.l.b16 %v3770
        %v3922 = vunpack.c.l.b16 %v3771
        %v3923 = vunpack.c.l.b16 %v3772
        %v3924 = vunpack.c.l.b16 %v3773
        %v3925 = vunpack.c.l.b16 %v3774
        %v3926 = vunpack.c.l.b16 %v3775
        %v3927 = vunpack.c.l.b16 %v3776
        %v3928 = vunpack.c.l.b16 %v3777
        %v3929 = vunpack.c.l.b16 %v3778
        %v3930 = vunpack.c.l.b16 %v3779
        %v3931 = vunpack.c.l.b16 %v3780
        %v3932 = vunpack.c.l.b16 %v3781
        %v3933 = vunpack.c.l.b16 %v3782
        %v3934 = vunpack.c.l.b16 %v3783
        %v3935 = vunpack.c.l.b16 %v3784
        %v3936 = vunpack.c.l.b16 %v3785
        %v3937 = vunpack.c.l.b16 %v3786
        %v3938 = vunpack.c.l.b16 %v3787
        %v3939 = vunpack.c.l.b16 %v3788
        %v3940 = vunpack.c.l.b16 %v3789
        %v3941 = vunpack.c.l.b16 %v3790
        %v3942 = vunpack.c.l.b16 %v3791
        %v3943 = vunpack.c.l.b16 %v3792
        %v3944 = vunpack.c.l.b16 %v3793
        %v3945 = vunpack.c.l.b16 %v3794
        %v3946 = vunpack.c.l.b16 %v3795
        %v3947 = vunpack.c.l.b16 %v3796
        %v3948 = vunpack.c.l.b16 %v3797
        %v3949 = vunpack.c.l.b16 %v3798
        %v3950 = vunpack.c.l.b16 %v3799
        %v3951 = vunpack.c.l.b16 %v3800
        %v3952 = vunpack.c.l.b16 %v3801
        %v3953 = vunpack.c.l.b16 %v3802
        %v3954 = vunpack.c.l.b16 %v3803
        %v3955 = vunpack.c.l.b16 %v3804
        %v3956 = vunpack.c.l.b16 %v3805
        %v3957 = vunpack.c.l.b16 %v3806
        %v3958 = vunpack.c.l.b16 %v3807
        %v3959 = vunpack.c.l.b16 %v3808
        %v3960 = vunpack.c.l.b16 %v3809
        %v3961 = vunpack.c.l.b16 %v3810
        %v3962 = vunpack.c.l.b16 %v3811
        %v3963 = vunpack.c.l.b16 %v3812
        %v3964 = vunpack.c.l.b16 %v3813
        %v3965 = vunpack.c.l.b16 %v3814
        %v3966 = vunpack.c.l.b16 %v3815
        %v3967 = vunpack.c.l.b16 %v3816
        %v3968 = vunpack.c.l.b16 %v3817
        %v3969 = vunpack.c.l.b16 %v3818
        %v3970 = vunpack.c.l.b16 %v3819
        %v3971 = vpack.c.b16 %v3900, %v3899
        %v3972 = vpack.c.b16 %v3902, %v3901
        %v3973 = vpack.c.b16 %v3904, %v3903
        %v3974 = vpack.c.b16 %v3906, %v3905
        %v3975 = vpack.c.b16 %v3908, %v3907
        %v3976 = vpack.c.b16 %v3910, %v3909
        %v3977 = vpack.c.b16 %v3912, %v3911
        %v3978 = vpack.c.b16 %v3914, %v3913
        %v3979 = vpack.c.b16 %v3916, %v3915
        %v3980 = vpack.c.b16 %v3918, %v3917
        %v3981 = vpack.c.b16 %v3920, %v3919
        %v3982 = vpack.c.b16 %v3922, %v3921
        %v3983 = vpack.c.b16 %v3924, %v3923
        %v3984 = vpack.c.b16 %v3926, %v3925
        %v3985 = vpack.c.b16 %v3928, %v3927
        %v3986 = vpack.c.b16 %v3930, %v3929
        %v3987 = vpack.c.b16 %v3932, %v3931
        %v3988 = vpack.c.b16 %v3934, %v3933
        %v3989 = vpack.c.b16 %v3936, %v3935
        %v3990 = vpack.c.b16 %v3938, %v3937
        %v3991 = vpack.c.b16 %v3940, %v3939
        %v3992 = vpack.c.b16 %v3942, %v3941
        %v3993 = vpack.c.b16 %v3944, %v3943
        %v3994 = vpack.c.b16 %v3946, %v3945
        %v3995 = vpack.c.b16 %v3948, %v3947
        %v3996 = vpack.c.b16 %v3950, %v3949
        %v3997 = vpack.c.b16 %v3952, %v3951
        %v3998 = vpack.c.b16 %v3954, %v3953
        %v3999 = vpack.c.b16 %v3956, %v3955
        %v4000 = vpack.c.b16 %v3958, %v3957
        %v4001 = vpack.c.b16 %v3960, %v3959
        %v4002 = vpack.c.b16 %v3962, %v3961
        %v4003 = vpack.c.b16 %v3964, %v3963
        %v4004 = vpack.c.b16 %v3966, %v3965
        %v4005 = vpack.c.b16 %v3968, %v3967
        %v4006 = vpack.c.b16 %v3970, %v3969
        %v4044 = vsel %vm827, %v3672, 0
        %v4047 = vsel %vm827, %v3677, 0
        %v4050 = vsel %vm827, %v3682, 0
        %v4053 = vsel %vm827, %v3687, 0
        %v4056 = vsel %vm827, %v3692, 0
        %v4059 = vsel %vm827, %v3697, 0
        %v4062 = vsel %vm827, %v3702, 0
        %v4065 = vsel %vm827, %v3707, 0
        %v4068 = vsel %vm827, %v3712, 0
        %v4071 = vsel %vm827, %v3717, 0
        %v4074 = vsel %vm827, %v3722, 0
        %v4077 = vsel %vm827, %v3727, 0
        %v4080 = vsel %vm827, %v3732, 0
        %v4083 = vsel %vm827, %v3737, 0
        %v4086 = vsel %vm827, %v3742, 0
        %v4089 = vsel %vm827, %v3747, 0
        %4091 = vmatprep.subr.bf16.mxu0 0
        %4092 = vmatpush1.bf16.msra.mxu0 %v3971
        %4093 = vmatprep.subr.bf16.mxu0 0
        %4094 = vmatpush1.bf16.msra.mxu0 %v3972
        %4095 = vmatprep.subr.bf16.mxu0 0
        %4096 = vmatpush1.bf16.msra.mxu0 %v3973
        %4097 = vmatprep.subr.bf16.mxu0 0
        %4098 = vmatpush1.bf16.msra.mxu0 %v3974
        %4099 = vmatprep.subr.bf16.mxu0 0
        %4100 = vmatpush1.bf16.msra.mxu0 %v3975
        %4101 = vmatprep.subr.bf16.mxu0 0
        %4102 = vmatpush1.bf16.msra.mxu0 %v3976
        %4103 = vmatprep.subr.bf16.mxu0 0
        %4104 = vmatpush1.bf16.msra.mxu0 %v3977
        %4105 = vmatprep.subr.bf16.mxu0 0
        %4106 = vmatpush1.bf16.msra.mxu0 %v3978
        %4107 = vmatprep.subr.bf16.mxu0 0
        %4108 = vmatpush1.bf16.msra.mxu0 %v3979
        %4109 = vmatprep.subr.bf16.mxu0 0
        %4110 = vmatpush1.bf16.msra.mxu0 %v3980
        %4111 = vmatprep.subr.bf16.mxu0 0
        %4112 = vmatpush1.bf16.msra.mxu0 %v3981
        %4113 = vmatprep.subr.bf16.mxu0 0
        %4114 = vmatpush1.bf16.msra.mxu0 %v3982
        %4115 = vmatprep.subr.bf16.mxu0 0
        %4116 = vmatpush1.bf16.msra.mxu0 %v3983
        %4117 = vmatprep.subr.bf16.mxu0 0
        %4118 = vmatpush1.bf16.msra.mxu0 %v3984
        %4119 = vmatprep.subr.bf16.mxu0 0
        %4120 = vmatpush1.bf16.msra.mxu0 %v3985
        %4121 = vmatprep.subr.bf16.mxu0 0
        %4122 = vmatpush1.bf16.msra.mxu0 %v3986
        %4123 = vmatprep.mubr.bf16.mxu0 %v3669
        %4124 = vmatmul.mubr.bf16.gmra.mrb[0].mxu0 %v3668
        %v4125 = vpop.f32.mrb[0].mxu0
        %v4126 = vadd.f32 %v3825, %v4125
        %v4127 = vpop.f32.mrb[0].mxu0
        %v4128 = vpop.f32.mrb[0].mxu0
        %v4129 = vadd.f32 %v3825, %v4128
        %v4130 = vpop.f32.mrb[0].mxu0
        %4131 = vmatprep.mubr.bf16.mxu0 %v3674
        %4132 = vmatmul.mubr.bf16.gmra.mrb[0].mxu0 %v3673
        %v4133 = vpop.f32.mrb[0].mxu0
        %v4134 = vadd.f32 %v3825, %v4133
        %v4135 = vpop.f32.mrb[0].mxu0
        %v4136 = vpop.f32.mrb[0].mxu0
        %v4137 = vadd.f32 %v3825, %v4136
        %v4138 = vpop.f32.mrb[0].mxu0
        %4139 = vmatprep.mubr.bf16.mxu0 %v3679
        %4140 = vmatmul.mubr.bf16.gmra.mrb[0].mxu0 %v3678
        %v4141 = vpop.f32.mrb[0].mxu0
        %v4142 = vadd.f32 %v3825, %v4141
        %v4143 = vpop.f32.mrb[0].mxu0
        %v4144 = vpop.f32.mrb[0].mxu0
        %v4145 = vadd.f32 %v3825, %v4144
        %v4146 = vpop.f32.mrb[0].mxu0
        %4147 = vmatprep.mubr.bf16.mxu0 %v3684
        %4148 = vmatmul.mubr.bf16.gmra.mrb[0].mxu0 %v3683
        %v4149 = vpop.f32.mrb[0].mxu0
        %v4150 = vadd.f32 %v3825, %v4149
        %v4151 = vpop.f32.mrb[0].mxu0
        %v4152 = vpop.f32.mrb[0].mxu0
        %v4153 = vadd.f32 %v3825, %v4152
        %v4154 = vpop.f32.mrb[0].mxu0
        %4155 = vmatprep.mubr.bf16.mxu0 %v3689
        %4156 = vmatmul.mubr.bf16.gmra.mrb[0].mxu0 %v3688
        %v4157 = vpop.f32.mrb[0].mxu0
        %v4158 = vadd.f32 %v3825, %v4157
        %v4159 = vpop.f32.mrb[0].mxu0
        %v4160 = vpop.f32.mrb[0].mxu0
        %v4161 = vadd.f32 %v3825, %v4160
        %v4162 = vpop.f32.mrb[0].mxu0
        %4163 = vmatprep.mubr.bf16.mxu0 %v3694
        %4164 = vmatmul.mubr.bf16.gmra.mrb[0].mxu0 %v3693
        %v4165 = vpop.f32.mrb[0].mxu0
        %v4166 = vadd.f32 %v3825, %v4165
        %v4167 = vpop.f32.mrb[0].mxu0
        %v4168 = vpop.f32.mrb[0].mxu0
        %v4169 = vadd.f32 %v3825, %v4168
        %v4170 = vpop.f32.mrb[0].mxu0
        %4171 = vmatprep.mubr.bf16.mxu0 %v3699
        %4172 = vmatmul.mubr.bf16.gmra.mrb[0].mxu0 %v3698
        %v4173 = vpop.f32.mrb[0].mxu0
        %v4174 = vadd.f32 %v3825, %v4173
        %v4175 = vpop.f32.mrb[0].mxu0
        %v4176 = vpop.f32.mrb[0].mxu0
        %v4177 = vadd.f32 %v3825, %v4176
        %v4178 = vpop.f32.mrb[0].mxu0
        %4179 = vmatprep.mubr.bf16.mxu0 %v3704
        %4180 = vmatmul.mubr.bf16.gmra.mrb[0].mxu0 %v3703
        %v4181 = vpop.f32.mrb[0].mxu0
        %v4182 = vadd.f32 %v3825, %v4181
        %v4183 = vpop.f32.mrb[0].mxu0
        %v4184 = vpop.f32.mrb[0].mxu0
        %v4185 = vadd.f32 %v3825, %v4184
        %v4186 = vpop.f32.mrb[0].mxu0
        %4187 = vmatprep.mubr.bf16.mxu0 %v3709
        %4188 = vmatmul.mubr.bf16.gmra.mrb[0].mxu0 %v3708
        %v4189 = vpop.f32.mrb[0].mxu0
        %v4190 = vadd.f32 %v3825, %v4189
        %v4191 = vpop.f32.mrb[0].mxu0
        %v4192 = vpop.f32.mrb[0].mxu0
        %v4193 = vadd.f32 %v3825, %v4192
        %v4194 = vpop.f32.mrb[0].mxu0
        %4195 = vmatprep.mubr.bf16.mxu0 %v3714
        %4196 = vmatmul.mubr.bf16.gmra.mrb[0].mxu0 %v3713
        %v4197 = vpop.f32.mrb[0].mxu0
        %v4198 = vadd.f32 %v3825, %v4197
        %v4199 = vpop.f32.mrb[0].mxu0
        %v4200 = vpop.f32.mrb[0].mxu0
        %v4201 = vadd.f32 %v3825, %v4200
        %v4202 = vpop.f32.mrb[0].mxu0
        %4203 = vmatprep.mubr.bf16.mxu0 %v3719
        %4204 = vmatmul.mubr.bf16.gmra.mrb[0].mxu0 %v3718
        %v4205 = vpop.f32.mrb[0].mxu0
        %v4206 = vadd.f32 %v3825, %v4205
        %v4207 = vpop.f32.mrb[0].mxu0
        %v4208 = vpop.f32.mrb[0].mxu0
        %v4209 = vadd.f32 %v3825, %v4208
        %v4210 = vpop.f32.mrb[0].mxu0
        %4211 = vmatprep.mubr.bf16.mxu0 %v3724
        %4212 = vmatmul.mubr.bf16.gmra.mrb[0].mxu0 %v3723
        %v4213 = vpop.f32.mrb[0].mxu0
        %v4214 = vadd.f32 %v3825, %v4213
        %v4215 = vpop.f32.mrb[0].mxu0
        %v4216 = vpop.f32.mrb[0].mxu0
        %v4217 = vadd.f32 %v3825, %v4216
        %v4218 = vpop.f32.mrb[0].mxu0
        %4219 = vmatprep.mubr.bf16.mxu0 %v3729
        %4220 = vmatmul.mubr.bf16.gmra.mrb[0].mxu0 %v3728
        %v4221 = vpop.f32.mrb[0].mxu0
        %v4222 = vadd.f32 %v3825, %v4221
        %v4223 = vpop.f32.mrb[0].mxu0
        %v4224 = vpop.f32.mrb[0].mxu0
        %v4225 = vadd.f32 %v3825, %v4224
        %v4226 = vpop.f32.mrb[0].mxu0
        %4227 = vmatprep.mubr.bf16.mxu0 %v3734
        %4228 = vmatmul.mubr.bf16.gmra.mrb[0].mxu0 %v3733
        %v4229 = vpop.f32.mrb[0].mxu0
        %v4230 = vadd.f32 %v3825, %v4229
        %v4231 = vpop.f32.mrb[0].mxu0
        %v4232 = vpop.f32.mrb[0].mxu0
        %v4233 = vadd.f32 %v3825, %v4232
        %v4234 = vpop.f32.mrb[0].mxu0
        %4235 = vmatprep.mubr.bf16.mxu0 %v3739
        %4236 = vmatmul.mubr.bf16.gmra.mrb[0].mxu0 %v3738
        %v4237 = vpop.f32.mrb[0].mxu0
        %v4238 = vadd.f32 %v3825, %v4237
        %v4239 = vpop.f32.mrb[0].mxu0
        %v4240 = vpop.f32.mrb[0].mxu0
        %v4241 = vadd.f32 %v3825, %v4240
        %v4242 = vpop.f32.mrb[0].mxu0
        %4243 = vmatprep.mubr.bf16.mxu0 %v3744
        %4244 = vmatmul.mubr.bf16.gmra.mrb[0].mxu0 %v3743
        %v4245 = vpop.f32.mrb[0].mxu0
        %v4246 = vadd.f32 %v3825, %v4245
        %v4247 = vpop.f32.mrb[0].mxu0
        %v4248 = vpop.f32.mrb[0].mxu0
        %v4249 = vadd.f32 %v3825, %v4248
        %v4250 = vpop.f32.mrb[0].mxu0
        %4251 = vdwg.mxu0
        %4252 = vmatprep.subr.bf16.mxu0 0
        %4253 = vmatpush1.bf16.msra.mxu0 %v3987
        %4254 = vmatprep.subr.bf16.mxu0 0
        %4255 = vmatpush1.bf16.msra.mxu0 %v3988
        %4256 = vmatprep.subr.bf16.mxu0 0
        %4257 = vmatpush1.bf16.msra.mxu0 %v3989
        %4258 = vmatprep.subr.bf16.mxu0 0
        %4259 = vmatpush1.bf16.msra.mxu0 %v3990
        %4260 = vmatprep.subr.bf16.mxu0 0
        %4261 = vmatpush1.bf16.msra.mxu0 %v3991
        %4262 = vmatprep.subr.bf16.mxu0 0
        %4263 = vmatpush1.bf16.msra.mxu0 %v3992
        %4264 = vmatprep.subr.bf16.mxu0 0
        %4265 = vmatpush1.bf16.msra.mxu0 %v3993
        %4266 = vmatprep.subr.bf16.mxu0 0
        %4267 = vmatpush1.bf16.msra.mxu0 %v3994
        %4268 = vmatprep.subr.bf16.mxu0 0
        %4269 = vmatpush1.bf16.msra.mxu0 %v3995
        %4270 = vmatprep.subr.bf16.mxu0 0
        %4271 = vmatpush1.bf16.msra.mxu0 %v3996
        %4272 = vmatprep.subr.bf16.mxu0 0
        %4273 = vmatpush1.bf16.msra.mxu0 %v3997
        %4274 = vmatprep.subr.bf16.mxu0 0
        %4275 = vmatpush1.bf16.msra.mxu0 %v3998
        %4276 = vmatprep.subr.bf16.mxu0 0
        %4277 = vmatpush1.bf16.msra.mxu0 %v3999
        %4278 = vmatprep.subr.bf16.mxu0 0
        %4279 = vmatpush1.bf16.msra.mxu0 %v4000
        %4280 = vmatprep.subr.bf16.mxu0 0
        %4281 = vmatpush1.bf16.msra.mxu0 %v4001
        %4282 = vmatprep.subr.bf16.mxu0 0
        %4283 = vmatpush1.bf16.msra.mxu0 %v4002
        %4284 = vmatprep.mubr.bf16.mxu0 %v3671
        %4285 = vmatmul.mubr.bf16.gmra.mrb[0].mxu0 %v3670
        %v4286 = vpop.f32.mrb[0].mxu0
        %v4287 = vadd.f32 %v4126, %v4286
        %v4288 = vpop.f32.mrb[0].mxu0
        %v4289 = vpop.f32.mrb[0].mxu0
        %v4290 = vadd.f32 %v4129, %v4289
        %v4291 = vpop.f32.mrb[0].mxu0
        %4292 = vmatprep.mubr.bf16.mxu0 %v3676
        %4293 = vmatmul.mubr.bf16.gmra.mrb[0].mxu0 %v3675
        %v4294 = vpop.f32.mrb[0].mxu0
        %v4295 = vadd.f32 %v4134, %v4294
        %v4296 = vpop.f32.mrb[0].mxu0
        %v4297 = vpop.f32.mrb[0].mxu0
        %v4298 = vadd.f32 %v4137, %v4297
        %v4299 = vpop.f32.mrb[0].mxu0
        %4300 = vmatprep.mubr.bf16.mxu0 %v3681
        %4301 = vmatmul.mubr.bf16.gmra.mrb[0].mxu0 %v3680
        %v4302 = vpop.f32.mrb[0].mxu0
        %v4303 = vadd.f32 %v4142, %v4302
        %v4304 = vpop.f32.mrb[0].mxu0
        %v4305 = vpop.f32.mrb[0].mxu0
        %v4306 = vadd.f32 %v4145, %v4305
        %v4307 = vpop.f32.mrb[0].mxu0
        %4308 = vmatprep.mubr.bf16.mxu0 %v3686
        %4309 = vmatmul.mubr.bf16.gmra.mrb[0].mxu0 %v3685
        %v4310 = vpop.f32.mrb[0].mxu0
        %v4311 = vadd.f32 %v4150, %v4310
        %v4312 = vpop.f32.mrb[0].mxu0
        %v4313 = vpop.f32.mrb[0].mxu0
        %v4314 = vadd.f32 %v4153, %v4313
        %v4315 = vpop.f32.mrb[0].mxu0
        %4316 = vmatprep.mubr.bf16.mxu0 %v3691
        %4317 = vmatmul.mubr.bf16.gmra.mrb[0].mxu0 %v3690
        %v4318 = vpop.f32.mrb[0].mxu0
        %v4319 = vadd.f32 %v4158, %v4318
        %v4320 = vpop.f32.mrb[0].mxu0
        %v4321 = vpop.f32.mrb[0].mxu0
        %v4322 = vadd.f32 %v4161, %v4321
        %v4323 = vpop.f32.mrb[0].mxu0
        %4324 = vmatprep.mubr.bf16.mxu0 %v3696
        %4325 = vmatmul.mubr.bf16.gmra.mrb[0].mxu0 %v3695
        %v4326 = vpop.f32.mrb[0].mxu0
        %v4327 = vadd.f32 %v4166, %v4326
        %v4328 = vpop.f32.mrb[0].mxu0
        %v4329 = vpop.f32.mrb[0].mxu0
        %v4330 = vadd.f32 %v4169, %v4329
        %v4331 = vpop.f32.mrb[0].mxu0
        %4332 = vmatprep.mubr.bf16.mxu0 %v3701
        %4333 = vmatmul.mubr.bf16.gmra.mrb[0].mxu0 %v3700
        %v4334 = vpop.f32.mrb[0].mxu0
        %v4335 = vadd.f32 %v4174, %v4334
        %v4336 = vpop.f32.mrb[0].mxu0
        %v4337 = vpop.f32.mrb[0].mxu0
        %v4338 = vadd.f32 %v4177, %v4337
        %v4339 = vpop.f32.mrb[0].mxu0
        %4340 = vmatprep.mubr.bf16.mxu0 %v3706
        %4341 = vmatmul.mubr.bf16.gmra.mrb[0].mxu0 %v3705
        %v4342 = vpop.f32.mrb[0].mxu0
        %v4343 = vadd.f32 %v4182, %v4342
        %v4344 = vpop.f32.mrb[0].mxu0
        %v4345 = vpop.f32.mrb[0].mxu0
        %v4346 = vadd.f32 %v4185, %v4345
        %v4347 = vpop.f32.mrb[0].mxu0
        %4348 = vmatprep.mubr.bf16.mxu0 %v3711
        %4349 = vmatmul.mubr.bf16.gmra.mrb[0].mxu0 %v3710
        %v4350 = vpop.f32.mrb[0].mxu0
        %v4351 = vadd.f32 %v4190, %v4350
        %v4352 = vpop.f32.mrb[0].mxu0
        %v4353 = vpop.f32.mrb[0].mxu0
        %v4354 = vadd.f32 %v4193, %v4353
        %v4355 = vpop.f32.mrb[0].mxu0
        %4356 = vmatprep.mubr.bf16.mxu0 %v3716
        %4357 = vmatmul.mubr.bf16.gmra.mrb[0].mxu0 %v3715
        %v4358 = vpop.f32.mrb[0].mxu0
        %v4359 = vadd.f32 %v4198, %v4358
        %v4360 = vpop.f32.mrb[0].mxu0
        %v4361 = vpop.f32.mrb[0].mxu0
        %v4362 = vadd.f32 %v4201, %v4361
        %v4363 = vpop.f32.mrb[0].mxu0
        %4364 = vmatprep.mubr.bf16.mxu0 %v3721
        %4365 = vmatmul.mubr.bf16.gmra.mrb[0].mxu0 %v3720
        %v4366 = vpop.f32.mrb[0].mxu0
        %v4367 = vadd.f32 %v4206, %v4366
        %v4368 = vpop.f32.mrb[0].mxu0
        %v4369 = vpop.f32.mrb[0].mxu0
        %v4370 = vadd.f32 %v4209, %v4369
        %v4371 = vpop.f32.mrb[0].mxu0
        %4372 = vmatprep.mubr.bf16.mxu0 %v3726
        %4373 = vmatmul.mubr.bf16.gmra.mrb[0].mxu0 %v3725
        %v4374 = vpop.f32.mrb[0].mxu0
        %v4375 = vadd.f32 %v4214, %v4374
        %v4376 = vpop.f32.mrb[0].mxu0
        %v4377 = vpop.f32.mrb[0].mxu0
        %v4378 = vadd.f32 %v4217, %v4377
        %v4379 = vpop.f32.mrb[0].mxu0
        %4380 = vmatprep.mubr.bf16.mxu0 %v3731
        %4381 = vmatmul.mubr.bf16.gmra.mrb[0].mxu0 %v3730
        %v4382 = vpop.f32.mrb[0].mxu0
        %v4383 = vadd.f32 %v4222, %v4382
        %v4384 = vpop.f32.mrb[0].mxu0
        %v4385 = vpop.f32.mrb[0].mxu0
        %v4386 = vadd.f32 %v4225, %v4385
        %v4387 = vpop.f32.mrb[0].mxu0
        %4388 = vmatprep.mubr.bf16.mxu0 %v3736
        %4389 = vmatmul.mubr.bf16.gmra.mrb[0].mxu0 %v3735
        %v4390 = vpop.f32.mrb[0].mxu0
        %v4391 = vadd.f32 %v4230, %v4390
        %v4392 = vpop.f32.mrb[0].mxu0
        %v4393 = vpop.f32.mrb[0].mxu0
        %v4394 = vadd.f32 %v4233, %v4393
        %v4395 = vpop.f32.mrb[0].mxu0
        %4396 = vmatprep.mubr.bf16.mxu0 %v3741
        %4397 = vmatmul.mubr.bf16.gmra.mrb[0].mxu0 %v3740
        %v4398 = vpop.f32.mrb[0].mxu0
        %v4399 = vadd.f32 %v4238, %v4398
        %v4400 = vpop.f32.mrb[0].mxu0
        %v4401 = vpop.f32.mrb[0].mxu0
        %v4402 = vadd.f32 %v4241, %v4401
        %v4403 = vpop.f32.mrb[0].mxu0
        %4404 = vmatprep.mubr.bf16.mxu0 %v3746
        %4405 = vmatmul.mubr.bf16.gmra.mrb[0].mxu0 %v3745
        %v4406 = vpop.f32.mrb[0].mxu0
        %v4407 = vadd.f32 %v4246, %v4406
        %v4408 = vpop.f32.mrb[0].mxu0
        %v4409 = vpop.f32.mrb[0].mxu0
        %v4410 = vadd.f32 %v4249, %v4409
        %v4411 = vpop.f32.mrb[0].mxu0
        %4412 = vdwg.mxu0
        %4413 = vmatprep.subr.bf16.mxu0 0
        %4414 = vmatpush1.bf16.msra.mxu0 %v4003
        %4415 = vmatprep.subr.bf16.mxu0 0
        %4416 = vmatpush1.bf16.msra.mxu0 %v4004
        %4417 = vmatprep.subr.bf16.mxu0 0
        %4418 = vmatpush1.bf16.msra.mxu0 %v4005
        %4419 = vmatprep.subr.bf16.mxu0 0
        %4420 = vmatpush1.bf16.msra.mxu0 %v4006
        %4421 = vmatprep.subr.bf16.mxu0 0
        %4422 = vmatpush1.bf16.msra.mxu0 0
        %4423 = vmatprep.subr.bf16.mxu0 0
        %4424 = vmatpush1.bf16.msra.mxu0 0
        %4425 = vmatprep.subr.bf16.mxu0 0
        %4426 = vmatpush1.bf16.msra.mxu0 0
        %4427 = vmatprep.subr.bf16.mxu0 0
        %4428 = vmatpush1.bf16.msra.mxu0 0
        %4429 = vmatprep.subr.bf16.mxu0 0
        %4430 = vmatpush1.bf16.msra.mxu0 0
        %4431 = vmatprep.subr.bf16.mxu0 0
        %4432 = vmatpush1.bf16.msra.mxu0 0
        %4433 = vmatprep.subr.bf16.mxu0 0
        %4434 = vmatpush1.bf16.msra.mxu0 0
        %4435 = vmatprep.subr.bf16.mxu0 0
        %4436 = vmatpush1.bf16.msra.mxu0 0
        %4437 = vmatprep.subr.bf16.mxu0 0
        %4438 = vmatpush1.bf16.msra.mxu0 0
        %4439 = vmatprep.subr.bf16.mxu0 0
        %4440 = vmatpush1.bf16.msra.mxu0 0
        %4441 = vmatprep.subr.bf16.mxu0 0
        %4442 = vmatpush1.bf16.msra.mxu0 0
        %4443 = vmatprep.subr.bf16.mxu0 0
        %4444 = vmatpush1.bf16.msra.mxu0 0
        %4445 = vmatprep.mubr.bf16.mxu0 0
        %4446 = vmatmul.mubr.bf16.gmra.mrb[0].mxu0 %v4044
        %v4447 = vpop.f32.mrb[0].mxu0
        %v4448 = vadd.f32 %v4287, %v4447
        %v4449 = vpop.f32.mrb[0].mxu0
        %v4450 = vpop.f32.mrb[0].mxu0
        %v4451 = vadd.f32 %v4290, %v4450
        %v4452 = vpop.f32.mrb[0].mxu0
        %4453 = vmatprep.mubr.bf16.mxu0 0
        %4454 = vmatmul.mubr.bf16.gmra.mrb[0].mxu0 %v4047
        %v4455 = vpop.f32.mrb[0].mxu0
        %v4456 = vadd.f32 %v4295, %v4455
        %v4457 = vpop.f32.mrb[0].mxu0
        %v4458 = vpop.f32.mrb[0].mxu0
        %v4459 = vadd.f32 %v4298, %v4458
        %v4460 = vpop.f32.mrb[0].mxu0
        %4461 = vmatprep.mubr.bf16.mxu0 0
        %4462 = vmatmul.mubr.bf16.gmra.mrb[0].mxu0 %v4050
        %v4463 = vpop.f32.mrb[0].mxu0
        %v4464 = vadd.f32 %v4303, %v4463
        %v4465 = vpop.f32.mrb[0].mxu0
        %v4466 = vpop.f32.mrb[0].mxu0
        %v4467 = vadd.f32 %v4306, %v4466
        %v4468 = vpop.f32.mrb[0].mxu0
        %4469 = vmatprep.mubr.bf16.mxu0 0
        %4470 = vmatmul.mubr.bf16.gmra.mrb[0].mxu0 %v4053
        %v4471 = vpop.f32.mrb[0].mxu0
        %v4472 = vadd.f32 %v4311, %v4471
        %v4473 = vpop.f32.mrb[0].mxu0
        %v4474 = vpop.f32.mrb[0].mxu0
        %v4475 = vadd.f32 %v4314, %v4474
        %v4476 = vpop.f32.mrb[0].mxu0
        %4477 = vmatprep.mubr.bf16.mxu0 0
        %4478 = vmatmul.mubr.bf16.gmra.mrb[0].mxu0 %v4056
        %v4479 = vpop.f32.mrb[0].mxu0
        %v4480 = vadd.f32 %v4319, %v4479
        %v4481 = vpop.f32.mrb[0].mxu0
        %v4482 = vpop.f32.mrb[0].mxu0
        %v4483 = vadd.f32 %v4322, %v4482
        %v4484 = vpop.f32.mrb[0].mxu0
        %4485 = vmatprep.mubr.bf16.mxu0 0
        %4486 = vmatmul.mubr.bf16.gmra.mrb[0].mxu0 %v4059
        %v4487 = vpop.f32.mrb[0].mxu0
        %v4488 = vadd.f32 %v4327, %v4487
        %v4489 = vpop.f32.mrb[0].mxu0
        %v4490 = vpop.f32.mrb[0].mxu0
        %v4491 = vadd.f32 %v4330, %v4490
        %v4492 = vpop.f32.mrb[0].mxu0
        %4493 = vmatprep.mubr.bf16.mxu0 0
        %4494 = vmatmul.mubr.bf16.gmra.mrb[0].mxu0 %v4062
        %v4495 = vpop.f32.mrb[0].mxu0
        %v4496 = vadd.f32 %v4335, %v4495
        %v4497 = vpop.f32.mrb[0].mxu0
        %v4498 = vpop.f32.mrb[0].mxu0
        %v4499 = vadd.f32 %v4338, %v4498
        %v4500 = vpop.f32.mrb[0].mxu0
        %4501 = vmatprep.mubr.bf16.mxu0 0
        %4502 = vmatmul.mubr.bf16.gmra.mrb[0].mxu0 %v4065
        %v4503 = vpop.f32.mrb[0].mxu0
        %v4504 = vadd.f32 %v4343, %v4503
        %v4505 = vpop.f32.mrb[0].mxu0
        %v4506 = vpop.f32.mrb[0].mxu0
        %v4507 = vadd.f32 %v4346, %v4506
        %v4508 = vpop.f32.mrb[0].mxu0
        %4509 = vmatprep.mubr.bf16.mxu0 0
        %4510 = vmatmul.mubr.bf16.gmra.mrb[0].mxu0 %v4068
        %v4511 = vpop.f32.mrb[0].mxu0
        %v4512 = vadd.f32 %v4351, %v4511
        %v4513 = vpop.f32.mrb[0].mxu0
        %v4514 = vpop.f32.mrb[0].mxu0
        %v4515 = vadd.f32 %v4354, %v4514
        %v4516 = vpop.f32.mrb[0].mxu0
        %4517 = vmatprep.mubr.bf16.mxu0 0
        %4518 = vmatmul.mubr.bf16.gmra.mrb[0].mxu0 %v4071
        %v4519 = vpop.f32.mrb[0].mxu0
        %v4520 = vadd.f32 %v4359, %v4519
        %v4521 = vpop.f32.mrb[0].mxu0
        %v4522 = vpop.f32.mrb[0].mxu0
        %v4523 = vadd.f32 %v4362, %v4522
        %v4524 = vpop.f32.mrb[0].mxu0
        %4525 = vmatprep.mubr.bf16.mxu0 0
        %4526 = vmatmul.mubr.bf16.gmra.mrb[0].mxu0 %v4074
        %v4527 = vpop.f32.mrb[0].mxu0
        %v4528 = vadd.f32 %v4367, %v4527
        %v4529 = vpop.f32.mrb[0].mxu0
        %v4530 = vpop.f32.mrb[0].mxu0
        %v4531 = vadd.f32 %v4370, %v4530
        %v4532 = vpop.f32.mrb[0].mxu0
        %4533 = vmatprep.mubr.bf16.mxu0 0
        %4534 = vmatmul.mubr.bf16.gmra.mrb[0].mxu0 %v4077
        %v4535 = vpop.f32.mrb[0].mxu0
        %v4536 = vadd.f32 %v4375, %v4535
        %v4537 = vpop.f32.mrb[0].mxu0
        %v4538 = vpop.f32.mrb[0].mxu0
        %v4539 = vadd.f32 %v4378, %v4538
        %v4540 = vpop.f32.mrb[0].mxu0
        %4541 = vmatprep.mubr.bf16.mxu0 0
        %4542 = vmatmul.mubr.bf16.gmra.mrb[0].mxu0 %v4080
        %v4543 = vpop.f32.mrb[0].mxu0
        %v4544 = vadd.f32 %v4383, %v4543
        %v4545 = vpop.f32.mrb[0].mxu0
        %v4546 = vpop.f32.mrb[0].mxu0
        %v4547 = vadd.f32 %v4386, %v4546
        %v4548 = vpop.f32.mrb[0].mxu0
        %4549 = vmatprep.mubr.bf16.mxu0 0
        %4550 = vmatmul.mubr.bf16.gmra.mrb[0].mxu0 %v4083
        %v4551 = vpop.f32.mrb[0].mxu0
        %v4552 = vadd.f32 %v4391, %v4551
        %v4553 = vpop.f32.mrb[0].mxu0
        %v4554 = vpop.f32.mrb[0].mxu0
        %v4555 = vadd.f32 %v4394, %v4554
        %v4556 = vpop.f32.mrb[0].mxu0
        %4557 = vmatprep.mubr.bf16.mxu0 0
        %4558 = vmatmul.mubr.bf16.gmra.mrb[0].mxu0 %v4086
        %v4559 = vpop.f32.mrb[0].mxu0
        %v4560 = vadd.f32 %v4399, %v4559
        %v4561 = vpop.f32.mrb[0].mxu0
        %v4562 = vpop.f32.mrb[0].mxu0
        %v4563 = vadd.f32 %v4402, %v4562
        %v4564 = vpop.f32.mrb[0].mxu0
        %4565 = vmatprep.mubr.bf16.mxu0 0
        %4566 = vmatmul.mubr.bf16.gmra.mrb[0].mxu0 %v4089
        %v4567 = vpop.f32.mrb[0].mxu0
        %v4568 = vadd.f32 %v4407, %v4567
        %v4569 = vpop.f32.mrb[0].mxu0
        %v4570 = vpop.f32.mrb[0].mxu0
        %v4571 = vadd.f32 %v4410, %v4570
        %v4572 = vpop.f32.mrb[0].mxu0
        %4573 = vdwg.mxu0
        %v4574 = vmax.f32 %v4448, 0.0
        %v4575 = vmax.f32 %v4451, 0.0
        %v4576 = vmax.f32 %v4456, 0.0
        %v4577 = vmax.f32 %v4459, 0.0
        %v4578 = vmax.f32 %v4464, 0.0
        %v4579 = vmax.f32 %v4467, 0.0
        %v4580 = vmax.f32 %v4472, 0.0
        %v4581 = vmax.f32 %v4475, 0.0
        %v4582 = vmax.f32 %v4480, 0.0
        %v4583 = vmax.f32 %v4483, 0.0
        %v4584 = vmax.f32 %v4488, 0.0
        %v4585 = vmax.f32 %v4491, 0.0
        %v4586 = vmax.f32 %v4496, 0.0
        %v4587 = vmax.f32 %v4499, 0.0
        %v4588 = vmax.f32 %v4504, 0.0
        %v4589 = vmax.f32 %v4507, 0.0
        %v4590 = vmax.f32 %v4512, 0.0
        %v4591 = vmax.f32 %v4515, 0.0
        %v4592 = vmax.f32 %v4520, 0.0
        %v4593 = vmax.f32 %v4523, 0.0
        %v4594 = vmax.f32 %v4528, 0.0
        %v4595 = vmax.f32 %v4531, 0.0
        %v4596 = vmax.f32 %v4536, 0.0
        %v4597 = vmax.f32 %v4539, 0.0
        %v4598 = vmax.f32 %v4544, 0.0
        %v4599 = vmax.f32 %v4547, 0.0
        %v4600 = vmax.f32 %v4552, 0.0
        %v4601 = vmax.f32 %v4555, 0.0
        %v4602 = vmax.f32 %v4560, 0.0
        %v4603 = vmax.f32 %v4563, 0.0
        %v4604 = vmax.f32 %v4568, 0.0
        %v4605 = vmax.f32 %v4571, 0.0
        %v4606 = vpack.c.bf16 %v4575, %v4574
        %v4607 = vpack.c.bf16 %v4577, %v4576
        %v4608 = vpack.c.bf16 %v4579, %v4578
        %v4609 = vpack.c.bf16 %v4581, %v4580
        %v4610 = vpack.c.bf16 %v4583, %v4582
        %v4611 = vpack.c.bf16 %v4585, %v4584
        %v4612 = vpack.c.bf16 %v4587, %v4586
        %v4613 = vpack.c.bf16 %v4589, %v4588
        %v4614 = vpack.c.bf16 %v4591, %v4590
        %v4615 = vpack.c.bf16 %v4593, %v4592
        %v4616 = vpack.c.bf16 %v4595, %v4594
        %v4617 = vpack.c.bf16 %v4597, %v4596
        %v4618 = vpack.c.bf16 %v4599, %v4598
        %v4619 = vpack.c.bf16 %v4601, %v4600
        %v4620 = vpack.c.bf16 %v4603, %v4602
        %v4621 = vpack.c.bf16 %v4605, %v4604
        %v4638 = vunpack.c.l.b16 %v4606
        %v4639 = vunpack.c.h.b16 %v4606
        %v4640 = vunpack.c.l.b16 %v4607
        %v4641 = vunpack.c.h.b16 %v4607
        %v4642 = vunpack.c.l.b16 %v4608
        %v4643 = vunpack.c.h.b16 %v4608
        %v4644 = vunpack.c.l.b16 %v4609
        %v4645 = vunpack.c.h.b16 %v4609
        %v4646 = vunpack.c.l.b16 %v4610
        %v4647 = vunpack.c.h.b16 %v4610
        %v4648 = vunpack.c.l.b16 %v4611
        %v4649 = vunpack.c.h.b16 %v4611
        %v4650 = vunpack.c.l.b16 %v4612
        %v4651 = vunpack.c.h.b16 %v4612
        %v4652 = vunpack.c.l.b16 %v4613
        %v4653 = vunpack.c.h.b16 %v4613
        %v4654 = vunpack.c.l.b16 %v4614
        %v4655 = vunpack.c.h.b16 %v4614
        %v4656 = vunpack.c.l.b16 %v4615
        %v4657 = vunpack.c.h.b16 %v4615
        %v4658 = vunpack.c.l.b16 %v4616
        %v4659 = vunpack.c.h.b16 %v4616
        %v4660 = vunpack.c.l.b16 %v4617
        %v4661 = vunpack.c.h.b16 %v4617
        %v4662 = vunpack.c.l.b16 %v4618
        %v4663 = vunpack.c.h.b16 %v4618
        %v4664 = vunpack.c.l.b16 %v4619
        %v4665 = vunpack.c.h.b16 %v4619
        %v4666 = vunpack.c.l.b16 %v4620
        %v4667 = vunpack.c.h.b16 %v4620
        %v4668 = vunpack.c.l.b16 %v4621
        %v4669 = vunpack.c.h.b16 %v4621
        %v4670 = vpack.c.b16 %v4638, %v4638
        %v4671 = vpack.c.b16 %v4639, %v4639
        %v4672 = vpack.c.b16 %v4640, %v4640
        %v4673 = vpack.c.b16 %v4641, %v4641
        %v4674 = vpack.c.b16 %v4642, %v4642
        %v4675 = vpack.c.b16 %v4643, %v4643
        %v4676 = vpack.c.b16 %v4644, %v4644
        %v4677 = vpack.c.b16 %v4645, %v4645
        %v4678 = vpack.c.b16 %v4646, %v4646
        %v4679 = vpack.c.b16 %v4647, %v4647
        %v4680 = vpack.c.b16 %v4648, %v4648
        %v4681 = vpack.c.b16 %v4649, %v4649
        %v4682 = vpack.c.b16 %v4650, %v4650
        %v4683 = vpack.c.b16 %v4651, %v4651
        %v4684 = vpack.c.b16 %v4652, %v4652
        %v4685 = vpack.c.b16 %v4653, %v4653
        %v4686 = vpack.c.b16 %v4654, %v4654
        %v4687 = vpack.c.b16 %v4655, %v4655
        %v4688 = vpack.c.b16 %v4656, %v4656
        %v4689 = vpack.c.b16 %v4657, %v4657
        %v4690 = vpack.c.b16 %v4658, %v4658
        %v4691 = vpack.c.b16 %v4659, %v4659
        %v4692 = vpack.c.b16 %v4660, %v4660
        %v4693 = vpack.c.b16 %v4661, %v4661
        %v4694 = vpack.c.b16 %v4662, %v4662
        %v4695 = vpack.c.b16 %v4663, %v4663
        %v4696 = vpack.c.b16 %v4664, %v4664
        %v4697 = vpack.c.b16 %v4665, %v4665
        %v4698 = vpack.c.b16 %v4666, %v4666
        %v4699 = vpack.c.b16 %v4667, %v4667
        %v4700 = vpack.c.b16 %v4668, %v4668
        %v4701 = vpack.c.b16 %v4669, %v4669
        %4734 = vst.msk [vmem:[%s163] sm:$0xf] %vm170, %v4670
        %4735 = vst.msk [vmem:[%s163 + $0x4] sm:$0xf] %vm170, %v4671
        %4736 = vst.msk [vmem:[%s163 + $0x8] sm:$0xf] %vm170, %v4672
        %4737 = vst.msk [vmem:[%s163 + $0xc] sm:$0xf] %vm170, %v4673
        %4738 = vst.msk [vmem:[%s163 + $0x10] sm:$0xf] %vm170, %v4674
        %4739 = vst.msk [vmem:[%s163 + $0x14] sm:$0xf] %vm170, %v4675
        %4740 = vst.msk [vmem:[%s163 + $0x18] sm:$0xf] %vm170, %v4676
        %4741 = vst.msk [vmem:[%s163 + $0x1c] sm:$0xf] %vm170, %v4677
        %4742 = vst.msk [vmem:[%s163 + $0x20] sm:$0xf] %vm170, %v4678
        %4743 = vst.msk [vmem:[%s163 + $0x24] sm:$0xf] %vm170, %v4679
        %4744 = vst.msk [vmem:[%s163 + $0x28] sm:$0xf] %vm170, %v4680
        %4745 = vst.msk [vmem:[%s163 + $0x2c] sm:$0xf] %vm170, %v4681
        %4746 = vst.msk [vmem:[%s163 + $0x30] sm:$0xf] %vm170, %v4682
        %4747 = vst.msk [vmem:[%s163 + $0x34] sm:$0xf] %vm170, %v4683
        %4748 = vst.msk [vmem:[%s163 + $0x38] sm:$0xf] %vm170, %v4684
        %4749 = vst.msk [vmem:[%s163 + $0x3c] sm:$0xf] %vm170, %v4685
        %4750 = vst.msk [vmem:[%s163 + $0x40] sm:$0xf] %vm170, %v4686
        %4751 = vst.msk [vmem:[%s163 + $0x44] sm:$0xf] %vm170, %v4687
        %4752 = vst.msk [vmem:[%s163 + $0x48] sm:$0xf] %vm170, %v4688
        %4753 = vst.msk [vmem:[%s163 + $0x4c] sm:$0xf] %vm170, %v4689
        %4754 = vst.msk [vmem:[%s163 + $0x50] sm:$0xf] %vm170, %v4690
        %4755 = vst.msk [vmem:[%s163 + $0x54] sm:$0xf] %vm170, %v4691
        %4756 = vst.msk [vmem:[%s163 + $0x58] sm:$0xf] %vm170, %v4692
        %4757 = vst.msk [vmem:[%s163 + $0x5c] sm:$0xf] %vm170, %v4693
        %4758 = vst.msk [vmem:[%s163 + $0x60] sm:$0xf] %vm170, %v4694
        %4759 = vst.msk [vmem:[%s163 + $0x64] sm:$0xf] %vm170, %v4695
        %4760 = vst.msk [vmem:[%s163 + $0x68] sm:$0xf] %vm170, %v4696
        %4761 = vst.msk [vmem:[%s163 + $0x6c] sm:$0xf] %vm170, %v4697
        %4762 = vst.msk [vmem:[%s163 + $0x70] sm:$0xf] %vm170, %v4698
        %4763 = vst.msk [vmem:[%s163 + $0x74] sm:$0xf] %vm170, %v4699
        %4764 = vst.msk [vmem:[%s163 + $0x78] sm:$0xf] %vm170, %v4700
        %4765 = vst.msk [vmem:[%s163 + $0x7c] sm:$0xf] %vm170, %v4701
        %s4766 = sand.u32 %s93, 1
        %s4767 = scalar_lea.sflag [#allocation5], %s4766
        %s4768 = sand.u32 %s93, 1
        %s4769 = smul.addr %s4768, 128
        %s4770 = scalar_lea.vmem [#allocation4], %s4769
        // Predicated region
        $region33: #{tpu_custom_call.1} parent=31 // pred_check
          %p4771 = pneg %p103
        $region34: #{tpu_custom_call.1} parent=31 // pred_check_branch
          %4773 = sbr.rel (%p4771) target = $region36
        $region35: #{tpu_custom_call.1} parent=31 // pred_region
          %s4775 = ssub.s32 2048, 2048
          %4776 = vsyncadd %s4767, %s4775
          %s4777 = smul.addr %s17, 32
          %s4778 = smul.addr %s4777, 64
          %s4779 = scalar_lea.hbm %s3, %s4778
          %s4780 = sshll.u32 %s4770, 4
          %s4781 = int_to_ptr.vmem [resolvable:$true] %s4780
          %4786 = dma.vmem_to_hbm [thread:$0]  %s4781, 2048, %s4779, %s4767, 64, 64, 4
        $region36: #{tpu_custom_call.1} parent=31 // pred_fallthru
          _
      $region32: #{tpu_custom_call.1} parent=5 // pred_fallthru
        _
      %p4787 = scmp.le.s32.totalorder 2, %s12
      // Predicated region
      $region37: #{tpu_custom_call.1} parent=5 // pred_check
        %p4788 = pneg %p4787
      $region38: #{tpu_custom_call.1} parent=5 // pred_check_branch
        %4790 = sbr.rel (%p4788) target = $region40
      $region39: #{tpu_custom_call.1} parent=5 // pred_region
        %s4791 = ssub.s32 %s12, 2
        // Predicated region
        $region41: #{tpu_custom_call.1} parent=39 // pred_check
          %p4792 = pneg %p109
        $region42: #{tpu_custom_call.1} parent=39 // pred_check_branch
          %4794 = sbr.rel (%p4792) target = $region44
        $region43: #{tpu_custom_call.1} parent=39 // pred_region
          %s4795 = sand.u32 %s94, 1
          %s4796 = scalar_lea.sflag [#allocation5], %s4795
          %s4797 = sand.u32 %s94, 1
          %s4798 = smul.addr %s4797, 128
          %s4799 = scalar_lea.vmem [#allocation4], %s4798
          %4800 = dma.done %s4796, 2048
        $region44: #{tpu_custom_call.1} parent=39 // pred_fallthru
          _
      $region40: #{tpu_custom_call.1} parent=5 // pred_fallthru
        _
    $region6: #{tpu_custom_call.1} parent=1 // loop_footer
      %s16 = sadd.s32 1, %s12
    $region7: #{tpu_custom_call.1} parent=1 // loop_footer_branch
      %11 = sbr.rel target = $region3
    $region8: #{tpu_custom_call.1} parent=1 // loop_exit
      _
    %4801 = vsyncpa [#allocation5], 1
    %s4802 = scalar_lea.sflag [#allocation5], 1
    %4803 = vsyncpa %s4802, 1

</llo_original>
